<compile_context>
chip_gen: v6e
topology: v6e:2x2x1
jax: 0.10.0
libtpu: 0.0.40
codegen_flags: <defaults>
</compile_context>

<pallas_src>
import functools

import jax
import jax.numpy as jnp
import numpy as np
from jax.experimental import pallas as pl
from jax.experimental.pallas import tpu as pltpu

EPS = 1e-5


def _reszero_kernel(x_ref, gamma_ref, beta_ref, pinv_ref, mask_ref, w_ref, b_ref, o_ref, *, width):
    # x_ref: (NB, C, HW)      gamma/beta: (C, 1)
    # pinv_ref: (C, C)        block-diagonal group membership, pre-scaled by 1/(HW*cs)
    # mask_ref: (9, 1, HW)    precomputed 3x3-tap boundary masks (center row is all ones)
    # w_ref: (10, Co, C)      taps 0..8 = 3x3 conv weights (t = ky*3+kx), tap 9 = 1x1 skip
    # b_ref: (Co, 1)          fused bias (conv bias + skip bias)
    # o_ref: (NB, Co, HW)
    nb, _, hw = x_ref.shape

    for n in range(nb):                                   # static unroll; nb is 1 (v7x) or N (v5e/v6e)
        x2 = x_ref[n]                                      # (C, HW) f32, HW on lanes

        # ---------------- GroupNorm(G, C) ----------------
        # Per-channel sums, then one precomputed block-diagonal matmul per statistic: P@s both
        # reduces over the group AND broadcasts back per-channel (scaling already folded into P).
        s = jnp.sum(x2, axis=1, keepdims=True)             # (C, 1)
        sq = jnp.sum(x2 * x2, axis=1, keepdims=True)       # (C, 1)
        mean_c = jnp.dot(pinv_ref[...], s, preferred_element_type=jnp.float32)   # (C, 1)
        msq_c = jnp.dot(pinv_ref[...], sq, preferred_element_type=jnp.float32)   # (C, 1)
        # NOTE: E[x^2]-E[x]^2 in f32 is fine for normalized-scale activations; it is cancellative
        # for large-mean inputs (PyTorch GroupNorm uses a two-pass formulation).
        inv_c = jax.lax.rsqrt(msq_c - mean_c * mean_c + EPS)
        a_c = inv_c * gamma_ref[...]                       # fused per-channel scale
        b_c = beta_ref[...] - mean_c * a_c                 # fused per-channel shift

        hn = x2 * a_c + b_c
        # ---------------- SiLU (sigmoid lowers to the EUP logistic path) ----------------
        hn = hn * jax.nn.sigmoid(hn)
        # TODO(synk): nn.Dropout is applied as identity (eval mode); training-mode RNG masking omitted.

        # ------- 1x1 skip matmul FIRST: initializes the accumulator and ends x2's live range -------
        acc = jnp.dot(w_ref[9], x2, preferred_element_type=jnp.float32)           # (Co, HW)

        # ------- 3x3 conv (pad=1): 9 lane-rolled taps, masked & matmul-accumulated (no scratch) ----
        for t in range(9):
            dy, dx = t // 3 - 1, t % 3 - 1
            off = dy * width + dx
            if off == 0:
                tap = hn                                    # center tap: no roll, no mask needed
            else:
                tap = pltpu.roll(hn, shift=(-off) % hw, axis=1) * mask_ref[t]
            acc = acc + jnp.dot(w_ref[t], tap, preferred_element_type=jnp.float32)

        o_ref[n] = acc + b_ref[...]                         # lane-dense (HW-wide) store


def _samples_per_step(n):
    """v7x has 2 TensorCores per chip -> keep grid=(N,) and shard samples across cores.
    Single-TC chips (v5e/v6e) -> fold the whole batch into one grid step (grid=(1,))."""
    try:
        kind = jax.devices()[0].device_kind.lower()
    except Exception:
        kind = ""
    if "v7" in kind or "7x" in kind:
        return 1
    return n


def res_zero_block(x_nchw, gamma, beta, w3, b3, ws, bs, *, num_groups=32):
    """x_nchw: (N, C, H, W) f32. gamma/beta: (C,). w3: (3,3,C,Co) HWIO. b3: (Co,).
    ws: (C, Co) 1x1-skip weight. bs: (Co,). Returns (N, Co, H, W) f32."""
    N, C, H, W = x_nchw.shape
    Co = w3.shape[-1]
    HW = H * W
    cs = C // num_groups

    nb = _samples_per_step(N)
    grid = (N // nb,)

    # NCHW-native: only free reshapes at the boundary, no transposes of the activations.
    x = x_nchw.reshape(N, C, HW)

    # 10-tap weight: taps 0..8 from the HWIO 3x3 kernel (t = ky*3+kx), tap 9 = 1x1 skip.
    w_conv = jnp.transpose(w3, (0, 1, 3, 2)).reshape(9, Co, C)
    w_all = jnp.concatenate([w_conv, ws.T.reshape(1, Co, C)], axis=0)     # (10, Co, C)
    b_all = (b3 + bs).reshape(Co, 1)
    # TODO(synk): when out_channels == channels the PyTorch skip is nn.Identity; here it is passed
    # as an explicit identity 1x1 weight (mathematically equivalent, slightly redundant work).

    # ---- host-precomputed constants (constant index_map inputs; no per-step VALU rebuild) ----
    grp = np.arange(C) // cs
    pinv = (grp[:, None] == grp[None, :]).astype(np.float32) / float(HW * cs)   # (C, C)

    ys, xs = np.divmod(np.arange(HW), W)
    masks = np.ones((9, 1, HW), np.float32)
    for t in range(9):
        dy, dx = t // 3 - 1, t % 3 - 1
        m = np.ones(HW, bool)
        if dy < 0:
            m &= ys >= -dy
        if dy > 0:
            m &= ys < H - dy
        if dx < 0:
            m &= xs >= -dx
        if dx > 0:
            m &= xs < W - dx
        masks[t, 0, :] = m

    kernel = functools.partial(_reszero_kernel, width=W)
    out = pl.pallas_call(
        kernel,
        out_shape=jax.ShapeDtypeStruct((N, Co, HW), jnp.float32),
        grid_spec=pltpu.PrefetchScalarGridSpec(
            num_scalar_prefetch=0,
            grid=grid,
            in_specs=[
                pl.BlockSpec((nb, C, HW), lambda i: (i, 0, 0)),     # x, lane-dense
                pl.BlockSpec((C, 1), lambda i: (0, 0)),             # gamma
                pl.BlockSpec((C, 1), lambda i: (0, 0)),             # beta
                pl.BlockSpec((C, C), lambda i: (0, 0)),             # pre-scaled group membership
                pl.BlockSpec((9, 1, HW), lambda i: (0, 0, 0)),      # boundary masks
                pl.BlockSpec((10, Co, C), lambda i: (0, 0, 0)),     # 10-tap weights (conv + skip)
                pl.BlockSpec((Co, 1), lambda i: (0, 0)),            # fused bias
            ],
            out_specs=pl.BlockSpec((nb, Co, HW), lambda i: (i, 0, 0)),
        ),
        compiler_params=pltpu.CompilerParams(dimension_semantics=("parallel",)),
    )(x, gamma.reshape(C, 1), beta.reshape(C, 1),
      jnp.asarray(pinv), jnp.asarray(masks), w_all, b_all)

    return out.reshape(N, Co, H, W)


def _reference(x, gamma, beta, w3, b3, ws, bs, num_groups=32):
    """Plain-JAX reference of ResZeroBlock._forward (NCHW)."""
    N, C, H, W = x.shape
    Co = w3.shape[-1]
    xr = x.reshape(N, num_groups, -1)
    mean = xr.mean(-1, keepdims=True)
    var = xr.var(-1, keepdims=True)
    xn = (xr - mean) * jax.lax.rsqrt(var + EPS)
    xn = xn.reshape(N, C, H, W) * gamma.reshape(1, C, 1, 1) + beta.reshape(1, C, 1, 1)
    h = xn * jax.nn.sigmoid(xn)
    h = jax.lax.conv_general_dilated(
        h, w3, (1, 1), 'SAME',
        dimension_numbers=('NCHW', 'HWIO', 'NCHW')) + b3.reshape(1, Co, 1, 1)
    skip = jax.lax.conv_general_dilated(
        x, ws.reshape(1, 1, C, Co), (1, 1), 'SAME',
        dimension_numbers=('NCHW', 'HWIO', 'NCHW')) + bs.reshape(1, Co, 1, 1)
    return skip + h


if __name__ == "__main__":
    # Module hyper-params: channels=64, out_channels=32, dims=2, GroupNorm(32, channels).
    N, C, Co, H, W = 2, 64, 32, 16, 16
    NUM_GROUPS = 32

    key = jax.random.PRNGKey(0)
    kx, kw, kb, kw3, kb3, kg, kbt = jax.random.split(key, 7)

    # --- module-faithful parameters ---
    # normalization(channels) -> GroupNorm32: weight=1, bias=0 (PyTorch default init)
    gamma = jnp.ones((C,), jnp.float32)
    beta = jnp.zeros((C,), jnp.float32)
    # zero_module(conv_nd(2, C, Co, 3, padding=1)) -> zero-initialized weight & bias (HWIO)
    w3 = jnp.zeros((3, 3, C, Co), jnp.float32)
    b3 = jnp.zeros((Co,), jnp.float32)
    # skip_connection = conv_nd(2, C, Co, 1): deterministic uniform init (fan_in = C)
    bound = 1.0 / np.sqrt(C)
    ws = jax.random.uniform(kw, (C, Co), jnp.float32, -bound, bound)
    bs = jax.random.uniform(kb, (Co,), jnp.float32, -bound, bound)

    x = jax.random.normal(kx, (N, C, H, W), jnp.float32)

    out = res_zero_block(x, gamma, beta, w3, b3, ws, bs, num_groups=NUM_GROUPS)
    out = jax.block_until_ready(out)
    ref = _reference(x, gamma, beta, w3, b3, ws, bs, num_groups=NUM_GROUPS)
    np.testing.assert_allclose(np.asarray(out), np.asarray(ref), atol=1e-4, rtol=1e-4)

    # --- extra correctness check with non-zero conv/affine params so the 3x3 roll+mask+matmul
    #     accumulation path is actually exercised, not just the skip path ---
    w3_r = 0.05 * jax.random.normal(kw3, (3, 3, C, Co), jnp.float32)
    b3_r = 0.05 * jax.random.normal(kb3, (Co,), jnp.float32)
    gamma_r = 1.0 + 0.1 * jax.random.normal(kg, (C,), jnp.float32)
    beta_r = 0.1 * jax.random.normal(kbt, (C,), jnp.float32)

    out2 = res_zero_block(x, gamma_r, beta_r, w3_r, b3_r, ws, bs, num_groups=NUM_GROUPS)
    out2 = jax.block_until_ready(out2)
    ref2 = _reference(x, gamma_r, beta_r, w3_r, b3_r, ws, bs, num_groups=NUM_GROUPS)
    np.testing.assert_allclose(np.asarray(out2), np.asarray(ref2), atol=1e-4, rtol=1e-4)

    print("KERNEL_OK")
</pallas_src>

<mosaic_0001>
module attributes {stable_mosaic.version = 11 : i64} {
  func.func @_reszero_kernel(%arg0: i32, %arg1: memref<2x64x256xf32, #tpu.memory_space<vmem>>, %arg2: memref<64x1xf32, #tpu.memory_space<vmem>>, %arg3: memref<64x1xf32, #tpu.memory_space<vmem>>, %arg4: memref<64x64xf32, #tpu.memory_space<vmem>>, %arg5: memref<9x1x256xf32, #tpu.memory_space<vmem>>, %arg6: memref<10x32x64xf32, #tpu.memory_space<vmem>>, %arg7: memref<32x1xf32, #tpu.memory_space<vmem>>, %arg8: memref<2x32x256xf32, #tpu.memory_space<vmem>>) attributes {dimension_semantics = [#tpu.dimension_semantics<parallel>], iteration_bounds = array<i64: 1>, scalar_prefetch = 0 : i64, scratch_operands = 0 : i64, tpu.core_type = #tpu.core_type<tc>, window_params = [{transform_indices = @transform_0, window_bounds = array<i64: 2, 64, 256>}, {pipeline_mode = #tpu.pipeline_mode<synchronous>, transform_indices = @transform_1, window_bounds = array<i64: 64, 1>}, {pipeline_mode = #tpu.pipeline_mode<synchronous>, transform_indices = @transform_2, window_bounds = array<i64: 64, 1>}, {pipeline_mode = #tpu.pipeline_mode<synchronous>, transform_indices = @transform_3, window_bounds = array<i64: 64, 64>}, {pipeline_mode = #tpu.pipeline_mode<synchronous>, transform_indices = @transform_4, window_bounds = array<i64: 9, 1, 256>}, {pipeline_mode = #tpu.pipeline_mode<synchronous>, transform_indices = @transform_5, window_bounds = array<i64: 10, 32, 64>}, {pipeline_mode = #tpu.pipeline_mode<synchronous>, transform_indices = @transform_6, window_bounds = array<i64: 32, 1>}, {transform_indices = @transform_7, window_bounds = array<i64: 2, 32, 256>}]} {
    %c0 = arith.constant 0 : index
    %c0_0 = arith.constant 0 : index
    %c0_1 = arith.constant 0 : index
    %0 = vector.load %arg1[%c0, %c0_0, %c0_1] : memref<2x64x256xf32, #tpu.memory_space<vmem>>, vector<1x64x256xf32>
    %1 = vector.shape_cast %0 : vector<1x64x256xf32> to vector<64x256xf32>
    %cst = arith.constant dense<0.000000e+00> : vector<64xf32>
    %2 = vector.multi_reduction <add>, %1, %cst [1] : vector<64x256xf32> to vector<64xf32>
    %3 = vector.shape_cast %2 : vector<64xf32> to vector<64x1xf32>
    %4 = arith.mulf %1, %1 : vector<64x256xf32>
    %cst_2 = arith.constant dense<0.000000e+00> : vector<64xf32>
    %5 = vector.multi_reduction <add>, %4, %cst_2 [1] : vector<64x256xf32> to vector<64xf32>
    %6 = vector.shape_cast %5 : vector<64xf32> to vector<64x1xf32>
    %c0_3 = arith.constant 0 : index
    %c0_4 = arith.constant 0 : index
    %7 = vector.load %arg4[%c0_3, %c0_4] : memref<64x64xf32, #tpu.memory_space<vmem>>, vector<64x64xf32>
    %cst_5 = arith.constant dense<0.000000e+00> : vector<64x1xf32>
    %8 = tpu.matmul %7, %3, %cst_5 {dimension_numbers = #tpu.dot_dimension_numbers<[1], [0], [0], [1], [0, 0, 1, 1], [], []>} : vector<64x64xf32>, vector<64x1xf32>, vector<64x1xf32> -> vector<64x1xf32>
    %c0_6 = arith.constant 0 : index
    %c0_7 = arith.constant 0 : index
    %9 = vector.load %arg4[%c0_6, %c0_7] : memref<64x64xf32, #tpu.memory_space<vmem>>, vector<64x64xf32>
    %cst_8 = arith.constant dense<0.000000e+00> : vector<64x1xf32>
    %10 = tpu.matmul %9, %6, %cst_8 {dimension_numbers = #tpu.dot_dimension_numbers<[1], [0], [0], [1], [0, 0, 1, 1], [], []>} : vector<64x64xf32>, vector<64x1xf32>, vector<64x1xf32> -> vector<64x1xf32>
    %11 = arith.mulf %8, %8 : vector<64x1xf32>
    %12 = arith.subf %10, %11 : vector<64x1xf32>
    %cst_9 = arith.constant 9.99999974E-6 : f32
    %13 = vector.broadcast %cst_9 : f32 to vector<64x1xf32>
    %14 = arith.addf %12, %13 : vector<64x1xf32>
    %15 = math.rsqrt %14 : vector<64x1xf32>
    %c0_10 = arith.constant 0 : index
    %c0_11 = arith.constant 0 : index
    %16 = vector.load %arg2[%c0_10, %c0_11] : memref<64x1xf32, #tpu.memory_space<vmem>>, vector<64x1xf32>
    %17 = arith.mulf %15, %16 : vector<64x1xf32>
    %c0_12 = arith.constant 0 : index
    %c0_13 = arith.constant 0 : index
    %18 = vector.load %arg3[%c0_12, %c0_13] : memref<64x1xf32, #tpu.memory_space<vmem>>, vector<64x1xf32>
    %19 = arith.mulf %8, %17 : vector<64x1xf32>
    %20 = arith.subf %18, %19 : vector<64x1xf32>
    %21 = vector.broadcast %17 : vector<64x1xf32> to vector<64x256xf32>
    %22 = arith.mulf %1, %21 : vector<64x256xf32>
    %23 = vector.broadcast %20 : vector<64x1xf32> to vector<64x256xf32>
    %24 = arith.addf %22, %23 : vector<64x256xf32>
    %25 = arith.negf %24 : vector<64x256xf32>
    %26 = math.exp %25 : vector<64x256xf32>
    %cst_14 = arith.constant 1.000000e+00 : f32
    %27 = vector.broadcast %cst_14 : f32 to vector<64x256xf32>
    %28 = arith.addf %27, %26 : vector<64x256xf32>
    %29 = arith.divf %27, %28 : vector<64x256xf32>
    %30 = arith.mulf %24, %29 : vector<64x256xf32>
    %c9 = arith.constant 9 : index
    %c0_15 = arith.constant 0 : index
    %c0_16 = arith.constant 0 : index
    %31 = vector.load %arg6[%c9, %c0_15, %c0_16] : memref<10x32x64xf32, #tpu.memory_space<vmem>>, vector<1x32x64xf32>
    %32 = vector.shape_cast %31 : vector<1x32x64xf32> to vector<32x64xf32>
    %cst_17 = arith.constant dense<0.000000e+00> : vector<32x256xf32>
    %33 = tpu.matmul %32, %1, %cst_17 {dimension_numbers = #tpu.dot_dimension_numbers<[1], [0], [0], [1], [0, 0, 1, 1], [], []>} : vector<32x64xf32>, vector<64x256xf32>, vector<32x256xf32> -> vector<32x256xf32>
    %c17_i32 = arith.constant 17 : i32
    %34 = tpu.dynamic_rotate %30 by %c17_i32 dim 1 : vector<64x256xf32>, i32 -> vector<64x256xf32>
    %c0_18 = arith.constant 0 : index
    %c0_19 = arith.constant 0 : index
    %c0_20 = arith.constant 0 : index
    %35 = vector.load %arg5[%c0_18, %c0_19, %c0_20] : memref<9x1x256xf32, #tpu.memory_space<vmem>>, vector<1x1x256xf32>
    %36 = vector.shape_cast %35 : vector<1x1x256xf32> to vector<1x256xf32>
    %37 = vector.broadcast %36 : vector<1x256xf32> to vector<64x256xf32>
    %38 = arith.mulf %34, %37 : vector<64x256xf32>
    %c0_21 = arith.constant 0 : index
    %c0_22 = arith.constant 0 : index
    %c0_23 = arith.constant 0 : index
    %39 = vector.load %arg6[%c0_21, %c0_22, %c0_23] : memref<10x32x64xf32, #tpu.memory_space<vmem>>, vector<1x32x64xf32>
    %40 = vector.shape_cast %39 : vector<1x32x64xf32> to vector<32x64xf32>
    %cst_24 = arith.constant dense<0.000000e+00> : vector<32x256xf32>
    %41 = tpu.matmul %40, %38, %cst_24 {dimension_numbers = #tpu.dot_dimension_numbers<[1], [0], [0], [1], [0, 0, 1, 1], [], []>} : vector<32x64xf32>, vector<64x256xf32>, vector<32x256xf32> -> vector<32x256xf32>
    %42 = arith.addf %33, %41 : vector<32x256xf32>
    %c16_i32 = arith.constant 16 : i32
    %43 = tpu.dynamic_rotate %30 by %c16_i32 dim 1 : vector<64x256xf32>, i32 -> vector<64x256xf32>
    %c1 = arith.constant 1 : index
    %c0_25 = arith.constant 0 : index
    %c0_26 = arith.constant 0 : index
    %44 = vector.load %arg5[%c1, %c0_25, %c0_26] : memref<9x1x256xf32, #tpu.memory_space<vmem>>, vector<1x1x256xf32>
    %45 = vector.shape_cast %44 : vector<1x1x256xf32> to vector<1x256xf32>
    %46 = vector.broadcast %45 : vector<1x256xf32> to vector<64x256xf32>
    %47 = arith.mulf %43, %46 : vector<64x256xf32>
    %c1_27 = arith.constant 1 : index
    %c0_28 = arith.constant 0 : index
    %c0_29 = arith.constant 0 : index
    %48 = vector.load %arg6[%c1_27, %c0_28, %c0_29] : memref<10x32x64xf32, #tpu.memory_space<vmem>>, vector<1x32x64xf32>
    %49 = vector.shape_cast %48 : vector<1x32x64xf32> to vector<32x64xf32>
    %cst_30 = arith.constant dense<0.000000e+00> : vector<32x256xf32>
    %50 = tpu.matmul %49, %47, %cst_30 {dimension_numbers = #tpu.dot_dimension_numbers<[1], [0], [0], [1], [0, 0, 1, 1], [], []>} : vector<32x64xf32>, vector<64x256xf32>, vector<32x256xf32> -> vector<32x256xf32>
    %51 = arith.addf %42, %50 : vector<32x256xf32>
    %c15_i32 = arith.constant 15 : i32
    %52 = tpu.dynamic_rotate %30 by %c15_i32 dim 1 : vector<64x256xf32>, i32 -> vector<64x256xf32>
    %c2 = arith.constant 2 : index
    %c0_31 = arith.constant 0 : index
    %c0_32 = arith.constant 0 : index
    %53 = vector.load %arg5[%c2, %c0_31, %c0_32] : memref<9x1x256xf32, #tpu.memory_space<vmem>>, vector<1x1x256xf32>
    %54 = vector.shape_cast %53 : vector<1x1x256xf32> to vector<1x256xf32>
    %55 = vector.broadcast %54 : vector<1x256xf32> to vector<64x256xf32>
    %56 = arith.mulf %52, %55 : vector<64x256xf32>
    %c2_33 = arith.constant 2 : index
    %c0_34 = arith.constant 0 : index
    %c0_35 = arith.constant 0 : index
    %57 = vector.load %arg6[%c2_33, %c0_34, %c0_35] : memref<10x32x64xf32, #tpu.memory_space<vmem>>, vector<1x32x64xf32>
    %58 = vector.shape_cast %57 : vector<1x32x64xf32> to vector<32x64xf32>
    %cst_36 = arith.constant dense<0.000000e+00> : vector<32x256xf32>
    %59 = tpu.matmul %58, %56, %cst_36 {dimension_numbers = #tpu.dot_dimension_numbers<[1], [0], [0], [1], [0, 0, 1, 1], [], []>} : vector<32x64xf32>, vector<64x256xf32>, vector<32x256xf32> -> vector<32x256xf32>
    %60 = arith.addf %51, %59 : vector<32x256xf32>
    %c1_i32 = arith.constant 1 : i32
    %61 = tpu.dynamic_rotate %30 by %c1_i32 dim 1 : vector<64x256xf32>, i32 -> vector<64x256xf32>
    %c3 = arith.constant 3 : index
    %c0_37 = arith.constant 0 : index
    %c0_38 = arith.constant 0 : index
    %62 = vector.load %arg5[%c3, %c0_37, %c0_38] : memref<9x1x256xf32, #tpu.memory_space<vmem>>, vector<1x1x256xf32>
    %63 = vector.shape_cast %62 : vector<1x1x256xf32> to vector<1x256xf32>
    %64 = vector.broadcast %63 : vector<1x256xf32> to vector<64x256xf32>
    %65 = arith.mulf %61, %64 : vector<64x256xf32>
    %c3_39 = arith.constant 3 : index
    %c0_40 = arith.constant 0 : index
    %c0_41 = arith.constant 0 : index
    %66 = vector.load %arg6[%c3_39, %c0_40, %c0_41] : memref<10x32x64xf32, #tpu.memory_space<vmem>>, vector<1x32x64xf32>
    %67 = vector.shape_cast %66 : vector<1x32x64xf32> to vector<32x64xf32>
    %cst_42 = arith.constant dense<0.000000e+00> : vector<32x256xf32>
    %68 = tpu.matmul %67, %65, %cst_42 {dimension_numbers = #tpu.dot_dimension_numbers<[1], [0], [0], [1], [0, 0, 1, 1], [], []>} : vector<32x64xf32>, vector<64x256xf32>, vector<32x256xf32> -> vector<32x256xf32>
    %69 = arith.addf %60, %68 : vector<32x256xf32>
    %c4 = arith.constant 4 : index
    %c0_43 = arith.constant 0 : index
    %c0_44 = arith.constant 0 : index
    %70 = vector.load %arg6[%c4, %c0_43, %c0_44] : memref<10x32x64xf32, #tpu.memory_space<vmem>>, vector<1x32x64xf32>
    %71 = vector.shape_cast %70 : vector<1x32x64xf32> to vector<32x64xf32>
    %cst_45 = arith.constant dense<0.000000e+00> : vector<32x256xf32>
    %72 = tpu.matmul %71, %30, %cst_45 {dimension_numbers = #tpu.dot_dimension_numbers<[1], [0], [0], [1], [0, 0, 1, 1], [], []>} : vector<32x64xf32>, vector<64x256xf32>, vector<32x256xf32> -> vector<32x256xf32>
    %73 = arith.addf %69, %72 : vector<32x256xf32>
    %c255_i32 = arith.constant 255 : i32
    %74 = tpu.dynamic_rotate %30 by %c255_i32 dim 1 : vector<64x256xf32>, i32 -> vector<64x256xf32>
    %c5 = arith.constant 5 : index
    %c0_46 = arith.constant 0 : index
    %c0_47 = arith.constant 0 : index
    %75 = vector.load %arg5[%c5, %c0_46, %c0_47] : memref<9x1x256xf32, #tpu.memory_space<vmem>>, vector<1x1x256xf32>
    %76 = vector.shape_cast %75 : vector<1x1x256xf32> to vector<1x256xf32>
    %77 = vector.broadcast %76 : vector<1x256xf32> to vector<64x256xf32>
    %78 = arith.mulf %74, %77 : vector<64x256xf32>
    %c5_48 = arith.constant 5 : index
    %c0_49 = arith.constant 0 : index
    %c0_50 = arith.constant 0 : index
    %79 = vector.load %arg6[%c5_48, %c0_49, %c0_50] : memref<10x32x64xf32, #tpu.memory_space<vmem>>, vector<1x32x64xf32>
    %80 = vector.shape_cast %79 : vector<1x32x64xf32> to vector<32x64xf32>
    %cst_51 = arith.constant dense<0.000000e+00> : vector<32x256xf32>
    %81 = tpu.matmul %80, %78, %cst_51 {dimension_numbers = #tpu.dot_dimension_numbers<[1], [0], [0], [1], [0, 0, 1, 1], [], []>} : vector<32x64xf32>, vector<64x256xf32>, vector<32x256xf32> -> vector<32x256xf32>
    %82 = arith.addf %73, %81 : vector<32x256xf32>
    %c241_i32 = arith.constant 241 : i32
    %83 = tpu.dynamic_rotate %30 by %c241_i32 dim 1 : vector<64x256xf32>, i32 -> vector<64x256xf32>
    %c6 = arith.constant 6 : index
    %c0_52 = arith.constant 0 : index
    %c0_53 = arith.constant 0 : index
    %84 = vector.load %arg5[%c6, %c0_52, %c0_53] : memref<9x1x256xf32, #tpu.memory_space<vmem>>, vector<1x1x256xf32>
    %85 = vector.shape_cast %84 : vector<1x1x256xf32> to vector<1x256xf32>
    %86 = vector.broadcast %85 : vector<1x256xf32> to vector<64x256xf32>
    %87 = arith.mulf %83, %86 : vector<64x256xf32>
    %c6_54 = arith.constant 6 : index
    %c0_55 = arith.constant 0 : index
    %c0_56 = arith.constant 0 : index
    %88 = vector.load %arg6[%c6_54, %c0_55, %c0_56] : memref<10x32x64xf32, #tpu.memory_space<vmem>>, vector<1x32x64xf32>
    %89 = vector.shape_cast %88 : vector<1x32x64xf32> to vector<32x64xf32>
    %cst_57 = arith.constant dense<0.000000e+00> : vector<32x256xf32>
    %90 = tpu.matmul %89, %87, %cst_57 {dimension_numbers = #tpu.dot_dimension_numbers<[1], [0], [0], [1], [0, 0, 1, 1], [], []>} : vector<32x64xf32>, vector<64x256xf32>, vector<32x256xf32> -> vector<32x256xf32>
    %91 = arith.addf %82, %90 : vector<32x256xf32>
    %c240_i32 = arith.constant 240 : i32
    %92 = tpu.dynamic_rotate %30 by %c240_i32 dim 1 : vector<64x256xf32>, i32 -> vector<64x256xf32>
    %c7 = arith.constant 7 : index
    %c0_58 = arith.constant 0 : index
    %c0_59 = arith.constant 0 : index
    %93 = vector.load %arg5[%c7, %c0_58, %c0_59] : memref<9x1x256xf32, #tpu.memory_space<vmem>>, vector<1x1x256xf32>
    %94 = vector.shape_cast %93 : vector<1x1x256xf32> to vector<1x256xf32>
    %95 = vector.broadcast %94 : vector<1x256xf32> to vector<64x256xf32>
    %96 = arith.mulf %92, %95 : vector<64x256xf32>
    %c7_60 = arith.constant 7 : index
    %c0_61 = arith.constant 0 : index
    %c0_62 = arith.constant 0 : index
    %97 = vector.load %arg6[%c7_60, %c0_61, %c0_62] : memref<10x32x64xf32, #tpu.memory_space<vmem>>, vector<1x32x64xf32>
    %98 = vector.shape_cast %97 : vector<1x32x64xf32> to vector<32x64xf32>
    %cst_63 = arith.constant dense<0.000000e+00> : vector<32x256xf32>
    %99 = tpu.matmul %98, %96, %cst_63 {dimension_numbers = #tpu.dot_dimension_numbers<[1], [0], [0], [1], [0, 0, 1, 1], [], []>} : vector<32x64xf32>, vector<64x256xf32>, vector<32x256xf32> -> vector<32x256xf32>
    %100 = arith.addf %91, %99 : vector<32x256xf32>
    %c239_i32 = arith.constant 239 : i32
    %101 = tpu.dynamic_rotate %30 by %c239_i32 dim 1 : vector<64x256xf32>, i32 -> vector<64x256xf32>
    %c8 = arith.constant 8 : index
    %c0_64 = arith.constant 0 : index
    %c0_65 = arith.constant 0 : index
    %102 = vector.load %arg5[%c8, %c0_64, %c0_65] : memref<9x1x256xf32, #tpu.memory_space<vmem>>, vector<1x1x256xf32>
    %103 = vector.shape_cast %102 : vector<1x1x256xf32> to vector<1x256xf32>
    %104 = vector.broadcast %103 : vector<1x256xf32> to vector<64x256xf32>
    %105 = arith.mulf %101, %104 : vector<64x256xf32>
    %c8_66 = arith.constant 8 : index
    %c0_67 = arith.constant 0 : index
    %c0_68 = arith.constant 0 : index
    %106 = vector.load %arg6[%c8_66, %c0_67, %c0_68] : memref<10x32x64xf32, #tpu.memory_space<vmem>>, vector<1x32x64xf32>
    %107 = vector.shape_cast %106 : vector<1x32x64xf32> to vector<32x64xf32>
    %cst_69 = arith.constant dense<0.000000e+00> : vector<32x256xf32>
    %108 = tpu.matmul %107, %105, %cst_69 {dimension_numbers = #tpu.dot_dimension_numbers<[1], [0], [0], [1], [0, 0, 1, 1], [], []>} : vector<32x64xf32>, vector<64x256xf32>, vector<32x256xf32> -> vector<32x256xf32>
    %109 = arith.addf %100, %108 : vector<32x256xf32>
    %c0_70 = arith.constant 0 : index
    %c0_71 = arith.constant 0 : index
    %110 = vector.load %arg7[%c0_70, %c0_71] : memref<32x1xf32, #tpu.memory_space<vmem>>, vector<32x1xf32>
    %111 = vector.broadcast %110 : vector<32x1xf32> to vector<32x256xf32>
    %112 = arith.addf %109, %111 : vector<32x256xf32>
    %c0_72 = arith.constant 0 : index
    %c0_73 = arith.constant 0 : index
    %c0_74 = arith.constant 0 : index
    %113 = vector.load %arg8[%c0_72, %c0_73, %c0_74] : memref<2x32x256xf32, #tpu.memory_space<vmem>>, vector<1x32x256xf32>
    %114 = vector.shape_cast %113 : vector<1x32x256xf32> to vector<32x256xf32>
    %115 = vector.shape_cast %112 : vector<32x256xf32> to vector<1x32x256xf32>
    tpu.vector_store %arg8[%c0_72, %c0_73, %c0_74], %115 {strides = array<i32>} : memref<2x32x256xf32, #tpu.memory_space<vmem>>, vector<1x32x256xf32>,
    %c1_75 = arith.constant 1 : index
    %c0_76 = arith.constant 0 : index
    %c0_77 = arith.constant 0 : index
    %116 = vector.load %arg1[%c1_75, %c0_76, %c0_77] : memref<2x64x256xf32, #tpu.memory_space<vmem>>, vector<1x64x256xf32>
    %117 = vector.shape_cast %116 : vector<1x64x256xf32> to vector<64x256xf32>
    %cst_78 = arith.constant dense<0.000000e+00> : vector<64xf32>
    %118 = vector.multi_reduction <add>, %117, %cst_78 [1] : vector<64x256xf32> to vector<64xf32>
    %119 = vector.shape_cast %118 : vector<64xf32> to vector<64x1xf32>
    %120 = arith.mulf %117, %117 : vector<64x256xf32>
    %cst_79 = arith.constant dense<0.000000e+00> : vector<64xf32>
    %121 = vector.multi_reduction <add>, %120, %cst_79 [1] : vector<64x256xf32> to vector<64xf32>
    %122 = vector.shape_cast %121 : vector<64xf32> to vector<64x1xf32>
    %c0_80 = arith.constant 0 : index
    %c0_81 = arith.constant 0 : index
    %123 = vector.load %arg4[%c0_80, %c0_81] : memref<64x64xf32, #tpu.memory_space<vmem>>, vector<64x64xf32>
    %cst_82 = arith.constant dense<0.000000e+00> : vector<64x1xf32>
    %124 = tpu.matmul %123, %119, %cst_82 {dimension_numbers = #tpu.dot_dimension_numbers<[1], [0], [0], [1], [0, 0, 1, 1], [], []>} : vector<64x64xf32>, vector<64x1xf32>, vector<64x1xf32> -> vector<64x1xf32>
    %c0_83 = arith.constant 0 : index
    %c0_84 = arith.constant 0 : index
    %125 = vector.load %arg4[%c0_83, %c0_84] : memref<64x64xf32, #tpu.memory_space<vmem>>, vector<64x64xf32>
    %cst_85 = arith.constant dense<0.000000e+00> : vector<64x1xf32>
    %126 = tpu.matmul %125, %122, %cst_85 {dimension_numbers = #tpu.dot_dimension_numbers<[1], [0], [0], [1], [0, 0, 1, 1], [], []>} : vector<64x64xf32>, vector<64x1xf32>, vector<64x1xf32> -> vector<64x1xf32>
    %127 = arith.mulf %124, %124 : vector<64x1xf32>
    %128 = arith.subf %126, %127 : vector<64x1xf32>
    %cst_86 = arith.constant 9.99999974E-6 : f32
    %129 = vector.broadcast %cst_86 : f32 to vector<64x1xf32>
    %130 = arith.addf %128, %129 : vector<64x1xf32>
    %131 = math.rsqrt %130 : vector<64x1xf32>
    %c0_87 = arith.constant 0 : index
    %c0_88 = arith.constant 0 : index
    %132 = vector.load %arg2[%c0_87, %c0_88] : memref<64x1xf32, #tpu.memory_space<vmem>>, vector<64x1xf32>
    %133 = arith.mulf %131, %132 : vector<64x1xf32>
    %c0_89 = arith.constant 0 : index
    %c0_90 = arith.constant 0 : index
    %134 = vector.load %arg3[%c0_89, %c0_90] : memref<64x1xf32, #tpu.memory_space<vmem>>, vector<64x1xf32>
    %135 = arith.mulf %124, %133 : vector<64x1xf32>
    %136 = arith.subf %134, %135 : vector<64x1xf32>
    %137 = vector.broadcast %133 : vector<64x1xf32> to vector<64x256xf32>
    %138 = arith.mulf %117, %137 : vector<64x256xf32>
    %139 = vector.broadcast %136 : vector<64x1xf32> to vector<64x256xf32>
    %140 = arith.addf %138, %139 : vector<64x256xf32>
    %141 = arith.negf %140 : vector<64x256xf32>
    %142 = math.exp %141 : vector<64x256xf32>
    %cst_91 = arith.constant 1.000000e+00 : f32
    %143 = vector.broadcast %cst_91 : f32 to vector<64x256xf32>
    %144 = arith.addf %143, %142 : vector<64x256xf32>
    %145 = arith.divf %143, %144 : vector<64x256xf32>
    %146 = arith.mulf %140, %145 : vector<64x256xf32>
    %c9_92 = arith.constant 9 : index
    %c0_93 = arith.constant 0 : index
    %c0_94 = arith.constant 0 : index
    %147 = vector.load %arg6[%c9_92, %c0_93, %c0_94] : memref<10x32x64xf32, #tpu.memory_space<vmem>>, vector<1x32x64xf32>
    %148 = vector.shape_cast %147 : vector<1x32x64xf32> to vector<32x64xf32>
    %cst_95 = arith.constant dense<0.000000e+00> : vector<32x256xf32>
    %149 = tpu.matmul %148, %117, %cst_95 {dimension_numbers = #tpu.dot_dimension_numbers<[1], [0], [0], [1], [0, 0, 1, 1], [], []>} : vector<32x64xf32>, vector<64x256xf32>, vector<32x256xf32> -> vector<32x256xf32>
    %c17_i32_96 = arith.constant 17 : i32
    %150 = tpu.dynamic_rotate %146 by %c17_i32_96 dim 1 : vector<64x256xf32>, i32 -> vector<64x256xf32>
    %c0_97 = arith.constant 0 : index
    %c0_98 = arith.constant 0 : index
    %c0_99 = arith.constant 0 : index
    %151 = vector.load %arg5[%c0_97, %c0_98, %c0_99] : memref<9x1x256xf32, #tpu.memory_space<vmem>>, vector<1x1x256xf32>
    %152 = vector.shape_cast %151 : vector<1x1x256xf32> to vector<1x256xf32>
    %153 = vector.broadcast %152 : vector<1x256xf32> to vector<64x256xf32>
    %154 = arith.mulf %150, %153 : vector<64x256xf32>
    %c0_100 = arith.constant 0 : index
    %c0_101 = arith.constant 0 : index
    %c0_102 = arith.constant 0 : index
    %155 = vector.load %arg6[%c0_100, %c0_101, %c0_102] : memref<10x32x64xf32, #tpu.memory_space<vmem>>, vector<1x32x64xf32>
    %156 = vector.shape_cast %155 : vector<1x32x64xf32> to vector<32x64xf32>
    %cst_103 = arith.constant dense<0.000000e+00> : vector<32x256xf32>
    %157 = tpu.matmul %156, %154, %cst_103 {dimension_numbers = #tpu.dot_dimension_numbers<[1], [0], [0], [1], [0, 0, 1, 1], [], []>} : vector<32x64xf32>, vector<64x256xf32>, vector<32x256xf32> -> vector<32x256xf32>
    %158 = arith.addf %149, %157 : vector<32x256xf32>
    %c16_i32_104 = arith.constant 16 : i32
    %159 = tpu.dynamic_rotate %146 by %c16_i32_104 dim 1 : vector<64x256xf32>, i32 -> vector<64x256xf32>
    %c1_105 = arith.constant 1 : index
    %c0_106 = arith.constant 0 : index
    %c0_107 = arith.constant 0 : index
    %160 = vector.load %arg5[%c1_105, %c0_106, %c0_107] : memref<9x1x256xf32, #tpu.memory_space<vmem>>, vector<1x1x256xf32>
    %161 = vector.shape_cast %160 : vector<1x1x256xf32> to vector<1x256xf32>
    %162 = vector.broadcast %161 : vector<1x256xf32> to vector<64x256xf32>
    %163 = arith.mulf %159, %162 : vector<64x256xf32>
    %c1_108 = arith.constant 1 : index
    %c0_109 = arith.constant 0 : index
    %c0_110 = arith.constant 0 : index
    %164 = vector.load %arg6[%c1_108, %c0_109, %c0_110] : memref<10x32x64xf32, #tpu.memory_space<vmem>>, vector<1x32x64xf32>
    %165 = vector.shape_cast %164 : vector<1x32x64xf32> to vector<32x64xf32>
    %cst_111 = arith.constant dense<0.000000e+00> : vector<32x256xf32>
    %166 = tpu.matmul %165, %163, %cst_111 {dimension_numbers = #tpu.dot_dimension_numbers<[1], [0], [0], [1], [0, 0, 1, 1], [], []>} : vector<32x64xf32>, vector<64x256xf32>, vector<32x256xf32> -> vector<32x256xf32>
    %167 = arith.addf %158, %166 : vector<32x256xf32>
    %c15_i32_112 = arith.constant 15 : i32
    %168 = tpu.dynamic_rotate %146 by %c15_i32_112 dim 1 : vector<64x256xf32>, i32 -> vector<64x256xf32>
    %c2_113 = arith.constant 2 : index
    %c0_114 = arith.constant 0 : index
    %c0_115 = arith.constant 0 : index
    %169 = vector.load %arg5[%c2_113, %c0_114, %c0_115] : memref<9x1x256xf32, #tpu.memory_space<vmem>>, vector<1x1x256xf32>
    %170 = vector.shape_cast %169 : vector<1x1x256xf32> to vector<1x256xf32>
    %171 = vector.broadcast %170 : vector<1x256xf32> to vector<64x256xf32>
    %172 = arith.mulf %168, %171 : vector<64x256xf32>
    %c2_116 = arith.constant 2 : index
    %c0_117 = arith.constant 0 : index
    %c0_118 = arith.constant 0 : index
    %173 = vector.load %arg6[%c2_116, %c0_117, %c0_118] : memref<10x32x64xf32, #tpu.memory_space<vmem>>, vector<1x32x64xf32>
    %174 = vector.shape_cast %173 : vector<1x32x64xf32> to vector<32x64xf32>
    %cst_119 = arith.constant dense<0.000000e+00> : vector<32x256xf32>
    %175 = tpu.matmul %174, %172, %cst_119 {dimension_numbers = #tpu.dot_dimension_numbers<[1], [0], [0], [1], [0, 0, 1, 1], [], []>} : vector<32x64xf32>, vector<64x256xf32>, vector<32x256xf32> -> vector<32x256xf32>
    %176 = arith.addf %167, %175 : vector<32x256xf32>
    %c1_i32_120 = arith.constant 1 : i32
    %177 = tpu.dynamic_rotate %146 by %c1_i32_120 dim 1 : vector<64x256xf32>, i32 -> vector<64x256xf32>
    %c3_121 = arith.constant 3 : index
    %c0_122 = arith.constant 0 : index
    %c0_123 = arith.constant 0 : index
    %178 = vector.load %arg5[%c3_121, %c0_122, %c0_123] : memref<9x1x256xf32, #tpu.memory_space<vmem>>, vector<1x1x256xf32>
    %179 = vector.shape_cast %178 : vector<1x1x256xf32> to vector<1x256xf32>
    %180 = vector.broadcast %179 : vector<1x256xf32> to vector<64x256xf32>
    %181 = arith.mulf %177, %180 : vector<64x256xf32>
    %c3_124 = arith.constant 3 : index
    %c0_125 = arith.constant 0 : index
    %c0_126 = arith.constant 0 : index
    %182 = vector.load %arg6[%c3_124, %c0_125, %c0_126] : memref<10x32x64xf32, #tpu.memory_space<vmem>>, vector<1x32x64xf32>
    %183 = vector.shape_cast %182 : vector<1x32x64xf32> to vector<32x64xf32>
    %cst_127 = arith.constant dense<0.000000e+00> : vector<32x256xf32>
    %184 = tpu.matmul %183, %181, %cst_127 {dimension_numbers = #tpu.dot_dimension_numbers<[1], [0], [0], [1], [0, 0, 1, 1], [], []>} : vector<32x64xf32>, vector<64x256xf32>, vector<32x256xf32> -> vector<32x256xf32>
    %185 = arith.addf %176, %184 : vector<32x256xf32>
    %c4_128 = arith.constant 4 : index
    %c0_129 = arith.constant 0 : index
    %c0_130 = arith.constant 0 : index
    %186 = vector.load %arg6[%c4_128, %c0_129, %c0_130] : memref<10x32x64xf32, #tpu.memory_space<vmem>>, vector<1x32x64xf32>
    %187 = vector.shape_cast %186 : vector<1x32x64xf32> to vector<32x64xf32>
    %cst_131 = arith.constant dense<0.000000e+00> : vector<32x256xf32>
    %188 = tpu.matmul %187, %146, %cst_131 {dimension_numbers = #tpu.dot_dimension_numbers<[1], [0], [0], [1], [0, 0, 1, 1], [], []>} : vector<32x64xf32>, vector<64x256xf32>, vector<32x256xf32> -> vector<32x256xf32>
    %189 = arith.addf %185, %188 : vector<32x256xf32>
    %c255_i32_132 = arith.constant 255 : i32
    %190 = tpu.dynamic_rotate %146 by %c255_i32_132 dim 1 : vector<64x256xf32>, i32 -> vector<64x256xf32>
    %c5_133 = arith.constant 5 : index
    %c0_134 = arith.constant 0 : index
    %c0_135 = arith.constant 0 : index
    %191 = vector.load %arg5[%c5_133, %c0_134, %c0_135] : memref<9x1x256xf32, #tpu.memory_space<vmem>>, vector<1x1x256xf32>
    %192 = vector.shape_cast %191 : vector<1x1x256xf32> to vector<1x256xf32>
    %193 = vector.broadcast %192 : vector<1x256xf32> to vector<64x256xf32>
    %194 = arith.mulf %190, %193 : vector<64x256xf32>
    %c5_136 = arith.constant 5 : index
    %c0_137 = arith.constant 0 : index
    %c0_138 = arith.constant 0 : index
    %195 = vector.load %arg6[%c5_136, %c0_137, %c0_138] : memref<10x32x64xf32, #tpu.memory_space<vmem>>, vector<1x32x64xf32>
    %196 = vector.shape_cast %195 : vector<1x32x64xf32> to vector<32x64xf32>
    %cst_139 = arith.constant dense<0.000000e+00> : vector<32x256xf32>
    %197 = tpu.matmul %196, %194, %cst_139 {dimension_numbers = #tpu.dot_dimension_numbers<[1], [0], [0], [1], [0, 0, 1, 1], [], []>} : vector<32x64xf32>, vector<64x256xf32>, vector<32x256xf32> -> vector<32x256xf32>
    %198 = arith.addf %189, %197 : vector<32x256xf32>
    %c241_i32_140 = arith.constant 241 : i32
    %199 = tpu.dynamic_rotate %146 by %c241_i32_140 dim 1 : vector<64x256xf32>, i32 -> vector<64x256xf32>
    %c6_141 = arith.constant 6 : index
    %c0_142 = arith.constant 0 : index
    %c0_143 = arith.constant 0 : index
    %200 = vector.load %arg5[%c6_141, %c0_142, %c0_143] : memref<9x1x256xf32, #tpu.memory_space<vmem>>, vector<1x1x256xf32>
    %201 = vector.shape_cast %200 : vector<1x1x256xf32> to vector<1x256xf32>
    %202 = vector.broadcast %201 : vector<1x256xf32> to vector<64x256xf32>
    %203 = arith.mulf %199, %202 : vector<64x256xf32>
    %c6_144 = arith.constant 6 : index
    %c0_145 = arith.constant 0 : index
    %c0_146 = arith.constant 0 : index
    %204 = vector.load %arg6[%c6_144, %c0_145, %c0_146] : memref<10x32x64xf32, #tpu.memory_space<vmem>>, vector<1x32x64xf32>
    %205 = vector.shape_cast %204 : vector<1x32x64xf32> to vector<32x64xf32>
    %cst_147 = arith.constant dense<0.000000e+00> : vector<32x256xf32>
    %206 = tpu.matmul %205, %203, %cst_147 {dimension_numbers = #tpu.dot_dimension_numbers<[1], [0], [0], [1], [0, 0, 1, 1], [], []>} : vector<32x64xf32>, vector<64x256xf32>, vector<32x256xf32> -> vector<32x256xf32>
    %207 = arith.addf %198, %206 : vector<32x256xf32>
    %c240_i32_148 = arith.constant 240 : i32
    %208 = tpu.dynamic_rotate %146 by %c240_i32_148 dim 1 : vector<64x256xf32>, i32 -> vector<64x256xf32>
    %c7_149 = arith.constant 7 : index
    %c0_150 = arith.constant 0 : index
    %c0_151 = arith.constant 0 : index
    %209 = vector.load %arg5[%c7_149, %c0_150, %c0_151] : memref<9x1x256xf32, #tpu.memory_space<vmem>>, vector<1x1x256xf32>
    %210 = vector.shape_cast %209 : vector<1x1x256xf32> to vector<1x256xf32>
    %211 = vector.broadcast %210 : vector<1x256xf32> to vector<64x256xf32>
    %212 = arith.mulf %208, %211 : vector<64x256xf32>
    %c7_152 = arith.constant 7 : index
    %c0_153 = arith.constant 0 : index
    %c0_154 = arith.constant 0 : index
    %213 = vector.load %arg6[%c7_152, %c0_153, %c0_154] : memref<10x32x64xf32, #tpu.memory_space<vmem>>, vector<1x32x64xf32>
    %214 = vector.shape_cast %213 : vector<1x32x64xf32> to vector<32x64xf32>
    %cst_155 = arith.constant dense<0.000000e+00> : vector<32x256xf32>
    %215 = tpu.matmul %214, %212, %cst_155 {dimension_numbers = #tpu.dot_dimension_numbers<[1], [0], [0], [1], [0, 0, 1, 1], [], []>} : vector<32x64xf32>, vector<64x256xf32>, vector<32x256xf32> -> vector<32x256xf32>
    %216 = arith.addf %207, %215 : vector<32x256xf32>
    %c239_i32_156 = arith.constant 239 : i32
    %217 = tpu.dynamic_rotate %146 by %c239_i32_156 dim 1 : vector<64x256xf32>, i32 -> vector<64x256xf32>
    %c8_157 = arith.constant 8 : index
    %c0_158 = arith.constant 0 : index
    %c0_159 = arith.constant 0 : index
    %218 = vector.load %arg5[%c8_157, %c0_158, %c0_159] : memref<9x1x256xf32, #tpu.memory_space<vmem>>, vector<1x1x256xf32>
    %219 = vector.shape_cast %218 : vector<1x1x256xf32> to vector<1x256xf32>
    %220 = vector.broadcast %219 : vector<1x256xf32> to vector<64x256xf32>
    %221 = arith.mulf %217, %220 : vector<64x256xf32>
    %c8_160 = arith.constant 8 : index
    %c0_161 = arith.constant 0 : index
    %c0_162 = arith.constant 0 : index
    %222 = vector.load %arg6[%c8_160, %c0_161, %c0_162] : memref<10x32x64xf32, #tpu.memory_space<vmem>>, vector<1x32x64xf32>
    %223 = vector.shape_cast %222 : vector<1x32x64xf32> to vector<32x64xf32>
    %cst_163 = arith.constant dense<0.000000e+00> : vector<32x256xf32>
    %224 = tpu.matmul %223, %221, %cst_163 {dimension_numbers = #tpu.dot_dimension_numbers<[1], [0], [0], [1], [0, 0, 1, 1], [], []>} : vector<32x64xf32>, vector<64x256xf32>, vector<32x256xf32> -> vector<32x256xf32>
    %225 = arith.addf %216, %224 : vector<32x256xf32>
    %c0_164 = arith.constant 0 : index
    %c0_165 = arith.constant 0 : index
    %226 = vector.load %arg7[%c0_164, %c0_165] : memref<32x1xf32, #tpu.memory_space<vmem>>, vector<32x1xf32>
    %227 = vector.broadcast %226 : vector<32x1xf32> to vector<32x256xf32>
    %228 = arith.addf %225, %227 : vector<32x256xf32>
    %c1_166 = arith.constant 1 : index
    %c0_167 = arith.constant 0 : index
    %c0_168 = arith.constant 0 : index
    %229 = vector.load %arg8[%c1_166, %c0_167, %c0_168] : memref<2x32x256xf32, #tpu.memory_space<vmem>>, vector<1x32x256xf32>
    %230 = vector.shape_cast %229 : vector<1x32x256xf32> to vector<32x256xf32>
    %231 = vector.shape_cast %228 : vector<32x256xf32> to vector<1x32x256xf32>
    tpu.vector_store %arg8[%c1_166, %c0_167, %c0_168], %231 {strides = array<i32>} : memref<2x32x256xf32, #tpu.memory_space<vmem>>, vector<1x32x256xf32>,
    return
  }
  func.func @transform_0(%arg0: i32) -> (i32, i32, i32) {
    %c0_i32 = arith.constant 0 : i32
    %c0_i32_0 = arith.constant 0 : i32
    %c0_i32_1 = arith.constant 0 : i32
    return %arg0, %c0_i32, %c0_i32_0 : i32, i32, i32
  }
  func.func @transform_1(%arg0: i32) -> (i32, i32) {
    %c0_i32 = arith.constant 0 : i32
    %c0_i32_0 = arith.constant 0 : i32
    %c0_i32_1 = arith.constant 0 : i32
    return %c0_i32, %c0_i32_0 : i32, i32
  }
  func.func @transform_2(%arg0: i32) -> (i32, i32) {
    %c0_i32 = arith.constant 0 : i32
    %c0_i32_0 = arith.constant 0 : i32
    %c0_i32_1 = arith.constant 0 : i32
    return %c0_i32, %c0_i32_0 : i32, i32
  }
  func.func @transform_3(%arg0: i32) -> (i32, i32) {
    %c0_i32 = arith.constant 0 : i32
    %c0_i32_0 = arith.constant 0 : i32
    %c0_i32_1 = arith.constant 0 : i32
    return %c0_i32, %c0_i32_0 : i32, i32
  }
  func.func @transform_4(%arg0: i32) -> (i32, i32, i32) {
    %c0_i32 = arith.constant 0 : i32
    %c0_i32_0 = arith.constant 0 : i32
    %c0_i32_1 = arith.constant 0 : i32
    %c0_i32_2 = arith.constant 0 : i32
    return %c0_i32, %c0_i32_0, %c0_i32_1 : i32, i32, i32
  }
  func.func @transform_5(%arg0: i32) -> (i32, i32, i32) {
    %c0_i32 = arith.constant 0 : i32
    %c0_i32_0 = arith.constant 0 : i32
    %c0_i32_1 = arith.constant 0 : i32
    %c0_i32_2 = arith.constant 0 : i32
    return %c0_i32, %c0_i32_0, %c0_i32_1 : i32, i32, i32
  }
  func.func @transform_6(%arg0: i32) -> (i32, i32) {
    %c0_i32 = arith.constant 0 : i32
    %c0_i32_0 = arith.constant 0 : i32
    %c0_i32_1 = arith.constant 0 : i32
    return %c0_i32, %c0_i32_0 : i32, i32
  }
  func.func @transform_7(%arg0: i32) -> (i32, i32, i32) {
    %c0_i32 = arith.constant 0 : i32
    %c0_i32_0 = arith.constant 0 : i32
    %c0_i32_1 = arith.constant 0 : i32
    return %arg0, %c0_i32, %c0_i32_0 : i32, i32, i32
  }
}

</mosaic_0001>

<llo_original>
// kernel: tpu_custom_call.1
$region0: #{tpu_custom_call.1}
  #allocation0 [shape = 'u32[]', space=smem, size = 0x4, offset = 0x4, fixed_abs, tag = 'smem constant byte address 0x4 - core index']
  #allocation1 [shape = 'u32[144,128]{1,0:T(1,128)}', space=vmem, size = 0x12000, scoped, tag = 'internal scratch']
  %s0 = inlined_call_operand.hbm [shape: f32[2,64,256], index: 0, kind: input, shape index: {}]
  %s1 = inlined_call_operand.vmem [shape: f32[64,1], index: 1, kind: input, shape index: {}]
  %s2 = inlined_call_operand.vmem [shape: f32[64,1], index: 2, kind: input, shape index: {}]
  %s3 = inlined_call_operand.vmem [shape: f32[64,64], index: 3, kind: input, shape index: {}]
  %s4 = inlined_call_operand.vmem [shape: f32[9,1,256], index: 4, kind: input, shape index: {}]
  %s5 = inlined_call_operand.hbm [shape: f32[10,32,64], index: 5, kind: input, shape index: {}]
  %s6 = inlined_call_operand.vmem [shape: f32[32,1], index: 6, kind: input, shape index: {}]
  %s7 = inlined_call_operand.hbm [shape: f32[2,32,256], index: 7, kind: output, shape index: {}]
  %s8 = sld [smem:[#allocation0]]
  $region46: #{tpu_custom_call.1} parent=0
    _
  %s10 = ssub.s32 1, %s8
  %s11 = scalar_select 0, %s10, %s8
  $region1: #{tpu_custom_call.1} parent=0
    #allocation2 [shape = 'u8[131072]{0}', space=vmem, size = 0x20000, scoped, tag = 'input window, operand 0, single buffered']
    #allocation3 [shape = 's32[1]{0}', space=sflag, size = 0x4, scoped, tag = 'scoped memory for tpu_custom_call.1']
    #allocation4 [shape = 's32[1]{0}', space=sflag, size = 0x4, scoped, tag = 'scoped memory for tpu_custom_call.1']
    #allocation5 [shape = 'u8[163840]{0}', space=vmem, size = 0x28000, scoped, tag = 'input window, operand 5, single buffered']
    #allocation6 [shape = 's32[1]{0}', space=sflag, size = 0x4, scoped, tag = 'scoped memory for tpu_custom_call.1']
    #allocation7 [shape = 'u8[65536]{0}', space=vmem, size = 0x10000, scoped, tag = 'output window, operand 0, single buffered']
    %12 = vsyncpa [#allocation3], 0
    %13 = vsyncpa [#allocation6], 0
    %14 = vsyncpa [#allocation4], 0
    // Predicated region
    $region2: #{tpu_custom_call.1} parent=1 // pred_check
      _
    $region3: #{tpu_custom_call.1} parent=1 // pred_check_branch
      %16 = sbr.rel (0) target = $region5
    $region4: #{tpu_custom_call.1} parent=1 // pred_region
      %s18 = ssub.s32 4096, 4096
      %19 = vsyncadd [#allocation3], %s18
      %s20 = sshll.u32 [#allocation2], 4
      %s21 = int_to_ptr.vmem [resolvable:$true] %s20
      %26 = dma.hbm_to_vmem [thread:$0]  %s0, 4096, %s21, [#allocation3], 256, 256, 16
    $region5: #{tpu_custom_call.1} parent=1 // pred_fallthru
      _
    // Predicated region
    $region6: #{tpu_custom_call.1} parent=1 // pred_check
      _
    $region7: #{tpu_custom_call.1} parent=1 // pred_check_branch
      %28 = sbr.rel (0) target = $region9
    $region8: #{tpu_custom_call.1} parent=1 // pred_region
      _
    $region9: #{tpu_custom_call.1} parent=1 // pred_fallthru
      _
    // Predicated region
    $region10: #{tpu_custom_call.1} parent=1 // pred_check
      _
    $region11: #{tpu_custom_call.1} parent=1 // pred_check_branch
      %30 = sbr.rel (0) target = $region13
    $region12: #{tpu_custom_call.1} parent=1 // pred_region
      _
    $region13: #{tpu_custom_call.1} parent=1 // pred_fallthru
      _
    // Predicated region
    $region14: #{tpu_custom_call.1} parent=1 // pred_check
      _
    $region15: #{tpu_custom_call.1} parent=1 // pred_check_branch
      %32 = sbr.rel (0) target = $region17
    $region16: #{tpu_custom_call.1} parent=1 // pred_region
      _
    $region17: #{tpu_custom_call.1} parent=1 // pred_fallthru
      _
    // Predicated region
    $region18: #{tpu_custom_call.1} parent=1 // pred_check
      _
    $region19: #{tpu_custom_call.1} parent=1 // pred_check_branch
      %34 = sbr.rel (0) target = $region21
    $region20: #{tpu_custom_call.1} parent=1 // pred_region
      _
    $region21: #{tpu_custom_call.1} parent=1 // pred_fallthru
      _
    // Predicated region
    $region22: #{tpu_custom_call.1} parent=1 // pred_check
      _
    $region23: #{tpu_custom_call.1} parent=1 // pred_check_branch
      %36 = sbr.rel (0) target = $region25
    $region24: #{tpu_custom_call.1} parent=1 // pred_region
      %s38 = ssub.s32 5120, 5120
      %39 = vsyncadd [#allocation6], %s38
      %s40 = sshll.u32 [#allocation5], 4
      %s41 = int_to_ptr.vmem [resolvable:$true] %s40
      %46 = dma.hbm_to_vmem [thread:$0]  %s5, 5120, %s41, [#allocation6], 128, 128, 8
    $region25: #{tpu_custom_call.1} parent=1 // pred_fallthru
      _
    // Predicated region
    $region26: #{tpu_custom_call.1} parent=1 // pred_check
      _
    $region27: #{tpu_custom_call.1} parent=1 // pred_check_branch
      %48 = sbr.rel (0) target = $region29
    $region28: #{tpu_custom_call.1} parent=1 // pred_region
      _
    $region29: #{tpu_custom_call.1} parent=1 // pred_fallthru
      _
    // Predicated region
    $region30: #{tpu_custom_call.1} parent=1 // pred_check
      _
    $region31: #{tpu_custom_call.1} parent=1 // pred_check_branch
      %50 = sbr.rel (0) target = $region33
    $region32: #{tpu_custom_call.1} parent=1 // pred_region
      %51 = dma.done [#allocation3], 4096
    $region33: #{tpu_custom_call.1} parent=1 // pred_fallthru
      _
    // Predicated region
    $region34: #{tpu_custom_call.1} parent=1 // pred_check
      _
    $region35: #{tpu_custom_call.1} parent=1 // pred_check_branch
      %53 = sbr.rel (0) target = $region37
    $region36: #{tpu_custom_call.1} parent=1 // pred_region
      %54 = dma.done [#allocation6], 5120
    $region37: #{tpu_custom_call.1} parent=1 // pred_fallthru
      _
    %v55 = vld [vmem:[#allocation2] sm:$0xff]
    %v56 = vld [vmem:[#allocation2 + $0x8] sm:$0xff]
    %v57 = vld [vmem:[#allocation2 + $0x10] sm:$0xff]
    %v58 = vld [vmem:[#allocation2 + $0x18] sm:$0xff]
    %v59 = vld [vmem:[#allocation2 + $0x20] sm:$0xff]
    %v60 = vld [vmem:[#allocation2 + $0x28] sm:$0xff]
    %v61 = vld [vmem:[#allocation2 + $0x30] sm:$0xff]
    %v62 = vld [vmem:[#allocation2 + $0x38] sm:$0xff]
    %v63 = vld [vmem:[#allocation2 + $0x40] sm:$0xff]
    %v64 = vld [vmem:[#allocation2 + $0x48] sm:$0xff]
    %v65 = vld [vmem:[#allocation2 + $0x50] sm:$0xff]
    %v66 = vld [vmem:[#allocation2 + $0x58] sm:$0xff]
    %v67 = vld [vmem:[#allocation2 + $0x60] sm:$0xff]
    %v68 = vld [vmem:[#allocation2 + $0x68] sm:$0xff]
    %v69 = vld [vmem:[#allocation2 + $0x70] sm:$0xff]
    %v70 = vld [vmem:[#allocation2 + $0x78] sm:$0xff]
    %v71 = vadd.f32 %v55, %v56
    %72 = vadd.xlane.f32.xlu0 %v71
    %v73 = vpop.xlane.xlu0 %72
    %v74 = vadd.f32 %v57, %v58
    %75 = vadd.xlane.f32.xlu0 %v74
    %v76 = vpop.xlane.xlu0 %75
    %v77 = vadd.f32 %v59, %v60
    %78 = vadd.xlane.f32.xlu0 %v77
    %v79 = vpop.xlane.xlu0 %78
    %v80 = vadd.f32 %v61, %v62
    %81 = vadd.xlane.f32.xlu0 %v80
    %v82 = vpop.xlane.xlu0 %81
    %v83 = vadd.f32 %v63, %v64
    %84 = vadd.xlane.f32.xlu0 %v83
    %v85 = vpop.xlane.xlu0 %84
    %v86 = vadd.f32 %v65, %v66
    %87 = vadd.xlane.f32.xlu0 %v86
    %v88 = vpop.xlane.xlu0 %87
    %v89 = vadd.f32 %v67, %v68
    %90 = vadd.xlane.f32.xlu0 %v89
    %v91 = vpop.xlane.xlu0 %90
    %v92 = vadd.f32 %v69, %v70
    %93 = vadd.xlane.f32.xlu0 %v92
    %v94 = vpop.xlane.xlu0 %93
    %v95 = vmul.f32 %v55, %v55
    %v96 = vmul.f32 %v56, %v56
    %v97 = vmul.f32 %v57, %v57
    %v98 = vmul.f32 %v58, %v58
    %v99 = vmul.f32 %v59, %v59
    %v100 = vmul.f32 %v60, %v60
    %v101 = vmul.f32 %v61, %v61
    %v102 = vmul.f32 %v62, %v62
    %v103 = vmul.f32 %v63, %v63
    %v104 = vmul.f32 %v64, %v64
    %v105 = vmul.f32 %v65, %v65
    %v106 = vmul.f32 %v66, %v66
    %v107 = vmul.f32 %v67, %v67
    %v108 = vmul.f32 %v68, %v68
    %v109 = vmul.f32 %v69, %v69
    %v110 = vmul.f32 %v70, %v70
    %v111 = vadd.f32 %v95, %v96
    %112 = vadd.xlane.f32.xlu0 %v111
    %v113 = vpop.xlane.xlu0 %112
    %v114 = vadd.f32 %v97, %v98
    %115 = vadd.xlane.f32.xlu0 %v114
    %v116 = vpop.xlane.xlu0 %115
    %v117 = vadd.f32 %v99, %v100
    %118 = vadd.xlane.f32.xlu0 %v117
    %v119 = vpop.xlane.xlu0 %118
    %v120 = vadd.f32 %v101, %v102
    %121 = vadd.xlane.f32.xlu0 %v120
    %v122 = vpop.xlane.xlu0 %121
    %v123 = vadd.f32 %v103, %v104
    %124 = vadd.xlane.f32.xlu0 %v123
    %v125 = vpop.xlane.xlu0 %124
    %v126 = vadd.f32 %v105, %v106
    %127 = vadd.xlane.f32.xlu0 %v126
    %v128 = vpop.xlane.xlu0 %127
    %v129 = vadd.f32 %v107, %v108
    %130 = vadd.xlane.f32.xlu0 %v129
    %v131 = vpop.xlane.xlu0 %130
    %v132 = vadd.f32 %v109, %v110
    %133 = vadd.xlane.f32.xlu0 %v132
    %v134 = vpop.xlane.xlu0 %133
    %v135 = vld [vmem:[%s3] sm:$0xff]
    %v136 = vld [vmem:[%s3 + $0x8] sm:$0xff]
    %v137 = vld [vmem:[%s3 + $0x10] sm:$0xff]
    %v138 = vld [vmem:[%s3 + $0x18] sm:$0xff]
    %v139 = vld [vmem:[%s3 + $0x20] sm:$0xff]
    %v140 = vld [vmem:[%s3 + $0x28] sm:$0xff]
    %v141 = vld [vmem:[%s3 + $0x30] sm:$0xff]
    %v142 = vld [vmem:[%s3 + $0x38] sm:$0xff]
    %vm143 = vcmask 523264
    %v145 = vsel %vm143, %v135, 0
    %v148 = vsel %vm143, %v136, 0
    %v151 = vsel %vm143, %v137, 0
    %v154 = vsel %vm143, %v138, 0
    %v157 = vsel %vm143, %v139, 0
    %v160 = vsel %vm143, %v140, 0
    %v163 = vsel %vm143, %v141, 0
    %v166 = vsel %vm143, %v142, 0
    %168 = vmatprep.subr.mxu0 0.0
    %169 = vmatpush1.msra.mxu0 0.0
    %170 = vmatprep.subr.mxu0 0.0
    %171 = vmatpush1.msra.mxu0 0.0
    %172 = vmatprep.subr.mxu0 0.0
    %173 = vmatpush1.msra.mxu0 0.0
    %174 = vmatprep.subr.mxu0 0.0
    %175 = vmatpush1.msra.mxu0 0.0
    %176 = vmatprep.subr.mxu0 0.0
    %177 = vmatpush1.msra.mxu0 0.0
    %178 = vmatprep.subr.mxu0 0.0
    %179 = vmatpush1.msra.mxu0 0.0
    %180 = vmatprep.subr.mxu0 0.0
    %181 = vmatpush1.msra.mxu0 0.0
    %182 = vmatprep.subr.mxu0 0.0
    %183 = vmatpush1.msra.mxu0 0.0
    %184 = vmatprep.subr.mxu0 0.0
    %185 = vmatpush1.msra.mxu0 %v94
    %186 = vmatprep.subr.mxu0 0.0
    %187 = vmatpush1.msra.mxu0 %v91
    %188 = vmatprep.subr.mxu0 0.0
    %189 = vmatpush1.msra.mxu0 %v88
    %190 = vmatprep.subr.mxu0 0.0
    %191 = vmatpush1.msra.mxu0 %v85
    %192 = vmatprep.subr.mxu0 0.0
    %193 = vmatpush1.msra.mxu0 %v82
    %194 = vmatprep.subr.mxu0 0.0
    %195 = vmatpush1.msra.mxu0 %v79
    %196 = vmatprep.subr.mxu0 0.0
    %197 = vmatpush1.msra.mxu0 %v76
    %198 = vmatprep.subr.mxu0 0.0
    %199 = vmatpush1.msra.mxu0 %v73
    %200 = vmatprep.subr.mxu0 0.0
    %201 = vmatpush2.msra.mxu0 0.0
    %202 = vmatprep.subr.mxu0 0.0
    %203 = vmatpush2.msra.mxu0 0.0
    %204 = vmatprep.subr.mxu0 0.0
    %205 = vmatpush2.msra.mxu0 0.0
    %206 = vmatprep.subr.mxu0 0.0
    %207 = vmatpush2.msra.mxu0 0.0
    %208 = vmatprep.subr.mxu0 0.0
    %209 = vmatpush2.msra.mxu0 0.0
    %210 = vmatprep.subr.mxu0 0.0
    %211 = vmatpush2.msra.mxu0 0.0
    %212 = vmatprep.subr.mxu0 0.0
    %213 = vmatpush2.msra.mxu0 0.0
    %214 = vmatprep.subr.mxu0 0.0
    %215 = vmatpush2.msra.mxu0 0.0
    %216 = vmatprep.subr.mxu0 0.0
    %217 = vmatpush2.msra.mxu0 0.0
    %218 = vmatprep.subr.mxu0 0.0
    %219 = vmatpush2.msra.mxu0 0.0
    %220 = vmatprep.subr.mxu0 0.0
    %221 = vmatpush2.msra.mxu0 0.0
    %222 = vmatprep.subr.mxu0 0.0
    %223 = vmatpush2.msra.mxu0 0.0
    %224 = vmatprep.subr.mxu0 0.0
    %225 = vmatpush2.msra.mxu0 0.0
    %226 = vmatprep.subr.mxu0 0.0
    %227 = vmatpush2.msra.mxu0 0.0
    %228 = vmatprep.subr.mxu0 0.0
    %229 = vmatpush2.msra.mxu0 0.0
    %230 = vmatprep.subr.mxu0 0.0
    %231 = vmatpush2.msra.mxu0 0.0
    %232 = vmatprep.mubr.f32.mxu0 0.0
    %233 = vmatmul.mubr.f32.gmra.mxu0 %v145
    %v234 = vpop.f32.mrf.mxu0
    %v235 = vadd.f32 0.0, %v234
    %v236 = vpop.f32.mrf.mxu0
    %237 = vmatprep.mubr.f32.mxu0 0.0
    %238 = vmatmul.mubr.f32.gmra.mxu0 %v148
    %v239 = vpop.f32.mrf.mxu0
    %v240 = vadd.f32 0.0, %v239
    %v241 = vpop.f32.mrf.mxu0
    %242 = vmatprep.mubr.f32.mxu0 0.0
    %243 = vmatmul.mubr.f32.gmra.mxu0 %v151
    %v244 = vpop.f32.mrf.mxu0
    %v245 = vadd.f32 0.0, %v244
    %v246 = vpop.f32.mrf.mxu0
    %247 = vmatprep.mubr.f32.mxu0 0.0
    %248 = vmatmul.mubr.f32.gmra.mxu0 %v154
    %v249 = vpop.f32.mrf.mxu0
    %v250 = vadd.f32 0.0, %v249
    %v251 = vpop.f32.mrf.mxu0
    %252 = vmatprep.mubr.f32.mxu0 0.0
    %253 = vmatmul.mubr.f32.gmra.mxu0 %v157
    %v254 = vpop.f32.mrf.mxu0
    %v255 = vadd.f32 0.0, %v254
    %v256 = vpop.f32.mrf.mxu0
    %257 = vmatprep.mubr.f32.mxu0 0.0
    %258 = vmatmul.mubr.f32.gmra.mxu0 %v160
    %v259 = vpop.f32.mrf.mxu0
    %v260 = vadd.f32 0.0, %v259
    %v261 = vpop.f32.mrf.mxu0
    %262 = vmatprep.mubr.f32.mxu0 0.0
    %263 = vmatmul.mubr.f32.gmra.mxu0 %v163
    %v264 = vpop.f32.mrf.mxu0
    %v265 = vadd.f32 0.0, %v264
    %v266 = vpop.f32.mrf.mxu0
    %267 = vmatprep.mubr.f32.mxu0 0.0
    %268 = vmatmul.mubr.f32.gmra.mxu0 %v166
    %v269 = vpop.f32.mrf.mxu0
    %v270 = vadd.f32 0.0, %v269
    %v271 = vpop.f32.mrf.mxu0
    %272 = vdwg.mxu0
    %273 = vmatprep.subr.mxu0 0.0
    %274 = vmatpush1.msra.mxu0 0.0
    %275 = vmatprep.subr.mxu0 0.0
    %276 = vmatpush1.msra.mxu0 0.0
    %277 = vmatprep.subr.mxu0 0.0
    %278 = vmatpush1.msra.mxu0 0.0
    %279 = vmatprep.subr.mxu0 0.0
    %280 = vmatpush1.msra.mxu0 0.0
    %281 = vmatprep.subr.mxu0 0.0
    %282 = vmatpush1.msra.mxu0 0.0
    %283 = vmatprep.subr.mxu0 0.0
    %284 = vmatpush1.msra.mxu0 0.0
    %285 = vmatprep.subr.mxu0 0.0
    %286 = vmatpush1.msra.mxu0 0.0
    %287 = vmatprep.subr.mxu0 0.0
    %288 = vmatpush1.msra.mxu0 0.0
    %289 = vmatprep.subr.mxu0 0.0
    %290 = vmatpush1.msra.mxu0 %v134
    %291 = vmatprep.subr.mxu0 0.0
    %292 = vmatpush1.msra.mxu0 %v131
    %293 = vmatprep.subr.mxu0 0.0
    %294 = vmatpush1.msra.mxu0 %v128
    %295 = vmatprep.subr.mxu0 0.0
    %296 = vmatpush1.msra.mxu0 %v125
    %297 = vmatprep.subr.mxu0 0.0
    %298 = vmatpush1.msra.mxu0 %v122
    %299 = vmatprep.subr.mxu0 0.0
    %300 = vmatpush1.msra.mxu0 %v119
    %301 = vmatprep.subr.mxu0 0.0
    %302 = vmatpush1.msra.mxu0 %v116
    %303 = vmatprep.subr.mxu0 0.0
    %304 = vmatpush1.msra.mxu0 %v113
    %305 = vmatprep.subr.mxu0 0.0
    %306 = vmatpush2.msra.mxu0 0.0
    %307 = vmatprep.subr.mxu0 0.0
    %308 = vmatpush2.msra.mxu0 0.0
    %309 = vmatprep.subr.mxu0 0.0
    %310 = vmatpush2.msra.mxu0 0.0
    %311 = vmatprep.subr.mxu0 0.0
    %312 = vmatpush2.msra.mxu0 0.0
    %313 = vmatprep.subr.mxu0 0.0
    %314 = vmatpush2.msra.mxu0 0.0
    %315 = vmatprep.subr.mxu0 0.0
    %316 = vmatpush2.msra.mxu0 0.0
    %317 = vmatprep.subr.mxu0 0.0
    %318 = vmatpush2.msra.mxu0 0.0
    %319 = vmatprep.subr.mxu0 0.0
    %320 = vmatpush2.msra.mxu0 0.0
    %321 = vmatprep.subr.mxu0 0.0
    %322 = vmatpush2.msra.mxu0 0.0
    %323 = vmatprep.subr.mxu0 0.0
    %324 = vmatpush2.msra.mxu0 0.0
    %325 = vmatprep.subr.mxu0 0.0
    %326 = vmatpush2.msra.mxu0 0.0
    %327 = vmatprep.subr.mxu0 0.0
    %328 = vmatpush2.msra.mxu0 0.0
    %329 = vmatprep.subr.mxu0 0.0
    %330 = vmatpush2.msra.mxu0 0.0
    %331 = vmatprep.subr.mxu0 0.0
    %332 = vmatpush2.msra.mxu0 0.0
    %333 = vmatprep.subr.mxu0 0.0
    %334 = vmatpush2.msra.mxu0 0.0
    %335 = vmatprep.subr.mxu0 0.0
    %336 = vmatpush2.msra.mxu0 0.0
    %337 = vmatprep.mubr.f32.mxu0 0.0
    %338 = vmatmul.mubr.f32.gmra.mxu0 %v145
    %v339 = vpop.f32.mrf.mxu0
    %v340 = vadd.f32 0.0, %v339
    %v341 = vpop.f32.mrf.mxu0
    %342 = vmatprep.mubr.f32.mxu0 0.0
    %343 = vmatmul.mubr.f32.gmra.mxu0 %v148
    %v344 = vpop.f32.mrf.mxu0
    %v345 = vadd.f32 0.0, %v344
    %v346 = vpop.f32.mrf.mxu0
    %347 = vmatprep.mubr.f32.mxu0 0.0
    %348 = vmatmul.mubr.f32.gmra.mxu0 %v151
    %v349 = vpop.f32.mrf.mxu0
    %v350 = vadd.f32 0.0, %v349
    %v351 = vpop.f32.mrf.mxu0
    %352 = vmatprep.mubr.f32.mxu0 0.0
    %353 = vmatmul.mubr.f32.gmra.mxu0 %v154
    %v354 = vpop.f32.mrf.mxu0
    %v355 = vadd.f32 0.0, %v354
    %v356 = vpop.f32.mrf.mxu0
    %357 = vmatprep.mubr.f32.mxu0 0.0
    %358 = vmatmul.mubr.f32.gmra.mxu0 %v157
    %v359 = vpop.f32.mrf.mxu0
    %v360 = vadd.f32 0.0, %v359
    %v361 = vpop.f32.mrf.mxu0
    %362 = vmatprep.mubr.f32.mxu0 0.0
    %363 = vmatmul.mubr.f32.gmra.mxu0 %v160
    %v364 = vpop.f32.mrf.mxu0
    %v365 = vadd.f32 0.0, %v364
    %v366 = vpop.f32.mrf.mxu0
    %367 = vmatprep.mubr.f32.mxu0 0.0
    %368 = vmatmul.mubr.f32.gmra.mxu0 %v163
    %v369 = vpop.f32.mrf.mxu0
    %v370 = vadd.f32 0.0, %v369
    %v371 = vpop.f32.mrf.mxu0
    %372 = vmatprep.mubr.f32.mxu0 0.0
    %373 = vmatmul.mubr.f32.gmra.mxu0 %v166
    %v374 = vpop.f32.mrf.mxu0
    %v375 = vadd.f32 0.0, %v374
    %v376 = vpop.f32.mrf.mxu0
    %377 = vdwg.mxu0
    %v378 = vmul.f32 %v235, %v235
    %v379 = vmul.f32 %v240, %v240
    %v380 = vmul.f32 %v245, %v245
    %v381 = vmul.f32 %v250, %v250
    %v382 = vmul.f32 %v255, %v255
    %v383 = vmul.f32 %v260, %v260
    %v384 = vmul.f32 %v265, %v265
    %v385 = vmul.f32 %v270, %v270
    %v386 = vsub.f32 %v340, %v378
    %v387 = vsub.f32 %v345, %v379
    %v388 = vsub.f32 %v350, %v380
    %v389 = vsub.f32 %v355, %v381
    %v390 = vsub.f32 %v360, %v382
    %v391 = vsub.f32 %v365, %v383
    %v392 = vsub.f32 %v370, %v384
    %v393 = vsub.f32 %v375, %v385
    %v394 = vadd.f32 %v386, 1e-05
    %v395 = vadd.f32 %v387, 1e-05
    %v396 = vadd.f32 %v388, 1e-05
    %v397 = vadd.f32 %v389, 1e-05
    %v398 = vadd.f32 %v390, 1e-05
    %v399 = vadd.f32 %v391, 1e-05
    %v400 = vadd.f32 %v392, 1e-05
    %v401 = vadd.f32 %v393, 1e-05
    %v402 = vrsqrt.pop %v394
    %v403 = vrsqrt.pop %v395
    %v404 = vrsqrt.pop %v396
    %v405 = vrsqrt.pop %v397
    %v406 = vrsqrt.pop %v398
    %v407 = vrsqrt.pop %v399
    %v408 = vrsqrt.pop %v400
    %v409 = vrsqrt.pop %v401
    %v410 = vld [vmem:[%s1] sm:$0xff]
    %v411 = vld [vmem:[%s1 + $0x8] sm:$0xff]
    %v412 = vld [vmem:[%s1 + $0x10] sm:$0xff]
    %v413 = vld [vmem:[%s1 + $0x18] sm:$0xff]
    %v414 = vld [vmem:[%s1 + $0x20] sm:$0xff]
    %v415 = vld [vmem:[%s1 + $0x28] sm:$0xff]
    %v416 = vld [vmem:[%s1 + $0x30] sm:$0xff]
    %v417 = vld [vmem:[%s1 + $0x38] sm:$0xff]
    %v418 = vmul.f32 %v402, %v410
    %v419 = vmul.f32 %v403, %v411
    %v420 = vmul.f32 %v404, %v412
    %v421 = vmul.f32 %v405, %v413
    %v422 = vmul.f32 %v406, %v414
    %v423 = vmul.f32 %v407, %v415
    %v424 = vmul.f32 %v408, %v416
    %v425 = vmul.f32 %v409, %v417
    %v426 = vld [vmem:[%s2] sm:$0xff]
    %v427 = vld [vmem:[%s2 + $0x8] sm:$0xff]
    %v428 = vld [vmem:[%s2 + $0x10] sm:$0xff]
    %v429 = vld [vmem:[%s2 + $0x18] sm:$0xff]
    %v430 = vld [vmem:[%s2 + $0x20] sm:$0xff]
    %v431 = vld [vmem:[%s2 + $0x28] sm:$0xff]
    %v432 = vld [vmem:[%s2 + $0x30] sm:$0xff]
    %v433 = vld [vmem:[%s2 + $0x38] sm:$0xff]
    %v434 = vmul.f32 %v235, %v418
    %v435 = vmul.f32 %v240, %v419
    %v436 = vmul.f32 %v245, %v420
    %v437 = vmul.f32 %v250, %v421
    %v438 = vmul.f32 %v255, %v422
    %v439 = vmul.f32 %v260, %v423
    %v440 = vmul.f32 %v265, %v424
    %v441 = vmul.f32 %v270, %v425
    %v442 = vsub.f32 %v426, %v434
    %v443 = vsub.f32 %v427, %v435
    %v444 = vsub.f32 %v428, %v436
    %v445 = vsub.f32 %v429, %v437
    %v446 = vsub.f32 %v430, %v438
    %v447 = vsub.f32 %v431, %v439
    %v448 = vsub.f32 %v432, %v440
    %v449 = vsub.f32 %v433, %v441
    %451 = vset.pattern.permute.xlu0 0
    %452 = vperm.xlu0 %451, %v418
    %v453 = vpop.permute.xlu0 %452
    %456 = vset.pattern.permute.xlu0 0
    %457 = vperm.xlu0 %456, %v419
    %v458 = vpop.permute.xlu0 %457
    %461 = vset.pattern.permute.xlu0 0
    %462 = vperm.xlu0 %461, %v420
    %v463 = vpop.permute.xlu0 %462
    %466 = vset.pattern.permute.xlu0 0
    %467 = vperm.xlu0 %466, %v421
    %v468 = vpop.permute.xlu0 %467
    %471 = vset.pattern.permute.xlu0 0
    %472 = vperm.xlu0 %471, %v422
    %v473 = vpop.permute.xlu0 %472
    %476 = vset.pattern.permute.xlu0 0
    %477 = vperm.xlu0 %476, %v423
    %v478 = vpop.permute.xlu0 %477
    %481 = vset.pattern.permute.xlu0 0
    %482 = vperm.xlu0 %481, %v424
    %v483 = vpop.permute.xlu0 %482
    %486 = vset.pattern.permute.xlu0 0
    %487 = vperm.xlu0 %486, %v425
    %v488 = vpop.permute.xlu0 %487
    %v490 = vmul.f32 %v55, %v453
    %v491 = vmul.f32 %v56, %v453
    %v492 = vmul.f32 %v57, %v458
    %v493 = vmul.f32 %v58, %v458
    %v494 = vmul.f32 %v59, %v463
    %v495 = vmul.f32 %v60, %v463
    %v496 = vmul.f32 %v61, %v468
    %v497 = vmul.f32 %v62, %v468
    %v498 = vmul.f32 %v63, %v473
    %v499 = vmul.f32 %v64, %v473
    %v500 = vmul.f32 %v65, %v478
    %v501 = vmul.f32 %v66, %v478
    %v502 = vmul.f32 %v67, %v483
    %v503 = vmul.f32 %v68, %v483
    %v504 = vmul.f32 %v69, %v488
    %v505 = vmul.f32 %v70, %v488
    %507 = vset.pattern.permute.xlu0 0
    %508 = vperm.xlu0 %507, %v442
    %v509 = vpop.permute.xlu0 %508
    %512 = vset.pattern.permute.xlu0 0
    %513 = vperm.xlu0 %512, %v443
    %v514 = vpop.permute.xlu0 %513
    %517 = vset.pattern.permute.xlu0 0
    %518 = vperm.xlu0 %517, %v444
    %v519 = vpop.permute.xlu0 %518
    %522 = vset.pattern.permute.xlu0 0
    %523 = vperm.xlu0 %522, %v445
    %v524 = vpop.permute.xlu0 %523
    %527 = vset.pattern.permute.xlu0 0
    %528 = vperm.xlu0 %527, %v446
    %v529 = vpop.permute.xlu0 %528
    %532 = vset.pattern.permute.xlu0 0
    %533 = vperm.xlu0 %532, %v447
    %v534 = vpop.permute.xlu0 %533
    %537 = vset.pattern.permute.xlu0 0
    %538 = vperm.xlu0 %537, %v448
    %v539 = vpop.permute.xlu0 %538
    %542 = vset.pattern.permute.xlu0 0
    %543 = vperm.xlu0 %542, %v449
    %v544 = vpop.permute.xlu0 %543
    %v546 = vadd.f32 %v490, %v509
    %v547 = vadd.f32 %v491, %v509
    %v548 = vadd.f32 %v492, %v514
    %v549 = vadd.f32 %v493, %v514
    %v550 = vadd.f32 %v494, %v519
    %v551 = vadd.f32 %v495, %v519
    %v552 = vadd.f32 %v496, %v524
    %v553 = vadd.f32 %v497, %v524
    %v554 = vadd.f32 %v498, %v529
    %v555 = vadd.f32 %v499, %v529
    %v556 = vadd.f32 %v500, %v534
    %v557 = vadd.f32 %v501, %v534
    %v558 = vadd.f32 %v502, %v539
    %v559 = vadd.f32 %v503, %v539
    %v560 = vadd.f32 %v504, %v544
    %v561 = vadd.f32 %v505, %v544
    %v562 = vxor.u32 %v546, 2147483648
    %v563 = vxor.u32 %v547, 2147483648
    %v564 = vxor.u32 %v548, 2147483648
    %v565 = vxor.u32 %v549, 2147483648
    %v566 = vxor.u32 %v550, 2147483648
    %v567 = vxor.u32 %v551, 2147483648
    %v568 = vxor.u32 %v552, 2147483648
    %v569 = vxor.u32 %v553, 2147483648
    %v570 = vxor.u32 %v554, 2147483648
    %v571 = vxor.u32 %v555, 2147483648
    %v572 = vxor.u32 %v556, 2147483648
    %v573 = vxor.u32 %v557, 2147483648
    %v574 = vxor.u32 %v558, 2147483648
    %v575 = vxor.u32 %v559, 2147483648
    %v576 = vxor.u32 %v560, 2147483648
    %v577 = vxor.u32 %v561, 2147483648
    %v578 = vmul.f32 %v562, 1.442695
    %v579 = vpow.pop %v578
    %v580 = vmul.f32 %v563, 1.442695
    %v581 = vpow.pop %v580
    %v582 = vmul.f32 %v564, 1.442695
    %v583 = vpow.pop %v582
    %v584 = vmul.f32 %v565, 1.442695
    %v585 = vpow.pop %v584
    %v586 = vmul.f32 %v566, 1.442695
    %v587 = vpow.pop %v586
    %v588 = vmul.f32 %v567, 1.442695
    %v589 = vpow.pop %v588
    %v590 = vmul.f32 %v568, 1.442695
    %v591 = vpow.pop %v590
    %v592 = vmul.f32 %v569, 1.442695
    %v593 = vpow.pop %v592
    %v594 = vmul.f32 %v570, 1.442695
    %v595 = vpow.pop %v594
    %v596 = vmul.f32 %v571, 1.442695
    %v597 = vpow.pop %v596
    %v598 = vmul.f32 %v572, 1.442695
    %v599 = vpow.pop %v598
    %v600 = vmul.f32 %v573, 1.442695
    %v601 = vpow.pop %v600
    %v602 = vmul.f32 %v574, 1.442695
    %v603 = vpow.pop %v602
    %v604 = vmul.f32 %v575, 1.442695
    %v605 = vpow.pop %v604
    %v606 = vmul.f32 %v576, 1.442695
    %v607 = vpow.pop %v606
    %v608 = vmul.f32 %v577, 1.442695
    %v609 = vpow.pop %v608
    %v610 = vadd.f32 %v579, 1.0
    %v611 = vadd.f32 %v581, 1.0
    %v612 = vadd.f32 %v583, 1.0
    %v613 = vadd.f32 %v585, 1.0
    %v614 = vadd.f32 %v587, 1.0
    %v615 = vadd.f32 %v589, 1.0
    %v616 = vadd.f32 %v591, 1.0
    %v617 = vadd.f32 %v593, 1.0
    %v618 = vadd.f32 %v595, 1.0
    %v619 = vadd.f32 %v597, 1.0
    %v620 = vadd.f32 %v599, 1.0
    %v621 = vadd.f32 %v601, 1.0
    %v622 = vadd.f32 %v603, 1.0
    %v623 = vadd.f32 %v605, 1.0
    %v624 = vadd.f32 %v607, 1.0
    %v625 = vadd.f32 %v609, 1.0
    %v626 = vrcp.pop %v610
    %v627 = vmul.f32 1.0, %v626
    %v628 = vrcp.pop %v611
    %v629 = vmul.f32 1.0, %v628
    %v630 = vrcp.pop %v612
    %v631 = vmul.f32 1.0, %v630
    %v632 = vrcp.pop %v613
    %v633 = vmul.f32 1.0, %v632
    %v634 = vrcp.pop %v614
    %v635 = vmul.f32 1.0, %v634
    %v636 = vrcp.pop %v615
    %v637 = vmul.f32 1.0, %v636
    %v638 = vrcp.pop %v616
    %v639 = vmul.f32 1.0, %v638
    %v640 = vrcp.pop %v617
    %v641 = vmul.f32 1.0, %v640
    %v642 = vrcp.pop %v618
    %v643 = vmul.f32 1.0, %v642
    %v644 = vrcp.pop %v619
    %v645 = vmul.f32 1.0, %v644
    %v646 = vrcp.pop %v620
    %v647 = vmul.f32 1.0, %v646
    %v648 = vrcp.pop %v621
    %v649 = vmul.f32 1.0, %v648
    %v650 = vrcp.pop %v622
    %v651 = vmul.f32 1.0, %v650
    %v652 = vrcp.pop %v623
    %v653 = vmul.f32 1.0, %v652
    %v654 = vrcp.pop %v624
    %v655 = vmul.f32 1.0, %v654
    %v656 = vrcp.pop %v625
    %v657 = vmul.f32 1.0, %v656
    %v658 = vmul.f32 %v546, %v627
    %v659 = vmul.f32 %v547, %v629
    %v660 = vmul.f32 %v548, %v631
    %v661 = vmul.f32 %v549, %v633
    %v662 = vmul.f32 %v550, %v635
    %v663 = vmul.f32 %v551, %v637
    %v664 = vmul.f32 %v552, %v639
    %v665 = vmul.f32 %v553, %v641
    %v666 = vmul.f32 %v554, %v643
    %v667 = vmul.f32 %v555, %v645
    %v668 = vmul.f32 %v556, %v647
    %v669 = vmul.f32 %v557, %v649
    %v670 = vmul.f32 %v558, %v651
    %v671 = vmul.f32 %v559, %v653
    %v672 = vmul.f32 %v560, %v655
    %v673 = vmul.f32 %v561, %v657
    %s674 = scalar_lea.vmem [#allocation5], 288
    %v675 = vld [vmem:[%s674] sm:$0xff]
    %v676 = vld [vmem:[%s674 + $0x8] sm:$0xff]
    %v677 = vld [vmem:[%s674 + $0x10] sm:$0xff]
    %v678 = vld [vmem:[%s674 + $0x18] sm:$0xff]
    %679 = vrot.lane.b32.xlu0 %v658, 17
    %v680 = vpop.permute.xlu0 %679
    %681 = vrot.lane.b32.xlu0 %v660, 17
    %v682 = vpop.permute.xlu0 %681
    %683 = vrot.lane.b32.xlu0 %v662, 17
    %v684 = vpop.permute.xlu0 %683
    %685 = vrot.lane.b32.xlu0 %v664, 17
    %v686 = vpop.permute.xlu0 %685
    %687 = vrot.lane.b32.xlu0 %v666, 17
    %v688 = vpop.permute.xlu0 %687
    %689 = vrot.lane.b32.xlu0 %v668, 17
    %v690 = vpop.permute.xlu0 %689
    %691 = vrot.lane.b32.xlu0 %v670, 17
    %v692 = vpop.permute.xlu0 %691
    %693 = vrot.lane.b32.xlu0 %v672, 17
    %v694 = vpop.permute.xlu0 %693
    %695 = vrot.lane.b32.xlu0 %v659, 17
    %v696 = vpop.permute.xlu0 %695
    %697 = vrot.lane.b32.xlu0 %v661, 17
    %v698 = vpop.permute.xlu0 %697
    %699 = vrot.lane.b32.xlu0 %v663, 17
    %v700 = vpop.permute.xlu0 %699
    %701 = vrot.lane.b32.xlu0 %v665, 17
    %v702 = vpop.permute.xlu0 %701
    %703 = vrot.lane.b32.xlu0 %v667, 17
    %v704 = vpop.permute.xlu0 %703
    %705 = vrot.lane.b32.xlu0 %v669, 17
    %v706 = vpop.permute.xlu0 %705
    %707 = vrot.lane.b32.xlu0 %v671, 17
    %v708 = vpop.permute.xlu0 %707
    %709 = vrot.lane.b32.xlu0 %v673, 17
    %v710 = vpop.permute.xlu0 %709
    %v711 = vlaneseq
    %v712 = vand.u32 %v711, 127
    %vm713 = vcmp.lt.s32.totalorder %v712, 17
    %v714 = vsel %vm713, %v680, %v696
    %v715 = vsel %vm713, %v682, %v698
    %v716 = vsel %vm713, %v684, %v700
    %v717 = vsel %vm713, %v686, %v702
    %v718 = vsel %vm713, %v688, %v704
    %v719 = vsel %vm713, %v690, %v706
    %v720 = vsel %vm713, %v692, %v708
    %v721 = vsel %vm713, %v694, %v710
    %v722 = vsel %vm713, %v696, %v680
    %v723 = vsel %vm713, %v698, %v682
    %v724 = vsel %vm713, %v700, %v684
    %v725 = vsel %vm713, %v702, %v686
    %v726 = vsel %vm713, %v704, %v688
    %v727 = vsel %vm713, %v706, %v690
    %v728 = vsel %vm713, %v708, %v692
    %v729 = vsel %vm713, %v710, %v694
    %v730 = vld [vmem:[%s4] sm:$0x3]
    %v732 = vlaneseq
    %v733 = vshrl.u32 %v732, 7
    %v734 = vsub.s32 0, %v733
    %v735 = vrot.slane %v730, %v734
    %v736 = vlaneseq
    %v737 = vshrl.u32 %v736, 7
    %v738 = vsub.s32 1, %v737
    %v739 = vrot.slane %v730, %v738
    %v742 = vmul.f32 %v722, %v735
    %v743 = vmul.f32 %v714, %v739
    %v744 = vmul.f32 %v723, %v735
    %v745 = vmul.f32 %v715, %v739
    %v746 = vmul.f32 %v724, %v735
    %v747 = vmul.f32 %v716, %v739
    %v748 = vmul.f32 %v725, %v735
    %v749 = vmul.f32 %v717, %v739
    %v750 = vmul.f32 %v726, %v735
    %v751 = vmul.f32 %v718, %v739
    %v752 = vmul.f32 %v727, %v735
    %v753 = vmul.f32 %v719, %v739
    %v754 = vmul.f32 %v728, %v735
    %v755 = vmul.f32 %v720, %v739
    %v756 = vmul.f32 %v729, %v735
    %v757 = vmul.f32 %v721, %v739
    %v758 = vld [vmem:[#allocation5] sm:$0xff]
    %v759 = vld [vmem:[#allocation5 + $0x8] sm:$0xff]
    %v760 = vld [vmem:[#allocation5 + $0x10] sm:$0xff]
    %v761 = vld [vmem:[#allocation5 + $0x18] sm:$0xff]
    %v763 = vsel %vm143, %v758, 0
    %v766 = vsel %vm143, %v759, 0
    %v769 = vsel %vm143, %v760, 0
    %v772 = vsel %vm143, %v761, 0
    %774 = vmatprep.subr.mxu0 0.0
    %775 = vmatpush1.msra.mxu0 0.0
    %776 = vmatprep.subr.mxu0 0.0
    %777 = vmatpush1.msra.mxu0 0.0
    %778 = vmatprep.subr.mxu0 0.0
    %779 = vmatpush1.msra.mxu0 0.0
    %780 = vmatprep.subr.mxu0 0.0
    %781 = vmatpush1.msra.mxu0 0.0
    %782 = vmatprep.subr.mxu0 0.0
    %783 = vmatpush1.msra.mxu0 0.0
    %784 = vmatprep.subr.mxu0 0.0
    %785 = vmatpush1.msra.mxu0 0.0
    %786 = vmatprep.subr.mxu0 0.0
    %787 = vmatpush1.msra.mxu0 0.0
    %788 = vmatprep.subr.mxu0 0.0
    %789 = vmatpush1.msra.mxu0 0.0
    %790 = vmatprep.subr.mxu0 %v757
    %791 = vmatpush1.msra.mxu0 %v756
    %792 = vmatprep.subr.mxu0 %v755
    %793 = vmatpush1.msra.mxu0 %v754
    %794 = vmatprep.subr.mxu0 %v753
    %795 = vmatpush1.msra.mxu0 %v752
    %796 = vmatprep.subr.mxu0 %v751
    %797 = vmatpush1.msra.mxu0 %v750
    %798 = vmatprep.subr.mxu0 %v749
    %799 = vmatpush1.msra.mxu0 %v748
    %800 = vmatprep.subr.mxu0 %v747
    %801 = vmatpush1.msra.mxu0 %v746
    %802 = vmatprep.subr.mxu0 %v745
    %803 = vmatpush1.msra.mxu0 %v744
    %804 = vmatprep.subr.mxu0 %v743
    %805 = vmatpush1.msra.mxu0 %v742
    %806 = vmatprep.subr.mxu0 0.0
    %807 = vmatpush2.msra.mxu0 0.0
    %808 = vmatprep.subr.mxu0 0.0
    %809 = vmatpush2.msra.mxu0 0.0
    %810 = vmatprep.subr.mxu0 0.0
    %811 = vmatpush2.msra.mxu0 0.0
    %812 = vmatprep.subr.mxu0 0.0
    %813 = vmatpush2.msra.mxu0 0.0
    %814 = vmatprep.subr.mxu0 0.0
    %815 = vmatpush2.msra.mxu0 0.0
    %816 = vmatprep.subr.mxu0 0.0
    %817 = vmatpush2.msra.mxu0 0.0
    %818 = vmatprep.subr.mxu0 0.0
    %819 = vmatpush2.msra.mxu0 0.0
    %820 = vmatprep.subr.mxu0 0.0
    %821 = vmatpush2.msra.mxu0 0.0
    %822 = vmatprep.subr.mxu0 0.0
    %823 = vmatpush2.msra.mxu0 0.0
    %824 = vmatprep.subr.mxu0 0.0
    %825 = vmatpush2.msra.mxu0 0.0
    %826 = vmatprep.subr.mxu0 0.0
    %827 = vmatpush2.msra.mxu0 0.0
    %828 = vmatprep.subr.mxu0 0.0
    %829 = vmatpush2.msra.mxu0 0.0
    %830 = vmatprep.subr.mxu0 0.0
    %831 = vmatpush2.msra.mxu0 0.0
    %832 = vmatprep.subr.mxu0 0.0
    %833 = vmatpush2.msra.mxu0 0.0
    %834 = vmatprep.subr.mxu0 0.0
    %835 = vmatpush2.msra.mxu0 0.0
    %836 = vmatprep.subr.mxu0 0.0
    %837 = vmatpush2.msra.mxu0 0.0
    %838 = vmatprep.mubr.f32.mxu0 0.0
    %839 = vmatmul.mubr.f32.gmra.mxu0 %v763
    %v840 = vpop.f32.mrf.mxu0
    %v841 = vadd.f32 0.0, %v840
    %v842 = vpop.f32.mrf.mxu0
    %v843 = vadd.f32 0.0, %v842
    %844 = vmatprep.mubr.f32.mxu0 0.0
    %845 = vmatmul.mubr.f32.gmra.mxu0 %v766
    %v846 = vpop.f32.mrf.mxu0
    %v847 = vadd.f32 0.0, %v846
    %v848 = vpop.f32.mrf.mxu0
    %v849 = vadd.f32 0.0, %v848
    %850 = vmatprep.mubr.f32.mxu0 0.0
    %851 = vmatmul.mubr.f32.gmra.mxu0 %v769
    %v852 = vpop.f32.mrf.mxu0
    %v853 = vadd.f32 0.0, %v852
    %v854 = vpop.f32.mrf.mxu0
    %v855 = vadd.f32 0.0, %v854
    %856 = vmatprep.mubr.f32.mxu0 0.0
    %857 = vmatmul.mubr.f32.gmra.mxu0 %v772
    %v858 = vpop.f32.mrf.mxu0
    %v859 = vadd.f32 0.0, %v858
    %v860 = vpop.f32.mrf.mxu0
    %v861 = vadd.f32 0.0, %v860
    %862 = vdwg.mxu0
    %v864 = vsel %vm143, %v675, 0
    %v867 = vsel %vm143, %v676, 0
    %v870 = vsel %vm143, %v677, 0
    %v873 = vsel %vm143, %v678, 0
    %875 = vmatprep.subr.mxu0 0.0
    %876 = vmatpush1.msra.mxu0 0.0
    %877 = vmatprep.subr.mxu0 0.0
    %878 = vmatpush1.msra.mxu0 0.0
    %879 = vmatprep.subr.mxu0 0.0
    %880 = vmatpush1.msra.mxu0 0.0
    %881 = vmatprep.subr.mxu0 0.0
    %882 = vmatpush1.msra.mxu0 0.0
    %883 = vmatprep.subr.mxu0 0.0
    %884 = vmatpush1.msra.mxu0 0.0
    %885 = vmatprep.subr.mxu0 0.0
    %886 = vmatpush1.msra.mxu0 0.0
    %887 = vmatprep.subr.mxu0 0.0
    %888 = vmatpush1.msra.mxu0 0.0
    %889 = vmatprep.subr.mxu0 0.0
    %890 = vmatpush1.msra.mxu0 0.0
    %891 = vmatprep.subr.mxu0 %v70
    %892 = vmatpush1.msra.mxu0 %v69
    %893 = vmatprep.subr.mxu0 %v68
    %894 = vmatpush1.msra.mxu0 %v67
    %895 = vmatprep.subr.mxu0 %v66
    %896 = vmatpush1.msra.mxu0 %v65
    %897 = vmatprep.subr.mxu0 %v64
    %898 = vmatpush1.msra.mxu0 %v63
    %899 = vmatprep.subr.mxu0 %v62
    %900 = vmatpush1.msra.mxu0 %v61
    %901 = vmatprep.subr.mxu0 %v60
    %902 = vmatpush1.msra.mxu0 %v59
    %903 = vmatprep.subr.mxu0 %v58
    %904 = vmatpush1.msra.mxu0 %v57
    %905 = vmatprep.subr.mxu0 %v56
    %906 = vmatpush1.msra.mxu0 %v55
    %907 = vmatprep.subr.mxu0 0.0
    %908 = vmatpush2.msra.mxu0 0.0
    %909 = vmatprep.subr.mxu0 0.0
    %910 = vmatpush2.msra.mxu0 0.0
    %911 = vmatprep.subr.mxu0 0.0
    %912 = vmatpush2.msra.mxu0 0.0
    %913 = vmatprep.subr.mxu0 0.0
    %914 = vmatpush2.msra.mxu0 0.0
    %915 = vmatprep.subr.mxu0 0.0
    %916 = vmatpush2.msra.mxu0 0.0
    %917 = vmatprep.subr.mxu0 0.0
    %918 = vmatpush2.msra.mxu0 0.0
    %919 = vmatprep.subr.mxu0 0.0
    %920 = vmatpush2.msra.mxu0 0.0
    %921 = vmatprep.subr.mxu0 0.0
    %922 = vmatpush2.msra.mxu0 0.0
    %923 = vmatprep.subr.mxu0 0.0
    %924 = vmatpush2.msra.mxu0 0.0
    %925 = vmatprep.subr.mxu0 0.0
    %926 = vmatpush2.msra.mxu0 0.0
    %927 = vmatprep.subr.mxu0 0.0
    %928 = vmatpush2.msra.mxu0 0.0
    %929 = vmatprep.subr.mxu0 0.0
    %930 = vmatpush2.msra.mxu0 0.0
    %931 = vmatprep.subr.mxu0 0.0
    %932 = vmatpush2.msra.mxu0 0.0
    %933 = vmatprep.subr.mxu0 0.0
    %934 = vmatpush2.msra.mxu0 0.0
    %935 = vmatprep.subr.mxu0 0.0
    %936 = vmatpush2.msra.mxu0 0.0
    %937 = vmatprep.subr.mxu0 0.0
    %938 = vmatpush2.msra.mxu0 0.0
    %939 = vmatprep.mubr.f32.mxu0 0.0
    %940 = vmatmul.mubr.f32.gmra.mxu0 %v864
    %v941 = vpop.f32.mrf.mxu0
    %v942 = vadd.f32 %v841, %v941
    %v943 = vpop.f32.mrf.mxu0
    %v944 = vadd.f32 %v843, %v943
    %945 = vmatprep.mubr.f32.mxu0 0.0
    %946 = vmatmul.mubr.f32.gmra.mxu0 %v867
    %v947 = vpop.f32.mrf.mxu0
    %v948 = vadd.f32 %v847, %v947
    %v949 = vpop.f32.mrf.mxu0
    %v950 = vadd.f32 %v849, %v949
    %951 = vmatprep.mubr.f32.mxu0 0.0
    %952 = vmatmul.mubr.f32.gmra.mxu0 %v870
    %v953 = vpop.f32.mrf.mxu0
    %v954 = vadd.f32 %v853, %v953
    %v955 = vpop.f32.mrf.mxu0
    %v956 = vadd.f32 %v855, %v955
    %957 = vmatprep.mubr.f32.mxu0 0.0
    %958 = vmatmul.mubr.f32.gmra.mxu0 %v873
    %v959 = vpop.f32.mrf.mxu0
    %v960 = vadd.f32 %v859, %v959
    %v961 = vpop.f32.mrf.mxu0
    %v962 = vadd.f32 %v861, %v961
    %963 = vdwg.mxu0
    %964 = vrot.lane.b32.xlu0 %v658, 16
    %v965 = vpop.permute.xlu0 %964
    %966 = vrot.lane.b32.xlu0 %v660, 16
    %v967 = vpop.permute.xlu0 %966
    %968 = vrot.lane.b32.xlu0 %v662, 16
    %v969 = vpop.permute.xlu0 %968
    %970 = vrot.lane.b32.xlu0 %v664, 16
    %v971 = vpop.permute.xlu0 %970
    %972 = vrot.lane.b32.xlu0 %v666, 16
    %v973 = vpop.permute.xlu0 %972
    %974 = vrot.lane.b32.xlu0 %v668, 16
    %v975 = vpop.permute.xlu0 %974
    %976 = vrot.lane.b32.xlu0 %v670, 16
    %v977 = vpop.permute.xlu0 %976
    %978 = vrot.lane.b32.xlu0 %v672, 16
    %v979 = vpop.permute.xlu0 %978
    %980 = vrot.lane.b32.xlu0 %v659, 16
    %v981 = vpop.permute.xlu0 %980
    %982 = vrot.lane.b32.xlu0 %v661, 16
    %v983 = vpop.permute.xlu0 %982
    %984 = vrot.lane.b32.xlu0 %v663, 16
    %v985 = vpop.permute.xlu0 %984
    %986 = vrot.lane.b32.xlu0 %v665, 16
    %v987 = vpop.permute.xlu0 %986
    %988 = vrot.lane.b32.xlu0 %v667, 16
    %v989 = vpop.permute.xlu0 %988
    %990 = vrot.lane.b32.xlu0 %v669, 16
    %v991 = vpop.permute.xlu0 %990
    %992 = vrot.lane.b32.xlu0 %v671, 16
    %v993 = vpop.permute.xlu0 %992
    %994 = vrot.lane.b32.xlu0 %v673, 16
    %v995 = vpop.permute.xlu0 %994
    %vm996 = vcmp.lt.s32.totalorder %v712, 16
    %v997 = vsel %vm996, %v965, %v981
    %v998 = vsel %vm996, %v967, %v983
    %v999 = vsel %vm996, %v969, %v985
    %v1000 = vsel %vm996, %v971, %v987
    %v1001 = vsel %vm996, %v973, %v989
    %v1002 = vsel %vm996, %v975, %v991
    %v1003 = vsel %vm996, %v977, %v993
    %v1004 = vsel %vm996, %v979, %v995
    %v1005 = vsel %vm996, %v981, %v965
    %v1006 = vsel %vm996, %v983, %v967
    %v1007 = vsel %vm996, %v985, %v969
    %v1008 = vsel %vm996, %v987, %v971
    %v1009 = vsel %vm996, %v989, %v973
    %v1010 = vsel %vm996, %v991, %v975
    %v1011 = vsel %vm996, %v993, %v977
    %v1012 = vsel %vm996, %v995, %v979
    %s1013 = scalar_lea.vmem %s4, 2
    %v1014 = vld [vmem:[%s1013] sm:$0x3]
    %v1016 = vlaneseq
    %v1017 = vshrl.u32 %v1016, 7
    %v1018 = vsub.s32 0, %v1017
    %v1019 = vrot.slane %v1014, %v1018
    %v1020 = vlaneseq
    %v1021 = vshrl.u32 %v1020, 7
    %v1022 = vsub.s32 1, %v1021
    %v1023 = vrot.slane %v1014, %v1022
    %v1026 = vmul.f32 %v1005, %v1019
    %v1027 = vmul.f32 %v997, %v1023
    %v1028 = vmul.f32 %v1006, %v1019
    %v1029 = vmul.f32 %v998, %v1023
    %v1030 = vmul.f32 %v1007, %v1019
    %v1031 = vmul.f32 %v999, %v1023
    %v1032 = vmul.f32 %v1008, %v1019
    %v1033 = vmul.f32 %v1000, %v1023
    %v1034 = vmul.f32 %v1009, %v1019
    %v1035 = vmul.f32 %v1001, %v1023
    %v1036 = vmul.f32 %v1010, %v1019
    %v1037 = vmul.f32 %v1002, %v1023
    %v1038 = vmul.f32 %v1011, %v1019
    %v1039 = vmul.f32 %v1003, %v1023
    %v1040 = vmul.f32 %v1012, %v1019
    %v1041 = vmul.f32 %v1004, %v1023
    %s1042 = scalar_lea.vmem [#allocation5], 32
    %v1043 = vld [vmem:[%s1042] sm:$0xff]
    %v1044 = vld [vmem:[%s1042 + $0x8] sm:$0xff]
    %v1045 = vld [vmem:[%s1042 + $0x10] sm:$0xff]
    %v1046 = vld [vmem:[%s1042 + $0x18] sm:$0xff]
    %v1048 = vsel %vm143, %v1043, 0
    %v1051 = vsel %vm143, %v1044, 0
    %v1054 = vsel %vm143, %v1045, 0
    %v1057 = vsel %vm143, %v1046, 0
    %1059 = vmatprep.subr.mxu0 0.0
    %1060 = vmatpush1.msra.mxu0 0.0
    %1061 = vmatprep.subr.mxu0 0.0
    %1062 = vmatpush1.msra.mxu0 0.0
    %1063 = vmatprep.subr.mxu0 0.0
    %1064 = vmatpush1.msra.mxu0 0.0
    %1065 = vmatprep.subr.mxu0 0.0
    %1066 = vmatpush1.msra.mxu0 0.0
    %1067 = vmatprep.subr.mxu0 0.0
    %1068 = vmatpush1.msra.mxu0 0.0
    %1069 = vmatprep.subr.mxu0 0.0
    %1070 = vmatpush1.msra.mxu0 0.0
    %1071 = vmatprep.subr.mxu0 0.0
    %1072 = vmatpush1.msra.mxu0 0.0
    %1073 = vmatprep.subr.mxu0 0.0
    %1074 = vmatpush1.msra.mxu0 0.0
    %1075 = vmatprep.subr.mxu0 %v1041
    %1076 = vmatpush1.msra.mxu0 %v1040
    %1077 = vmatprep.subr.mxu0 %v1039
    %1078 = vmatpush1.msra.mxu0 %v1038
    %1079 = vmatprep.subr.mxu0 %v1037
    %1080 = vmatpush1.msra.mxu0 %v1036
    %1081 = vmatprep.subr.mxu0 %v1035
    %1082 = vmatpush1.msra.mxu0 %v1034
    %1083 = vmatprep.subr.mxu0 %v1033
    %1084 = vmatpush1.msra.mxu0 %v1032
    %1085 = vmatprep.subr.mxu0 %v1031
    %1086 = vmatpush1.msra.mxu0 %v1030
    %1087 = vmatprep.subr.mxu0 %v1029
    %1088 = vmatpush1.msra.mxu0 %v1028
    %1089 = vmatprep.subr.mxu0 %v1027
    %1090 = vmatpush1.msra.mxu0 %v1026
    %1091 = vmatprep.subr.mxu0 0.0
    %1092 = vmatpush2.msra.mxu0 0.0
    %1093 = vmatprep.subr.mxu0 0.0
    %1094 = vmatpush2.msra.mxu0 0.0
    %1095 = vmatprep.subr.mxu0 0.0
    %1096 = vmatpush2.msra.mxu0 0.0
    %1097 = vmatprep.subr.mxu0 0.0
    %1098 = vmatpush2.msra.mxu0 0.0
    %1099 = vmatprep.subr.mxu0 0.0
    %1100 = vmatpush2.msra.mxu0 0.0
    %1101 = vmatprep.subr.mxu0 0.0
    %1102 = vmatpush2.msra.mxu0 0.0
    %1103 = vmatprep.subr.mxu0 0.0
    %1104 = vmatpush2.msra.mxu0 0.0
    %1105 = vmatprep.subr.mxu0 0.0
    %1106 = vmatpush2.msra.mxu0 0.0
    %1107 = vmatprep.subr.mxu0 0.0
    %1108 = vmatpush2.msra.mxu0 0.0
    %1109 = vmatprep.subr.mxu0 0.0
    %1110 = vmatpush2.msra.mxu0 0.0
    %1111 = vmatprep.subr.mxu0 0.0
    %1112 = vmatpush2.msra.mxu0 0.0
    %1113 = vmatprep.subr.mxu0 0.0
    %1114 = vmatpush2.msra.mxu0 0.0
    %1115 = vmatprep.subr.mxu0 0.0
    %1116 = vmatpush2.msra.mxu0 0.0
    %1117 = vmatprep.subr.mxu0 0.0
    %1118 = vmatpush2.msra.mxu0 0.0
    %1119 = vmatprep.subr.mxu0 0.0
    %1120 = vmatpush2.msra.mxu0 0.0
    %1121 = vmatprep.subr.mxu0 0.0
    %1122 = vmatpush2.msra.mxu0 0.0
    %1123 = vmatprep.mubr.f32.mxu0 0.0
    %1124 = vmatmul.mubr.f32.gmra.mxu0 %v1048
    %v1125 = vpop.f32.mrf.mxu0
    %v1126 = vadd.f32 0.0, %v1125
    %v1127 = vpop.f32.mrf.mxu0
    %v1128 = vadd.f32 0.0, %v1127
    %1129 = vmatprep.mubr.f32.mxu0 0.0
    %1130 = vmatmul.mubr.f32.gmra.mxu0 %v1051
    %v1131 = vpop.f32.mrf.mxu0
    %v1132 = vadd.f32 0.0, %v1131
    %v1133 = vpop.f32.mrf.mxu0
    %v1134 = vadd.f32 0.0, %v1133
    %1135 = vmatprep.mubr.f32.mxu0 0.0
    %1136 = vmatmul.mubr.f32.gmra.mxu0 %v1054
    %v1137 = vpop.f32.mrf.mxu0
    %v1138 = vadd.f32 0.0, %v1137
    %v1139 = vpop.f32.mrf.mxu0
    %v1140 = vadd.f32 0.0, %v1139
    %1141 = vmatprep.mubr.f32.mxu0 0.0
    %1142 = vmatmul.mubr.f32.gmra.mxu0 %v1057
    %v1143 = vpop.f32.mrf.mxu0
    %v1144 = vadd.f32 0.0, %v1143
    %v1145 = vpop.f32.mrf.mxu0
    %v1146 = vadd.f32 0.0, %v1145
    %1147 = vdwg.mxu0
    %v1148 = vadd.f32 %v942, %v1126
    %v1149 = vadd.f32 %v944, %v1128
    %v1150 = vadd.f32 %v948, %v1132
    %v1151 = vadd.f32 %v950, %v1134
    %v1152 = vadd.f32 %v954, %v1138
    %v1153 = vadd.f32 %v956, %v1140
    %v1154 = vadd.f32 %v960, %v1144
    %v1155 = vadd.f32 %v962, %v1146
    %1156 = vrot.lane.b32.xlu0 %v658, 15
    %v1157 = vpop.permute.xlu0 %1156
    %1158 = vrot.lane.b32.xlu0 %v660, 15
    %v1159 = vpop.permute.xlu0 %1158
    %1160 = vrot.lane.b32.xlu0 %v662, 15
    %v1161 = vpop.permute.xlu0 %1160
    %1162 = vrot.lane.b32.xlu0 %v664, 15
    %v1163 = vpop.permute.xlu0 %1162
    %1164 = vrot.lane.b32.xlu0 %v666, 15
    %v1165 = vpop.permute.xlu0 %1164
    %1166 = vrot.lane.b32.xlu0 %v668, 15
    %v1167 = vpop.permute.xlu0 %1166
    %1168 = vrot.lane.b32.xlu0 %v670, 15
    %v1169 = vpop.permute.xlu0 %1168
    %1170 = vrot.lane.b32.xlu0 %v672, 15
    %v1171 = vpop.permute.xlu0 %1170
    %1172 = vrot.lane.b32.xlu0 %v659, 15
    %v1173 = vpop.permute.xlu0 %1172
    %1174 = vrot.lane.b32.xlu0 %v661, 15
    %v1175 = vpop.permute.xlu0 %1174
    %1176 = vrot.lane.b32.xlu0 %v663, 15
    %v1177 = vpop.permute.xlu0 %1176
    %1178 = vrot.lane.b32.xlu0 %v665, 15
    %v1179 = vpop.permute.xlu0 %1178
    %1180 = vrot.lane.b32.xlu0 %v667, 15
    %v1181 = vpop.permute.xlu0 %1180
    %1182 = vrot.lane.b32.xlu0 %v669, 15
    %v1183 = vpop.permute.xlu0 %1182
    %1184 = vrot.lane.b32.xlu0 %v671, 15
    %v1185 = vpop.permute.xlu0 %1184
    %1186 = vrot.lane.b32.xlu0 %v673, 15
    %v1187 = vpop.permute.xlu0 %1186
    %vm1188 = vcmp.lt.s32.totalorder %v712, 15
    %v1189 = vsel %vm1188, %v1157, %v1173
    %v1190 = vsel %vm1188, %v1159, %v1175
    %v1191 = vsel %vm1188, %v1161, %v1177
    %v1192 = vsel %vm1188, %v1163, %v1179
    %v1193 = vsel %vm1188, %v1165, %v1181
    %v1194 = vsel %vm1188, %v1167, %v1183
    %v1195 = vsel %vm1188, %v1169, %v1185
    %v1196 = vsel %vm1188, %v1171, %v1187
    %v1197 = vsel %vm1188, %v1173, %v1157
    %v1198 = vsel %vm1188, %v1175, %v1159
    %v1199 = vsel %vm1188, %v1177, %v1161
    %v1200 = vsel %vm1188, %v1179, %v1163
    %v1201 = vsel %vm1188, %v1181, %v1165
    %v1202 = vsel %vm1188, %v1183, %v1167
    %v1203 = vsel %vm1188, %v1185, %v1169
    %v1204 = vsel %vm1188, %v1187, %v1171
    %s1205 = scalar_lea.vmem %s4, 4
    %v1206 = vld [vmem:[%s1205] sm:$0x3]
    %v1208 = vlaneseq
    %v1209 = vshrl.u32 %v1208, 7
    %v1210 = vsub.s32 0, %v1209
    %v1211 = vrot.slane %v1206, %v1210
    %v1212 = vlaneseq
    %v1213 = vshrl.u32 %v1212, 7
    %v1214 = vsub.s32 1, %v1213
    %v1215 = vrot.slane %v1206, %v1214
    %v1218 = vmul.f32 %v1197, %v1211
    %v1219 = vmul.f32 %v1189, %v1215
    %v1220 = vmul.f32 %v1198, %v1211
    %v1221 = vmul.f32 %v1190, %v1215
    %v1222 = vmul.f32 %v1199, %v1211
    %v1223 = vmul.f32 %v1191, %v1215
    %v1224 = vmul.f32 %v1200, %v1211
    %v1225 = vmul.f32 %v1192, %v1215
    %v1226 = vmul.f32 %v1201, %v1211
    %v1227 = vmul.f32 %v1193, %v1215
    %v1228 = vmul.f32 %v1202, %v1211
    %v1229 = vmul.f32 %v1194, %v1215
    %v1230 = vmul.f32 %v1203, %v1211
    %v1231 = vmul.f32 %v1195, %v1215
    %v1232 = vmul.f32 %v1204, %v1211
    %v1233 = vmul.f32 %v1196, %v1215
    %s1234 = scalar_lea.vmem [#allocation5], 64
    %v1235 = vld [vmem:[%s1234] sm:$0xff]
    %v1236 = vld [vmem:[%s1234 + $0x8] sm:$0xff]
    %v1237 = vld [vmem:[%s1234 + $0x10] sm:$0xff]
    %v1238 = vld [vmem:[%s1234 + $0x18] sm:$0xff]
    %v1240 = vsel %vm143, %v1235, 0
    %v1243 = vsel %vm143, %v1236, 0
    %v1246 = vsel %vm143, %v1237, 0
    %v1249 = vsel %vm143, %v1238, 0
    %1251 = vmatprep.subr.mxu0 0.0
    %1252 = vmatpush1.msra.mxu0 0.0
    %1253 = vmatprep.subr.mxu0 0.0
    %1254 = vmatpush1.msra.mxu0 0.0
    %1255 = vmatprep.subr.mxu0 0.0
    %1256 = vmatpush1.msra.mxu0 0.0
    %1257 = vmatprep.subr.mxu0 0.0
    %1258 = vmatpush1.msra.mxu0 0.0
    %1259 = vmatprep.subr.mxu0 0.0
    %1260 = vmatpush1.msra.mxu0 0.0
    %1261 = vmatprep.subr.mxu0 0.0
    %1262 = vmatpush1.msra.mxu0 0.0
    %1263 = vmatprep.subr.mxu0 0.0
    %1264 = vmatpush1.msra.mxu0 0.0
    %1265 = vmatprep.subr.mxu0 0.0
    %1266 = vmatpush1.msra.mxu0 0.0
    %1267 = vmatprep.subr.mxu0 %v1233
    %1268 = vmatpush1.msra.mxu0 %v1232
    %1269 = vmatprep.subr.mxu0 %v1231
    %1270 = vmatpush1.msra.mxu0 %v1230
    %1271 = vmatprep.subr.mxu0 %v1229
    %1272 = vmatpush1.msra.mxu0 %v1228
    %1273 = vmatprep.subr.mxu0 %v1227
    %1274 = vmatpush1.msra.mxu0 %v1226
    %1275 = vmatprep.subr.mxu0 %v1225
    %1276 = vmatpush1.msra.mxu0 %v1224
    %1277 = vmatprep.subr.mxu0 %v1223
    %1278 = vmatpush1.msra.mxu0 %v1222
    %1279 = vmatprep.subr.mxu0 %v1221
    %1280 = vmatpush1.msra.mxu0 %v1220
    %1281 = vmatprep.subr.mxu0 %v1219
    %1282 = vmatpush1.msra.mxu0 %v1218
    %1283 = vmatprep.subr.mxu0 0.0
    %1284 = vmatpush2.msra.mxu0 0.0
    %1285 = vmatprep.subr.mxu0 0.0
    %1286 = vmatpush2.msra.mxu0 0.0
    %1287 = vmatprep.subr.mxu0 0.0
    %1288 = vmatpush2.msra.mxu0 0.0
    %1289 = vmatprep.subr.mxu0 0.0
    %1290 = vmatpush2.msra.mxu0 0.0
    %1291 = vmatprep.subr.mxu0 0.0
    %1292 = vmatpush2.msra.mxu0 0.0
    %1293 = vmatprep.subr.mxu0 0.0
    %1294 = vmatpush2.msra.mxu0 0.0
    %1295 = vmatprep.subr.mxu0 0.0
    %1296 = vmatpush2.msra.mxu0 0.0
    %1297 = vmatprep.subr.mxu0 0.0
    %1298 = vmatpush2.msra.mxu0 0.0
    %1299 = vmatprep.subr.mxu0 0.0
    %1300 = vmatpush2.msra.mxu0 0.0
    %1301 = vmatprep.subr.mxu0 0.0
    %1302 = vmatpush2.msra.mxu0 0.0
    %1303 = vmatprep.subr.mxu0 0.0
    %1304 = vmatpush2.msra.mxu0 0.0
    %1305 = vmatprep.subr.mxu0 0.0
    %1306 = vmatpush2.msra.mxu0 0.0
    %1307 = vmatprep.subr.mxu0 0.0
    %1308 = vmatpush2.msra.mxu0 0.0
    %1309 = vmatprep.subr.mxu0 0.0
    %1310 = vmatpush2.msra.mxu0 0.0
    %1311 = vmatprep.subr.mxu0 0.0
    %1312 = vmatpush2.msra.mxu0 0.0
    %1313 = vmatprep.subr.mxu0 0.0
    %1314 = vmatpush2.msra.mxu0 0.0
    %1315 = vmatprep.mubr.f32.mxu0 0.0
    %1316 = vmatmul.mubr.f32.gmra.mxu0 %v1240
    %v1317 = vpop.f32.mrf.mxu0
    %v1318 = vadd.f32 0.0, %v1317
    %v1319 = vpop.f32.mrf.mxu0
    %v1320 = vadd.f32 0.0, %v1319
    %1321 = vmatprep.mubr.f32.mxu0 0.0
    %1322 = vmatmul.mubr.f32.gmra.mxu0 %v1243
    %v1323 = vpop.f32.mrf.mxu0
    %v1324 = vadd.f32 0.0, %v1323
    %v1325 = vpop.f32.mrf.mxu0
    %v1326 = vadd.f32 0.0, %v1325
    %1327 = vmatprep.mubr.f32.mxu0 0.0
    %1328 = vmatmul.mubr.f32.gmra.mxu0 %v1246
    %v1329 = vpop.f32.mrf.mxu0
    %v1330 = vadd.f32 0.0, %v1329
    %v1331 = vpop.f32.mrf.mxu0
    %v1332 = vadd.f32 0.0, %v1331
    %1333 = vmatprep.mubr.f32.mxu0 0.0
    %1334 = vmatmul.mubr.f32.gmra.mxu0 %v1249
    %v1335 = vpop.f32.mrf.mxu0
    %v1336 = vadd.f32 0.0, %v1335
    %v1337 = vpop.f32.mrf.mxu0
    %v1338 = vadd.f32 0.0, %v1337
    %1339 = vdwg.mxu0
    %v1340 = vadd.f32 %v1148, %v1318
    %v1341 = vadd.f32 %v1149, %v1320
    %v1342 = vadd.f32 %v1150, %v1324
    %v1343 = vadd.f32 %v1151, %v1326
    %v1344 = vadd.f32 %v1152, %v1330
    %v1345 = vadd.f32 %v1153, %v1332
    %v1346 = vadd.f32 %v1154, %v1336
    %v1347 = vadd.f32 %v1155, %v1338
    %1348 = vrot.lane.b32.xlu0 %v658, 1
    %v1349 = vpop.permute.xlu0 %1348
    %1350 = vrot.lane.b32.xlu0 %v660, 1
    %v1351 = vpop.permute.xlu0 %1350
    %1352 = vrot.lane.b32.xlu0 %v662, 1
    %v1353 = vpop.permute.xlu0 %1352
    %1354 = vrot.lane.b32.xlu0 %v664, 1
    %v1355 = vpop.permute.xlu0 %1354
    %1356 = vrot.lane.b32.xlu0 %v666, 1
    %v1357 = vpop.permute.xlu0 %1356
    %1358 = vrot.lane.b32.xlu0 %v668, 1
    %v1359 = vpop.permute.xlu0 %1358
    %1360 = vrot.lane.b32.xlu0 %v670, 1
    %v1361 = vpop.permute.xlu0 %1360
    %1362 = vrot.lane.b32.xlu0 %v672, 1
    %v1363 = vpop.permute.xlu0 %1362
    %1364 = vrot.lane.b32.xlu0 %v659, 1
    %v1365 = vpop.permute.xlu0 %1364
    %1366 = vrot.lane.b32.xlu0 %v661, 1
    %v1367 = vpop.permute.xlu0 %1366
    %1368 = vrot.lane.b32.xlu0 %v663, 1
    %v1369 = vpop.permute.xlu0 %1368
    %1370 = vrot.lane.b32.xlu0 %v665, 1
    %v1371 = vpop.permute.xlu0 %1370
    %1372 = vrot.lane.b32.xlu0 %v667, 1
    %v1373 = vpop.permute.xlu0 %1372
    %1374 = vrot.lane.b32.xlu0 %v669, 1
    %v1375 = vpop.permute.xlu0 %1374
    %1376 = vrot.lane.b32.xlu0 %v671, 1
    %v1377 = vpop.permute.xlu0 %1376
    %1378 = vrot.lane.b32.xlu0 %v673, 1
    %v1379 = vpop.permute.xlu0 %1378
    %vm1380 = vcmp.lt.s32.totalorder %v712, 1
    %v1381 = vsel %vm1380, %v1349, %v1365
    %v1382 = vsel %vm1380, %v1351, %v1367
    %v1383 = vsel %vm1380, %v1353, %v1369
    %v1384 = vsel %vm1380, %v1355, %v1371
    %v1385 = vsel %vm1380, %v1357, %v1373
    %v1386 = vsel %vm1380, %v1359, %v1375
    %v1387 = vsel %vm1380, %v1361, %v1377
    %v1388 = vsel %vm1380, %v1363, %v1379
    %v1389 = vsel %vm1380, %v1365, %v1349
    %v1390 = vsel %vm1380, %v1367, %v1351
    %v1391 = vsel %vm1380, %v1369, %v1353
    %v1392 = vsel %vm1380, %v1371, %v1355
    %v1393 = vsel %vm1380, %v1373, %v1357
    %v1394 = vsel %vm1380, %v1375, %v1359
    %v1395 = vsel %vm1380, %v1377, %v1361
    %v1396 = vsel %vm1380, %v1379, %v1363
    %s1397 = scalar_lea.vmem %s4, 6
    %v1398 = vld [vmem:[%s1397] sm:$0x3]
    %v1400 = vlaneseq
    %v1401 = vshrl.u32 %v1400, 7
    %v1402 = vsub.s32 0, %v1401
    %v1403 = vrot.slane %v1398, %v1402
    %v1404 = vlaneseq
    %v1405 = vshrl.u32 %v1404, 7
    %v1406 = vsub.s32 1, %v1405
    %v1407 = vrot.slane %v1398, %v1406
    %v1410 = vmul.f32 %v1389, %v1403
    %v1411 = vmul.f32 %v1381, %v1407
    %v1412 = vmul.f32 %v1390, %v1403
    %v1413 = vmul.f32 %v1382, %v1407
    %v1414 = vmul.f32 %v1391, %v1403
    %v1415 = vmul.f32 %v1383, %v1407
    %v1416 = vmul.f32 %v1392, %v1403
    %v1417 = vmul.f32 %v1384, %v1407
    %v1418 = vmul.f32 %v1393, %v1403
    %v1419 = vmul.f32 %v1385, %v1407
    %v1420 = vmul.f32 %v1394, %v1403
    %v1421 = vmul.f32 %v1386, %v1407
    %v1422 = vmul.f32 %v1395, %v1403
    %v1423 = vmul.f32 %v1387, %v1407
    %v1424 = vmul.f32 %v1396, %v1403
    %v1425 = vmul.f32 %v1388, %v1407
    %s1426 = scalar_lea.vmem [#allocation5], 96
    %v1427 = vld [vmem:[%s1426] sm:$0xff]
    %v1428 = vld [vmem:[%s1426 + $0x8] sm:$0xff]
    %v1429 = vld [vmem:[%s1426 + $0x10] sm:$0xff]
    %v1430 = vld [vmem:[%s1426 + $0x18] sm:$0xff]
    %v1432 = vsel %vm143, %v1427, 0
    %v1435 = vsel %vm143, %v1428, 0
    %v1438 = vsel %vm143, %v1429, 0
    %v1441 = vsel %vm143, %v1430, 0
    %1443 = vmatprep.subr.mxu0 0.0
    %1444 = vmatpush1.msra.mxu0 0.0
    %1445 = vmatprep.subr.mxu0 0.0
    %1446 = vmatpush1.msra.mxu0 0.0
    %1447 = vmatprep.subr.mxu0 0.0
    %1448 = vmatpush1.msra.mxu0 0.0
    %1449 = vmatprep.subr.mxu0 0.0
    %1450 = vmatpush1.msra.mxu0 0.0
    %1451 = vmatprep.subr.mxu0 0.0
    %1452 = vmatpush1.msra.mxu0 0.0
    %1453 = vmatprep.subr.mxu0 0.0
    %1454 = vmatpush1.msra.mxu0 0.0
    %1455 = vmatprep.subr.mxu0 0.0
    %1456 = vmatpush1.msra.mxu0 0.0
    %1457 = vmatprep.subr.mxu0 0.0
    %1458 = vmatpush1.msra.mxu0 0.0
    %1459 = vmatprep.subr.mxu0 %v1425
    %1460 = vmatpush1.msra.mxu0 %v1424
    %1461 = vmatprep.subr.mxu0 %v1423
    %1462 = vmatpush1.msra.mxu0 %v1422
    %1463 = vmatprep.subr.mxu0 %v1421
    %1464 = vmatpush1.msra.mxu0 %v1420
    %1465 = vmatprep.subr.mxu0 %v1419
    %1466 = vmatpush1.msra.mxu0 %v1418
    %1467 = vmatprep.subr.mxu0 %v1417
    %1468 = vmatpush1.msra.mxu0 %v1416
    %1469 = vmatprep.subr.mxu0 %v1415
    %1470 = vmatpush1.msra.mxu0 %v1414
    %1471 = vmatprep.subr.mxu0 %v1413
    %1472 = vmatpush1.msra.mxu0 %v1412
    %1473 = vmatprep.subr.mxu0 %v1411
    %1474 = vmatpush1.msra.mxu0 %v1410
    %1475 = vmatprep.subr.mxu0 0.0
    %1476 = vmatpush2.msra.mxu0 0.0
    %1477 = vmatprep.subr.mxu0 0.0
    %1478 = vmatpush2.msra.mxu0 0.0
    %1479 = vmatprep.subr.mxu0 0.0
    %1480 = vmatpush2.msra.mxu0 0.0
    %1481 = vmatprep.subr.mxu0 0.0
    %1482 = vmatpush2.msra.mxu0 0.0
    %1483 = vmatprep.subr.mxu0 0.0
    %1484 = vmatpush2.msra.mxu0 0.0
    %1485 = vmatprep.subr.mxu0 0.0
    %1486 = vmatpush2.msra.mxu0 0.0
    %1487 = vmatprep.subr.mxu0 0.0
    %1488 = vmatpush2.msra.mxu0 0.0
    %1489 = vmatprep.subr.mxu0 0.0
    %1490 = vmatpush2.msra.mxu0 0.0
    %1491 = vmatprep.subr.mxu0 0.0
    %1492 = vmatpush2.msra.mxu0 0.0
    %1493 = vmatprep.subr.mxu0 0.0
    %1494 = vmatpush2.msra.mxu0 0.0
    %1495 = vmatprep.subr.mxu0 0.0
    %1496 = vmatpush2.msra.mxu0 0.0
    %1497 = vmatprep.subr.mxu0 0.0
    %1498 = vmatpush2.msra.mxu0 0.0
    %1499 = vmatprep.subr.mxu0 0.0
    %1500 = vmatpush2.msra.mxu0 0.0
    %1501 = vmatprep.subr.mxu0 0.0
    %1502 = vmatpush2.msra.mxu0 0.0
    %1503 = vmatprep.subr.mxu0 0.0
    %1504 = vmatpush2.msra.mxu0 0.0
    %1505 = vmatprep.subr.mxu0 0.0
    %1506 = vmatpush2.msra.mxu0 0.0
    %1507 = vmatprep.mubr.f32.mxu0 0.0
    %1508 = vmatmul.mubr.f32.gmra.mxu0 %v1432
    %v1509 = vpop.f32.mrf.mxu0
    %v1510 = vadd.f32 0.0, %v1509
    %v1511 = vpop.f32.mrf.mxu0
    %v1512 = vadd.f32 0.0, %v1511
    %1513 = vmatprep.mubr.f32.mxu0 0.0
    %1514 = vmatmul.mubr.f32.gmra.mxu0 %v1435
    %v1515 = vpop.f32.mrf.mxu0
    %v1516 = vadd.f32 0.0, %v1515
    %v1517 = vpop.f32.mrf.mxu0
    %v1518 = vadd.f32 0.0, %v1517
    %1519 = vmatprep.mubr.f32.mxu0 0.0
    %1520 = vmatmul.mubr.f32.gmra.mxu0 %v1438
    %v1521 = vpop.f32.mrf.mxu0
    %v1522 = vadd.f32 0.0, %v1521
    %v1523 = vpop.f32.mrf.mxu0
    %v1524 = vadd.f32 0.0, %v1523
    %1525 = vmatprep.mubr.f32.mxu0 0.0
    %1526 = vmatmul.mubr.f32.gmra.mxu0 %v1441
    %v1527 = vpop.f32.mrf.mxu0
    %v1528 = vadd.f32 0.0, %v1527
    %v1529 = vpop.f32.mrf.mxu0
    %v1530 = vadd.f32 0.0, %v1529
    %1531 = vdwg.mxu0
    %v1532 = vadd.f32 %v1340, %v1510
    %v1533 = vadd.f32 %v1341, %v1512
    %v1534 = vadd.f32 %v1342, %v1516
    %v1535 = vadd.f32 %v1343, %v1518
    %v1536 = vadd.f32 %v1344, %v1522
    %v1537 = vadd.f32 %v1345, %v1524
    %v1538 = vadd.f32 %v1346, %v1528
    %v1539 = vadd.f32 %v1347, %v1530
    %s1540 = scalar_lea.vmem [#allocation5], 128
    %v1541 = vld [vmem:[%s1540] sm:$0xff]
    %v1542 = vld [vmem:[%s1540 + $0x8] sm:$0xff]
    %v1543 = vld [vmem:[%s1540 + $0x10] sm:$0xff]
    %v1544 = vld [vmem:[%s1540 + $0x18] sm:$0xff]
    %v1546 = vsel %vm143, %v1541, 0
    %v1549 = vsel %vm143, %v1542, 0
    %v1552 = vsel %vm143, %v1543, 0
    %v1555 = vsel %vm143, %v1544, 0
    %1557 = vmatprep.subr.mxu0 0.0
    %1558 = vmatpush1.msra.mxu0 0.0
    %1559 = vmatprep.subr.mxu0 0.0
    %1560 = vmatpush1.msra.mxu0 0.0
    %1561 = vmatprep.subr.mxu0 0.0
    %1562 = vmatpush1.msra.mxu0 0.0
    %1563 = vmatprep.subr.mxu0 0.0
    %1564 = vmatpush1.msra.mxu0 0.0
    %1565 = vmatprep.subr.mxu0 0.0
    %1566 = vmatpush1.msra.mxu0 0.0
    %1567 = vmatprep.subr.mxu0 0.0
    %1568 = vmatpush1.msra.mxu0 0.0
    %1569 = vmatprep.subr.mxu0 0.0
    %1570 = vmatpush1.msra.mxu0 0.0
    %1571 = vmatprep.subr.mxu0 0.0
    %1572 = vmatpush1.msra.mxu0 0.0
    %1573 = vmatprep.subr.mxu0 %v673
    %1574 = vmatpush1.msra.mxu0 %v672
    %1575 = vmatprep.subr.mxu0 %v671
    %1576 = vmatpush1.msra.mxu0 %v670
    %1577 = vmatprep.subr.mxu0 %v669
    %1578 = vmatpush1.msra.mxu0 %v668
    %1579 = vmatprep.subr.mxu0 %v667
    %1580 = vmatpush1.msra.mxu0 %v666
    %1581 = vmatprep.subr.mxu0 %v665
    %1582 = vmatpush1.msra.mxu0 %v664
    %1583 = vmatprep.subr.mxu0 %v663
    %1584 = vmatpush1.msra.mxu0 %v662
    %1585 = vmatprep.subr.mxu0 %v661
    %1586 = vmatpush1.msra.mxu0 %v660
    %1587 = vmatprep.subr.mxu0 %v659
    %1588 = vmatpush1.msra.mxu0 %v658
    %1589 = vmatprep.subr.mxu0 0.0
    %1590 = vmatpush2.msra.mxu0 0.0
    %1591 = vmatprep.subr.mxu0 0.0
    %1592 = vmatpush2.msra.mxu0 0.0
    %1593 = vmatprep.subr.mxu0 0.0
    %1594 = vmatpush2.msra.mxu0 0.0
    %1595 = vmatprep.subr.mxu0 0.0
    %1596 = vmatpush2.msra.mxu0 0.0
    %1597 = vmatprep.subr.mxu0 0.0
    %1598 = vmatpush2.msra.mxu0 0.0
    %1599 = vmatprep.subr.mxu0 0.0
    %1600 = vmatpush2.msra.mxu0 0.0
    %1601 = vmatprep.subr.mxu0 0.0
    %1602 = vmatpush2.msra.mxu0 0.0
    %1603 = vmatprep.subr.mxu0 0.0
    %1604 = vmatpush2.msra.mxu0 0.0
    %1605 = vmatprep.subr.mxu0 0.0
    %1606 = vmatpush2.msra.mxu0 0.0
    %1607 = vmatprep.subr.mxu0 0.0
    %1608 = vmatpush2.msra.mxu0 0.0
    %1609 = vmatprep.subr.mxu0 0.0
    %1610 = vmatpush2.msra.mxu0 0.0
    %1611 = vmatprep.subr.mxu0 0.0
    %1612 = vmatpush2.msra.mxu0 0.0
    %1613 = vmatprep.subr.mxu0 0.0
    %1614 = vmatpush2.msra.mxu0 0.0
    %1615 = vmatprep.subr.mxu0 0.0
    %1616 = vmatpush2.msra.mxu0 0.0
    %1617 = vmatprep.subr.mxu0 0.0
    %1618 = vmatpush2.msra.mxu0 0.0
    %1619 = vmatprep.subr.mxu0 0.0
    %1620 = vmatpush2.msra.mxu0 0.0
    %1621 = vmatprep.mubr.f32.mxu0 0.0
    %1622 = vmatmul.mubr.f32.gmra.mxu0 %v1546
    %v1623 = vpop.f32.mrf.mxu0
    %v1624 = vadd.f32 0.0, %v1623
    %v1625 = vpop.f32.mrf.mxu0
    %v1626 = vadd.f32 0.0, %v1625
    %1627 = vmatprep.mubr.f32.mxu0 0.0
    %1628 = vmatmul.mubr.f32.gmra.mxu0 %v1549
    %v1629 = vpop.f32.mrf.mxu0
    %v1630 = vadd.f32 0.0, %v1629
    %v1631 = vpop.f32.mrf.mxu0
    %v1632 = vadd.f32 0.0, %v1631
    %1633 = vmatprep.mubr.f32.mxu0 0.0
    %1634 = vmatmul.mubr.f32.gmra.mxu0 %v1552
    %v1635 = vpop.f32.mrf.mxu0
    %v1636 = vadd.f32 0.0, %v1635
    %v1637 = vpop.f32.mrf.mxu0
    %v1638 = vadd.f32 0.0, %v1637
    %1639 = vmatprep.mubr.f32.mxu0 0.0
    %1640 = vmatmul.mubr.f32.gmra.mxu0 %v1555
    %v1641 = vpop.f32.mrf.mxu0
    %v1642 = vadd.f32 0.0, %v1641
    %v1643 = vpop.f32.mrf.mxu0
    %v1644 = vadd.f32 0.0, %v1643
    %1645 = vdwg.mxu0
    %v1646 = vadd.f32 %v1532, %v1624
    %v1647 = vadd.f32 %v1533, %v1626
    %v1648 = vadd.f32 %v1534, %v1630
    %v1649 = vadd.f32 %v1535, %v1632
    %v1650 = vadd.f32 %v1536, %v1636
    %v1651 = vadd.f32 %v1537, %v1638
    %v1652 = vadd.f32 %v1538, %v1642
    %v1653 = vadd.f32 %v1539, %v1644
    %1654 = vrot.lane.b32.xlu0 %v658, 127
    %v1655 = vpop.permute.xlu0 %1654
    %1656 = vrot.lane.b32.xlu0 %v660, 127
    %v1657 = vpop.permute.xlu0 %1656
    %1658 = vrot.lane.b32.xlu0 %v662, 127
    %v1659 = vpop.permute.xlu0 %1658
    %1660 = vrot.lane.b32.xlu0 %v664, 127
    %v1661 = vpop.permute.xlu0 %1660
    %1662 = vrot.lane.b32.xlu0 %v666, 127
    %v1663 = vpop.permute.xlu0 %1662
    %1664 = vrot.lane.b32.xlu0 %v668, 127
    %v1665 = vpop.permute.xlu0 %1664
    %1666 = vrot.lane.b32.xlu0 %v670, 127
    %v1667 = vpop.permute.xlu0 %1666
    %1668 = vrot.lane.b32.xlu0 %v672, 127
    %v1669 = vpop.permute.xlu0 %1668
    %1670 = vrot.lane.b32.xlu0 %v659, 127
    %v1671 = vpop.permute.xlu0 %1670
    %1672 = vrot.lane.b32.xlu0 %v661, 127
    %v1673 = vpop.permute.xlu0 %1672
    %1674 = vrot.lane.b32.xlu0 %v663, 127
    %v1675 = vpop.permute.xlu0 %1674
    %1676 = vrot.lane.b32.xlu0 %v665, 127
    %v1677 = vpop.permute.xlu0 %1676
    %1678 = vrot.lane.b32.xlu0 %v667, 127
    %v1679 = vpop.permute.xlu0 %1678
    %1680 = vrot.lane.b32.xlu0 %v669, 127
    %v1681 = vpop.permute.xlu0 %1680
    %1682 = vrot.lane.b32.xlu0 %v671, 127
    %v1683 = vpop.permute.xlu0 %1682
    %1684 = vrot.lane.b32.xlu0 %v673, 127
    %v1685 = vpop.permute.xlu0 %1684
    %vm1686 = vcmp.lt.s32.totalorder %v712, 127
    %v1687 = vsel %vm1686, %v1655, %v1671
    %v1688 = vsel %vm1686, %v1657, %v1673
    %v1689 = vsel %vm1686, %v1659, %v1675
    %v1690 = vsel %vm1686, %v1661, %v1677
    %v1691 = vsel %vm1686, %v1663, %v1679
    %v1692 = vsel %vm1686, %v1665, %v1681
    %v1693 = vsel %vm1686, %v1667, %v1683
    %v1694 = vsel %vm1686, %v1669, %v1685
    %v1695 = vsel %vm1686, %v1671, %v1655
    %v1696 = vsel %vm1686, %v1673, %v1657
    %v1697 = vsel %vm1686, %v1675, %v1659
    %v1698 = vsel %vm1686, %v1677, %v1661
    %v1699 = vsel %vm1686, %v1679, %v1663
    %v1700 = vsel %vm1686, %v1681, %v1665
    %v1701 = vsel %vm1686, %v1683, %v1667
    %v1702 = vsel %vm1686, %v1685, %v1669
    %s1703 = scalar_lea.vmem %s4, 10
    %v1704 = vld [vmem:[%s1703] sm:$0x3]
    %v1706 = vlaneseq
    %v1707 = vshrl.u32 %v1706, 7
    %v1708 = vsub.s32 0, %v1707
    %v1709 = vrot.slane %v1704, %v1708
    %v1710 = vlaneseq
    %v1711 = vshrl.u32 %v1710, 7
    %v1712 = vsub.s32 1, %v1711
    %v1713 = vrot.slane %v1704, %v1712
    %v1716 = vmul.f32 %v1687, %v1709
    %v1717 = vmul.f32 %v1695, %v1713
    %v1718 = vmul.f32 %v1688, %v1709
    %v1719 = vmul.f32 %v1696, %v1713
    %v1720 = vmul.f32 %v1689, %v1709
    %v1721 = vmul.f32 %v1697, %v1713
    %v1722 = vmul.f32 %v1690, %v1709
    %v1723 = vmul.f32 %v1698, %v1713
    %v1724 = vmul.f32 %v1691, %v1709
    %v1725 = vmul.f32 %v1699, %v1713
    %v1726 = vmul.f32 %v1692, %v1709
    %v1727 = vmul.f32 %v1700, %v1713
    %v1728 = vmul.f32 %v1693, %v1709
    %v1729 = vmul.f32 %v1701, %v1713
    %v1730 = vmul.f32 %v1694, %v1709
    %v1731 = vmul.f32 %v1702, %v1713
    %s1732 = scalar_lea.vmem [#allocation5], 160
    %v1733 = vld [vmem:[%s1732] sm:$0xff]
    %v1734 = vld [vmem:[%s1732 + $0x8] sm:$0xff]
    %v1735 = vld [vmem:[%s1732 + $0x10] sm:$0xff]
    %v1736 = vld [vmem:[%s1732 + $0x18] sm:$0xff]
    %v1738 = vsel %vm143, %v1733, 0
    %v1741 = vsel %vm143, %v1734, 0
    %v1744 = vsel %vm143, %v1735, 0
    %v1747 = vsel %vm143, %v1736, 0
    %1749 = vmatprep.subr.mxu0 0.0
    %1750 = vmatpush1.msra.mxu0 0.0
    %1751 = vmatprep.subr.mxu0 0.0
    %1752 = vmatpush1.msra.mxu0 0.0
    %1753 = vmatprep.subr.mxu0 0.0
    %1754 = vmatpush1.msra.mxu0 0.0
    %1755 = vmatprep.subr.mxu0 0.0
    %1756 = vmatpush1.msra.mxu0 0.0
    %1757 = vmatprep.subr.mxu0 0.0
    %1758 = vmatpush1.msra.mxu0 0.0
    %1759 = vmatprep.subr.mxu0 0.0
    %1760 = vmatpush1.msra.mxu0 0.0
    %1761 = vmatprep.subr.mxu0 0.0
    %1762 = vmatpush1.msra.mxu0 0.0
    %1763 = vmatprep.subr.mxu0 0.0
    %1764 = vmatpush1.msra.mxu0 0.0
    %1765 = vmatprep.subr.mxu0 %v1731
    %1766 = vmatpush1.msra.mxu0 %v1730
    %1767 = vmatprep.subr.mxu0 %v1729
    %1768 = vmatpush1.msra.mxu0 %v1728
    %1769 = vmatprep.subr.mxu0 %v1727
    %1770 = vmatpush1.msra.mxu0 %v1726
    %1771 = vmatprep.subr.mxu0 %v1725
    %1772 = vmatpush1.msra.mxu0 %v1724
    %1773 = vmatprep.subr.mxu0 %v1723
    %1774 = vmatpush1.msra.mxu0 %v1722
    %1775 = vmatprep.subr.mxu0 %v1721
    %1776 = vmatpush1.msra.mxu0 %v1720
    %1777 = vmatprep.subr.mxu0 %v1719
    %1778 = vmatpush1.msra.mxu0 %v1718
    %1779 = vmatprep.subr.mxu0 %v1717
    %1780 = vmatpush1.msra.mxu0 %v1716
    %1781 = vmatprep.subr.mxu0 0.0
    %1782 = vmatpush2.msra.mxu0 0.0
    %1783 = vmatprep.subr.mxu0 0.0
    %1784 = vmatpush2.msra.mxu0 0.0
    %1785 = vmatprep.subr.mxu0 0.0
    %1786 = vmatpush2.msra.mxu0 0.0
    %1787 = vmatprep.subr.mxu0 0.0
    %1788 = vmatpush2.msra.mxu0 0.0
    %1789 = vmatprep.subr.mxu0 0.0
    %1790 = vmatpush2.msra.mxu0 0.0
    %1791 = vmatprep.subr.mxu0 0.0
    %1792 = vmatpush2.msra.mxu0 0.0
    %1793 = vmatprep.subr.mxu0 0.0
    %1794 = vmatpush2.msra.mxu0 0.0
    %1795 = vmatprep.subr.mxu0 0.0
    %1796 = vmatpush2.msra.mxu0 0.0
    %1797 = vmatprep.subr.mxu0 0.0
    %1798 = vmatpush2.msra.mxu0 0.0
    %1799 = vmatprep.subr.mxu0 0.0
    %1800 = vmatpush2.msra.mxu0 0.0
    %1801 = vmatprep.subr.mxu0 0.0
    %1802 = vmatpush2.msra.mxu0 0.0
    %1803 = vmatprep.subr.mxu0 0.0
    %1804 = vmatpush2.msra.mxu0 0.0
    %1805 = vmatprep.subr.mxu0 0.0
    %1806 = vmatpush2.msra.mxu0 0.0
    %1807 = vmatprep.subr.mxu0 0.0
    %1808 = vmatpush2.msra.mxu0 0.0
    %1809 = vmatprep.subr.mxu0 0.0
    %1810 = vmatpush2.msra.mxu0 0.0
    %1811 = vmatprep.subr.mxu0 0.0
    %1812 = vmatpush2.msra.mxu0 0.0
    %1813 = vmatprep.mubr.f32.mxu0 0.0
    %1814 = vmatmul.mubr.f32.gmra.mxu0 %v1738
    %v1815 = vpop.f32.mrf.mxu0
    %v1816 = vadd.f32 0.0, %v1815
    %v1817 = vpop.f32.mrf.mxu0
    %v1818 = vadd.f32 0.0, %v1817
    %1819 = vmatprep.mubr.f32.mxu0 0.0
    %1820 = vmatmul.mubr.f32.gmra.mxu0 %v1741
    %v1821 = vpop.f32.mrf.mxu0
    %v1822 = vadd.f32 0.0, %v1821
    %v1823 = vpop.f32.mrf.mxu0
    %v1824 = vadd.f32 0.0, %v1823
    %1825 = vmatprep.mubr.f32.mxu0 0.0
    %1826 = vmatmul.mubr.f32.gmra.mxu0 %v1744
    %v1827 = vpop.f32.mrf.mxu0
    %v1828 = vadd.f32 0.0, %v1827
    %v1829 = vpop.f32.mrf.mxu0
    %v1830 = vadd.f32 0.0, %v1829
    %1831 = vmatprep.mubr.f32.mxu0 0.0
    %1832 = vmatmul.mubr.f32.gmra.mxu0 %v1747
    %v1833 = vpop.f32.mrf.mxu0
    %v1834 = vadd.f32 0.0, %v1833
    %v1835 = vpop.f32.mrf.mxu0
    %v1836 = vadd.f32 0.0, %v1835
    %1837 = vdwg.mxu0
    %v1838 = vadd.f32 %v1646, %v1816
    %v1839 = vadd.f32 %v1647, %v1818
    %v1840 = vadd.f32 %v1648, %v1822
    %v1841 = vadd.f32 %v1649, %v1824
    %v1842 = vadd.f32 %v1650, %v1828
    %v1843 = vadd.f32 %v1651, %v1830
    %v1844 = vadd.f32 %v1652, %v1834
    %v1845 = vadd.f32 %v1653, %v1836
    %1846 = vrot.lane.b32.xlu0 %v658, 113
    %v1847 = vpop.permute.xlu0 %1846
    %1848 = vrot.lane.b32.xlu0 %v660, 113
    %v1849 = vpop.permute.xlu0 %1848
    %1850 = vrot.lane.b32.xlu0 %v662, 113
    %v1851 = vpop.permute.xlu0 %1850
    %1852 = vrot.lane.b32.xlu0 %v664, 113
    %v1853 = vpop.permute.xlu0 %1852
    %1854 = vrot.lane.b32.xlu0 %v666, 113
    %v1855 = vpop.permute.xlu0 %1854
    %1856 = vrot.lane.b32.xlu0 %v668, 113
    %v1857 = vpop.permute.xlu0 %1856
    %1858 = vrot.lane.b32.xlu0 %v670, 113
    %v1859 = vpop.permute.xlu0 %1858
    %1860 = vrot.lane.b32.xlu0 %v672, 113
    %v1861 = vpop.permute.xlu0 %1860
    %1862 = vrot.lane.b32.xlu0 %v659, 113
    %v1863 = vpop.permute.xlu0 %1862
    %1864 = vrot.lane.b32.xlu0 %v661, 113
    %v1865 = vpop.permute.xlu0 %1864
    %1866 = vrot.lane.b32.xlu0 %v663, 113
    %v1867 = vpop.permute.xlu0 %1866
    %1868 = vrot.lane.b32.xlu0 %v665, 113
    %v1869 = vpop.permute.xlu0 %1868
    %1870 = vrot.lane.b32.xlu0 %v667, 113
    %v1871 = vpop.permute.xlu0 %1870
    %1872 = vrot.lane.b32.xlu0 %v669, 113
    %v1873 = vpop.permute.xlu0 %1872
    %1874 = vrot.lane.b32.xlu0 %v671, 113
    %v1875 = vpop.permute.xlu0 %1874
    %1876 = vrot.lane.b32.xlu0 %v673, 113
    %v1877 = vpop.permute.xlu0 %1876
    %vm1878 = vcmp.lt.s32.totalorder %v712, 113
    %v1879 = vsel %vm1878, %v1847, %v1863
    %v1880 = vsel %vm1878, %v1849, %v1865
    %v1881 = vsel %vm1878, %v1851, %v1867
    %v1882 = vsel %vm1878, %v1853, %v1869
    %v1883 = vsel %vm1878, %v1855, %v1871
    %v1884 = vsel %vm1878, %v1857, %v1873
    %v1885 = vsel %vm1878, %v1859, %v1875
    %v1886 = vsel %vm1878, %v1861, %v1877
    %v1887 = vsel %vm1878, %v1863, %v1847
    %v1888 = vsel %vm1878, %v1865, %v1849
    %v1889 = vsel %vm1878, %v1867, %v1851
    %v1890 = vsel %vm1878, %v1869, %v1853
    %v1891 = vsel %vm1878, %v1871, %v1855
    %v1892 = vsel %vm1878, %v1873, %v1857
    %v1893 = vsel %vm1878, %v1875, %v1859
    %v1894 = vsel %vm1878, %v1877, %v1861
    %s1895 = scalar_lea.vmem %s4, 12
    %v1896 = vld [vmem:[%s1895] sm:$0x3]
    %v1898 = vlaneseq
    %v1899 = vshrl.u32 %v1898, 7
    %v1900 = vsub.s32 0, %v1899
    %v1901 = vrot.slane %v1896, %v1900
    %v1902 = vlaneseq
    %v1903 = vshrl.u32 %v1902, 7
    %v1904 = vsub.s32 1, %v1903
    %v1905 = vrot.slane %v1896, %v1904
    %v1908 = vmul.f32 %v1879, %v1901
    %v1909 = vmul.f32 %v1887, %v1905
    %v1910 = vmul.f32 %v1880, %v1901
    %v1911 = vmul.f32 %v1888, %v1905
    %v1912 = vmul.f32 %v1881, %v1901
    %v1913 = vmul.f32 %v1889, %v1905
    %v1914 = vmul.f32 %v1882, %v1901
    %v1915 = vmul.f32 %v1890, %v1905
    %v1916 = vmul.f32 %v1883, %v1901
    %v1917 = vmul.f32 %v1891, %v1905
    %v1918 = vmul.f32 %v1884, %v1901
    %v1919 = vmul.f32 %v1892, %v1905
    %v1920 = vmul.f32 %v1885, %v1901
    %v1921 = vmul.f32 %v1893, %v1905
    %v1922 = vmul.f32 %v1886, %v1901
    %v1923 = vmul.f32 %v1894, %v1905
    %s1924 = scalar_lea.vmem [#allocation5], 192
    %v1925 = vld [vmem:[%s1924] sm:$0xff]
    %v1926 = vld [vmem:[%s1924 + $0x8] sm:$0xff]
    %v1927 = vld [vmem:[%s1924 + $0x10] sm:$0xff]
    %v1928 = vld [vmem:[%s1924 + $0x18] sm:$0xff]
    %v1930 = vsel %vm143, %v1925, 0
    %v1933 = vsel %vm143, %v1926, 0
    %v1936 = vsel %vm143, %v1927, 0
    %v1939 = vsel %vm143, %v1928, 0
    %1941 = vmatprep.subr.mxu0 0.0
    %1942 = vmatpush1.msra.mxu0 0.0
    %1943 = vmatprep.subr.mxu0 0.0
    %1944 = vmatpush1.msra.mxu0 0.0
    %1945 = vmatprep.subr.mxu0 0.0
    %1946 = vmatpush1.msra.mxu0 0.0
    %1947 = vmatprep.subr.mxu0 0.0
    %1948 = vmatpush1.msra.mxu0 0.0
    %1949 = vmatprep.subr.mxu0 0.0
    %1950 = vmatpush1.msra.mxu0 0.0
    %1951 = vmatprep.subr.mxu0 0.0
    %1952 = vmatpush1.msra.mxu0 0.0
    %1953 = vmatprep.subr.mxu0 0.0
    %1954 = vmatpush1.msra.mxu0 0.0
    %1955 = vmatprep.subr.mxu0 0.0
    %1956 = vmatpush1.msra.mxu0 0.0
    %1957 = vmatprep.subr.mxu0 %v1923
    %1958 = vmatpush1.msra.mxu0 %v1922
    %1959 = vmatprep.subr.mxu0 %v1921
    %1960 = vmatpush1.msra.mxu0 %v1920
    %1961 = vmatprep.subr.mxu0 %v1919
    %1962 = vmatpush1.msra.mxu0 %v1918
    %1963 = vmatprep.subr.mxu0 %v1917
    %1964 = vmatpush1.msra.mxu0 %v1916
    %1965 = vmatprep.subr.mxu0 %v1915
    %1966 = vmatpush1.msra.mxu0 %v1914
    %1967 = vmatprep.subr.mxu0 %v1913
    %1968 = vmatpush1.msra.mxu0 %v1912
    %1969 = vmatprep.subr.mxu0 %v1911
    %1970 = vmatpush1.msra.mxu0 %v1910
    %1971 = vmatprep.subr.mxu0 %v1909
    %1972 = vmatpush1.msra.mxu0 %v1908
    %1973 = vmatprep.subr.mxu0 0.0
    %1974 = vmatpush2.msra.mxu0 0.0
    %1975 = vmatprep.subr.mxu0 0.0
    %1976 = vmatpush2.msra.mxu0 0.0
    %1977 = vmatprep.subr.mxu0 0.0
    %1978 = vmatpush2.msra.mxu0 0.0
    %1979 = vmatprep.subr.mxu0 0.0
    %1980 = vmatpush2.msra.mxu0 0.0
    %1981 = vmatprep.subr.mxu0 0.0
    %1982 = vmatpush2.msra.mxu0 0.0
    %1983 = vmatprep.subr.mxu0 0.0
    %1984 = vmatpush2.msra.mxu0 0.0
    %1985 = vmatprep.subr.mxu0 0.0
    %1986 = vmatpush2.msra.mxu0 0.0
    %1987 = vmatprep.subr.mxu0 0.0
    %1988 = vmatpush2.msra.mxu0 0.0
    %1989 = vmatprep.subr.mxu0 0.0
    %1990 = vmatpush2.msra.mxu0 0.0
    %1991 = vmatprep.subr.mxu0 0.0
    %1992 = vmatpush2.msra.mxu0 0.0
    %1993 = vmatprep.subr.mxu0 0.0
    %1994 = vmatpush2.msra.mxu0 0.0
    %1995 = vmatprep.subr.mxu0 0.0
    %1996 = vmatpush2.msra.mxu0 0.0
    %1997 = vmatprep.subr.mxu0 0.0
    %1998 = vmatpush2.msra.mxu0 0.0
    %1999 = vmatprep.subr.mxu0 0.0
    %2000 = vmatpush2.msra.mxu0 0.0
    %2001 = vmatprep.subr.mxu0 0.0
    %2002 = vmatpush2.msra.mxu0 0.0
    %2003 = vmatprep.subr.mxu0 0.0
    %2004 = vmatpush2.msra.mxu0 0.0
    %2005 = vmatprep.mubr.f32.mxu0 0.0
    %2006 = vmatmul.mubr.f32.gmra.mxu0 %v1930
    %v2007 = vpop.f32.mrf.mxu0
    %v2008 = vadd.f32 0.0, %v2007
    %v2009 = vpop.f32.mrf.mxu0
    %v2010 = vadd.f32 0.0, %v2009
    %2011 = vmatprep.mubr.f32.mxu0 0.0
    %2012 = vmatmul.mubr.f32.gmra.mxu0 %v1933
    %v2013 = vpop.f32.mrf.mxu0
    %v2014 = vadd.f32 0.0, %v2013
    %v2015 = vpop.f32.mrf.mxu0
    %v2016 = vadd.f32 0.0, %v2015
    %2017 = vmatprep.mubr.f32.mxu0 0.0
    %2018 = vmatmul.mubr.f32.gmra.mxu0 %v1936
    %v2019 = vpop.f32.mrf.mxu0
    %v2020 = vadd.f32 0.0, %v2019
    %v2021 = vpop.f32.mrf.mxu0
    %v2022 = vadd.f32 0.0, %v2021
    %2023 = vmatprep.mubr.f32.mxu0 0.0
    %2024 = vmatmul.mubr.f32.gmra.mxu0 %v1939
    %v2025 = vpop.f32.mrf.mxu0
    %v2026 = vadd.f32 0.0, %v2025
    %v2027 = vpop.f32.mrf.mxu0
    %v2028 = vadd.f32 0.0, %v2027
    %2029 = vdwg.mxu0
    %v2030 = vadd.f32 %v1838, %v2008
    %v2031 = vadd.f32 %v1839, %v2010
    %v2032 = vadd.f32 %v1840, %v2014
    %v2033 = vadd.f32 %v1841, %v2016
    %v2034 = vadd.f32 %v1842, %v2020
    %v2035 = vadd.f32 %v1843, %v2022
    %v2036 = vadd.f32 %v1844, %v2026
    %v2037 = vadd.f32 %v1845, %v2028
    %2038 = vrot.lane.b32.xlu0 %v658, 112
    %v2039 = vpop.permute.xlu0 %2038
    %2040 = vrot.lane.b32.xlu0 %v660, 112
    %v2041 = vpop.permute.xlu0 %2040
    %2042 = vrot.lane.b32.xlu0 %v662, 112
    %v2043 = vpop.permute.xlu0 %2042
    %2044 = vrot.lane.b32.xlu0 %v664, 112
    %v2045 = vpop.permute.xlu0 %2044
    %2046 = vrot.lane.b32.xlu0 %v666, 112
    %v2047 = vpop.permute.xlu0 %2046
    %2048 = vrot.lane.b32.xlu0 %v668, 112
    %v2049 = vpop.permute.xlu0 %2048
    %2050 = vrot.lane.b32.xlu0 %v670, 112
    %v2051 = vpop.permute.xlu0 %2050
    %2052 = vrot.lane.b32.xlu0 %v672, 112
    %v2053 = vpop.permute.xlu0 %2052
    %2054 = vrot.lane.b32.xlu0 %v659, 112
    %v2055 = vpop.permute.xlu0 %2054
    %2056 = vrot.lane.b32.xlu0 %v661, 112
    %v2057 = vpop.permute.xlu0 %2056
    %2058 = vrot.lane.b32.xlu0 %v663, 112
    %v2059 = vpop.permute.xlu0 %2058
    %2060 = vrot.lane.b32.xlu0 %v665, 112
    %v2061 = vpop.permute.xlu0 %2060
    %2062 = vrot.lane.b32.xlu0 %v667, 112
    %v2063 = vpop.permute.xlu0 %2062
    %2064 = vrot.lane.b32.xlu0 %v669, 112
    %v2065 = vpop.permute.xlu0 %2064
    %2066 = vrot.lane.b32.xlu0 %v671, 112
    %v2067 = vpop.permute.xlu0 %2066
    %2068 = vrot.lane.b32.xlu0 %v673, 112
    %v2069 = vpop.permute.xlu0 %2068
    %vm2070 = vcmp.lt.s32.totalorder %v712, 112
    %v2071 = vsel %vm2070, %v2039, %v2055
    %v2072 = vsel %vm2070, %v2041, %v2057
    %v2073 = vsel %vm2070, %v2043, %v2059
    %v2074 = vsel %vm2070, %v2045, %v2061
    %v2075 = vsel %vm2070, %v2047, %v2063
    %v2076 = vsel %vm2070, %v2049, %v2065
    %v2077 = vsel %vm2070, %v2051, %v2067
    %v2078 = vsel %vm2070, %v2053, %v2069
    %v2079 = vsel %vm2070, %v2055, %v2039
    %v2080 = vsel %vm2070, %v2057, %v2041
    %v2081 = vsel %vm2070, %v2059, %v2043
    %v2082 = vsel %vm2070, %v2061, %v2045
    %v2083 = vsel %vm2070, %v2063, %v2047
    %v2084 = vsel %vm2070, %v2065, %v2049
    %v2085 = vsel %vm2070, %v2067, %v2051
    %v2086 = vsel %vm2070, %v2069, %v2053
    %s2087 = scalar_lea.vmem %s4, 14
    %v2088 = vld [vmem:[%s2087] sm:$0x3]
    %v2090 = vlaneseq
    %v2091 = vshrl.u32 %v2090, 7
    %v2092 = vsub.s32 0, %v2091
    %v2093 = vrot.slane %v2088, %v2092
    %v2094 = vlaneseq
    %v2095 = vshrl.u32 %v2094, 7
    %v2096 = vsub.s32 1, %v2095
    %v2097 = vrot.slane %v2088, %v2096
    %v2100 = vmul.f32 %v2071, %v2093
    %v2101 = vmul.f32 %v2079, %v2097
    %v2102 = vmul.f32 %v2072, %v2093
    %v2103 = vmul.f32 %v2080, %v2097
    %v2104 = vmul.f32 %v2073, %v2093
    %v2105 = vmul.f32 %v2081, %v2097
    %v2106 = vmul.f32 %v2074, %v2093
    %v2107 = vmul.f32 %v2082, %v2097
    %v2108 = vmul.f32 %v2075, %v2093
    %v2109 = vmul.f32 %v2083, %v2097
    %v2110 = vmul.f32 %v2076, %v2093
    %v2111 = vmul.f32 %v2084, %v2097
    %v2112 = vmul.f32 %v2077, %v2093
    %v2113 = vmul.f32 %v2085, %v2097
    %v2114 = vmul.f32 %v2078, %v2093
    %v2115 = vmul.f32 %v2086, %v2097
    %s2116 = scalar_lea.vmem [#allocation5], 224
    %v2117 = vld [vmem:[%s2116] sm:$0xff]
    %v2118 = vld [vmem:[%s2116 + $0x8] sm:$0xff]
    %v2119 = vld [vmem:[%s2116 + $0x10] sm:$0xff]
    %v2120 = vld [vmem:[%s2116 + $0x18] sm:$0xff]
    %v2122 = vsel %vm143, %v2117, 0
    %v2125 = vsel %vm143, %v2118, 0
    %v2128 = vsel %vm143, %v2119, 0
    %v2131 = vsel %vm143, %v2120, 0
    %2133 = vmatprep.subr.mxu0 0.0
    %2134 = vmatpush1.msra.mxu0 0.0
    %2135 = vmatprep.subr.mxu0 0.0
    %2136 = vmatpush1.msra.mxu0 0.0
    %2137 = vmatprep.subr.mxu0 0.0
    %2138 = vmatpush1.msra.mxu0 0.0
    %2139 = vmatprep.subr.mxu0 0.0
    %2140 = vmatpush1.msra.mxu0 0.0
    %2141 = vmatprep.subr.mxu0 0.0
    %2142 = vmatpush1.msra.mxu0 0.0
    %2143 = vmatprep.subr.mxu0 0.0
    %2144 = vmatpush1.msra.mxu0 0.0
    %2145 = vmatprep.subr.mxu0 0.0
    %2146 = vmatpush1.msra.mxu0 0.0
    %2147 = vmatprep.subr.mxu0 0.0
    %2148 = vmatpush1.msra.mxu0 0.0
    %2149 = vmatprep.subr.mxu0 %v2115
    %2150 = vmatpush1.msra.mxu0 %v2114
    %2151 = vmatprep.subr.mxu0 %v2113
    %2152 = vmatpush1.msra.mxu0 %v2112
    %2153 = vmatprep.subr.mxu0 %v2111
    %2154 = vmatpush1.msra.mxu0 %v2110
    %2155 = vmatprep.subr.mxu0 %v2109
    %2156 = vmatpush1.msra.mxu0 %v2108
    %2157 = vmatprep.subr.mxu0 %v2107
    %2158 = vmatpush1.msra.mxu0 %v2106
    %2159 = vmatprep.subr.mxu0 %v2105
    %2160 = vmatpush1.msra.mxu0 %v2104
    %2161 = vmatprep.subr.mxu0 %v2103
    %2162 = vmatpush1.msra.mxu0 %v2102
    %2163 = vmatprep.subr.mxu0 %v2101
    %2164 = vmatpush1.msra.mxu0 %v2100
    %2165 = vmatprep.subr.mxu0 0.0
    %2166 = vmatpush2.msra.mxu0 0.0
    %2167 = vmatprep.subr.mxu0 0.0
    %2168 = vmatpush2.msra.mxu0 0.0
    %2169 = vmatprep.subr.mxu0 0.0
    %2170 = vmatpush2.msra.mxu0 0.0
    %2171 = vmatprep.subr.mxu0 0.0
    %2172 = vmatpush2.msra.mxu0 0.0
    %2173 = vmatprep.subr.mxu0 0.0
    %2174 = vmatpush2.msra.mxu0 0.0
    %2175 = vmatprep.subr.mxu0 0.0
    %2176 = vmatpush2.msra.mxu0 0.0
    %2177 = vmatprep.subr.mxu0 0.0
    %2178 = vmatpush2.msra.mxu0 0.0
    %2179 = vmatprep.subr.mxu0 0.0
    %2180 = vmatpush2.msra.mxu0 0.0
    %2181 = vmatprep.subr.mxu0 0.0
    %2182 = vmatpush2.msra.mxu0 0.0
    %2183 = vmatprep.subr.mxu0 0.0
    %2184 = vmatpush2.msra.mxu0 0.0
    %2185 = vmatprep.subr.mxu0 0.0
    %2186 = vmatpush2.msra.mxu0 0.0
    %2187 = vmatprep.subr.mxu0 0.0
    %2188 = vmatpush2.msra.mxu0 0.0
    %2189 = vmatprep.subr.mxu0 0.0
    %2190 = vmatpush2.msra.mxu0 0.0
    %2191 = vmatprep.subr.mxu0 0.0
    %2192 = vmatpush2.msra.mxu0 0.0
    %2193 = vmatprep.subr.mxu0 0.0
    %2194 = vmatpush2.msra.mxu0 0.0
    %2195 = vmatprep.subr.mxu0 0.0
    %2196 = vmatpush2.msra.mxu0 0.0
    %2197 = vmatprep.mubr.f32.mxu0 0.0
    %2198 = vmatmul.mubr.f32.gmra.mxu0 %v2122
    %v2199 = vpop.f32.mrf.mxu0
    %v2200 = vadd.f32 0.0, %v2199
    %v2201 = vpop.f32.mrf.mxu0
    %v2202 = vadd.f32 0.0, %v2201
    %2203 = vmatprep.mubr.f32.mxu0 0.0
    %2204 = vmatmul.mubr.f32.gmra.mxu0 %v2125
    %v2205 = vpop.f32.mrf.mxu0
    %v2206 = vadd.f32 0.0, %v2205
    %v2207 = vpop.f32.mrf.mxu0
    %v2208 = vadd.f32 0.0, %v2207
    %2209 = vmatprep.mubr.f32.mxu0 0.0
    %2210 = vmatmul.mubr.f32.gmra.mxu0 %v2128
    %v2211 = vpop.f32.mrf.mxu0
    %v2212 = vadd.f32 0.0, %v2211
    %v2213 = vpop.f32.mrf.mxu0
    %v2214 = vadd.f32 0.0, %v2213
    %2215 = vmatprep.mubr.f32.mxu0 0.0
    %2216 = vmatmul.mubr.f32.gmra.mxu0 %v2131
    %v2217 = vpop.f32.mrf.mxu0
    %v2218 = vadd.f32 0.0, %v2217
    %v2219 = vpop.f32.mrf.mxu0
    %v2220 = vadd.f32 0.0, %v2219
    %2221 = vdwg.mxu0
    %v2222 = vadd.f32 %v2030, %v2200
    %v2223 = vadd.f32 %v2031, %v2202
    %v2224 = vadd.f32 %v2032, %v2206
    %v2225 = vadd.f32 %v2033, %v2208
    %v2226 = vadd.f32 %v2034, %v2212
    %v2227 = vadd.f32 %v2035, %v2214
    %v2228 = vadd.f32 %v2036, %v2218
    %v2229 = vadd.f32 %v2037, %v2220
    %2230 = vrot.lane.b32.xlu0 %v658, 111
    %v2231 = vpop.permute.xlu0 %2230
    %2232 = vrot.lane.b32.xlu0 %v660, 111
    %v2233 = vpop.permute.xlu0 %2232
    %2234 = vrot.lane.b32.xlu0 %v662, 111
    %v2235 = vpop.permute.xlu0 %2234
    %2236 = vrot.lane.b32.xlu0 %v664, 111
    %v2237 = vpop.permute.xlu0 %2236
    %2238 = vrot.lane.b32.xlu0 %v666, 111
    %v2239 = vpop.permute.xlu0 %2238
    %2240 = vrot.lane.b32.xlu0 %v668, 111
    %v2241 = vpop.permute.xlu0 %2240
    %2242 = vrot.lane.b32.xlu0 %v670, 111
    %v2243 = vpop.permute.xlu0 %2242
    %2244 = vrot.lane.b32.xlu0 %v672, 111
    %v2245 = vpop.permute.xlu0 %2244
    %2246 = vrot.lane.b32.xlu0 %v659, 111
    %v2247 = vpop.permute.xlu0 %2246
    %2248 = vrot.lane.b32.xlu0 %v661, 111
    %v2249 = vpop.permute.xlu0 %2248
    %2250 = vrot.lane.b32.xlu0 %v663, 111
    %v2251 = vpop.permute.xlu0 %2250
    %2252 = vrot.lane.b32.xlu0 %v665, 111
    %v2253 = vpop.permute.xlu0 %2252
    %2254 = vrot.lane.b32.xlu0 %v667, 111
    %v2255 = vpop.permute.xlu0 %2254
    %2256 = vrot.lane.b32.xlu0 %v669, 111
    %v2257 = vpop.permute.xlu0 %2256
    %2258 = vrot.lane.b32.xlu0 %v671, 111
    %v2259 = vpop.permute.xlu0 %2258
    %2260 = vrot.lane.b32.xlu0 %v673, 111
    %v2261 = vpop.permute.xlu0 %2260
    %vm2262 = vcmp.lt.s32.totalorder %v712, 111
    %v2263 = vsel %vm2262, %v2231, %v2247
    %v2264 = vsel %vm2262, %v2233, %v2249
    %v2265 = vsel %vm2262, %v2235, %v2251
    %v2266 = vsel %vm2262, %v2237, %v2253
    %v2267 = vsel %vm2262, %v2239, %v2255
    %v2268 = vsel %vm2262, %v2241, %v2257
    %v2269 = vsel %vm2262, %v2243, %v2259
    %v2270 = vsel %vm2262, %v2245, %v2261
    %v2271 = vsel %vm2262, %v2247, %v2231
    %v2272 = vsel %vm2262, %v2249, %v2233
    %v2273 = vsel %vm2262, %v2251, %v2235
    %v2274 = vsel %vm2262, %v2253, %v2237
    %v2275 = vsel %vm2262, %v2255, %v2239
    %v2276 = vsel %vm2262, %v2257, %v2241
    %v2277 = vsel %vm2262, %v2259, %v2243
    %v2278 = vsel %vm2262, %v2261, %v2245
    %s2279 = scalar_lea.vmem %s4, 16
    %v2280 = vld [vmem:[%s2279] sm:$0x3]
    %v2282 = vlaneseq
    %v2283 = vshrl.u32 %v2282, 7
    %v2284 = vsub.s32 0, %v2283
    %v2285 = vrot.slane %v2280, %v2284
    %v2286 = vlaneseq
    %v2287 = vshrl.u32 %v2286, 7
    %v2288 = vsub.s32 1, %v2287
    %v2289 = vrot.slane %v2280, %v2288
    %v2292 = vmul.f32 %v2263, %v2285
    %v2293 = vmul.f32 %v2271, %v2289
    %v2294 = vmul.f32 %v2264, %v2285
    %v2295 = vmul.f32 %v2272, %v2289
    %v2296 = vmul.f32 %v2265, %v2285
    %v2297 = vmul.f32 %v2273, %v2289
    %v2298 = vmul.f32 %v2266, %v2285
    %v2299 = vmul.f32 %v2274, %v2289
    %v2300 = vmul.f32 %v2267, %v2285
    %v2301 = vmul.f32 %v2275, %v2289
    %v2302 = vmul.f32 %v2268, %v2285
    %v2303 = vmul.f32 %v2276, %v2289
    %v2304 = vmul.f32 %v2269, %v2285
    %v2305 = vmul.f32 %v2277, %v2289
    %v2306 = vmul.f32 %v2270, %v2285
    %v2307 = vmul.f32 %v2278, %v2289
    %s2308 = scalar_lea.vmem [#allocation5], 256
    %v2309 = vld [vmem:[%s2308] sm:$0xff]
    %v2310 = vld [vmem:[%s2308 + $0x8] sm:$0xff]
    %v2311 = vld [vmem:[%s2308 + $0x10] sm:$0xff]
    %v2312 = vld [vmem:[%s2308 + $0x18] sm:$0xff]
    %v2314 = vsel %vm143, %v2309, 0
    %v2317 = vsel %vm143, %v2310, 0
    %v2320 = vsel %vm143, %v2311, 0
    %v2323 = vsel %vm143, %v2312, 0
    %2325 = vmatprep.subr.mxu0 0.0
    %2326 = vmatpush1.msra.mxu0 0.0
    %2327 = vmatprep.subr.mxu0 0.0
    %2328 = vmatpush1.msra.mxu0 0.0
    %2329 = vmatprep.subr.mxu0 0.0
    %2330 = vmatpush1.msra.mxu0 0.0
    %2331 = vmatprep.subr.mxu0 0.0
    %2332 = vmatpush1.msra.mxu0 0.0
    %2333 = vmatprep.subr.mxu0 0.0
    %2334 = vmatpush1.msra.mxu0 0.0
    %2335 = vmatprep.subr.mxu0 0.0
    %2336 = vmatpush1.msra.mxu0 0.0
    %2337 = vmatprep.subr.mxu0 0.0
    %2338 = vmatpush1.msra.mxu0 0.0
    %2339 = vmatprep.subr.mxu0 0.0
    %2340 = vmatpush1.msra.mxu0 0.0
    %2341 = vmatprep.subr.mxu0 %v2307
    %2342 = vmatpush1.msra.mxu0 %v2306
    %2343 = vmatprep.subr.mxu0 %v2305
    %2344 = vmatpush1.msra.mxu0 %v2304
    %2345 = vmatprep.subr.mxu0 %v2303
    %2346 = vmatpush1.msra.mxu0 %v2302
    %2347 = vmatprep.subr.mxu0 %v2301
    %2348 = vmatpush1.msra.mxu0 %v2300
    %2349 = vmatprep.subr.mxu0 %v2299
    %2350 = vmatpush1.msra.mxu0 %v2298
    %2351 = vmatprep.subr.mxu0 %v2297
    %2352 = vmatpush1.msra.mxu0 %v2296
    %2353 = vmatprep.subr.mxu0 %v2295
    %2354 = vmatpush1.msra.mxu0 %v2294
    %2355 = vmatprep.subr.mxu0 %v2293
    %2356 = vmatpush1.msra.mxu0 %v2292
    %2357 = vmatprep.subr.mxu0 0.0
    %2358 = vmatpush2.msra.mxu0 0.0
    %2359 = vmatprep.subr.mxu0 0.0
    %2360 = vmatpush2.msra.mxu0 0.0
    %2361 = vmatprep.subr.mxu0 0.0
    %2362 = vmatpush2.msra.mxu0 0.0
    %2363 = vmatprep.subr.mxu0 0.0
    %2364 = vmatpush2.msra.mxu0 0.0
    %2365 = vmatprep.subr.mxu0 0.0
    %2366 = vmatpush2.msra.mxu0 0.0
    %2367 = vmatprep.subr.mxu0 0.0
    %2368 = vmatpush2.msra.mxu0 0.0
    %2369 = vmatprep.subr.mxu0 0.0
    %2370 = vmatpush2.msra.mxu0 0.0
    %2371 = vmatprep.subr.mxu0 0.0
    %2372 = vmatpush2.msra.mxu0 0.0
    %2373 = vmatprep.subr.mxu0 0.0
    %2374 = vmatpush2.msra.mxu0 0.0
    %2375 = vmatprep.subr.mxu0 0.0
    %2376 = vmatpush2.msra.mxu0 0.0
    %2377 = vmatprep.subr.mxu0 0.0
    %2378 = vmatpush2.msra.mxu0 0.0
    %2379 = vmatprep.subr.mxu0 0.0
    %2380 = vmatpush2.msra.mxu0 0.0
    %2381 = vmatprep.subr.mxu0 0.0
    %2382 = vmatpush2.msra.mxu0 0.0
    %2383 = vmatprep.subr.mxu0 0.0
    %2384 = vmatpush2.msra.mxu0 0.0
    %2385 = vmatprep.subr.mxu0 0.0
    %2386 = vmatpush2.msra.mxu0 0.0
    %2387 = vmatprep.subr.mxu0 0.0
    %2388 = vmatpush2.msra.mxu0 0.0
    %2389 = vmatprep.mubr.f32.mxu0 0.0
    %2390 = vmatmul.mubr.f32.gmra.mxu0 %v2314
    %v2391 = vpop.f32.mrf.mxu0
    %v2392 = vadd.f32 0.0, %v2391
    %v2393 = vpop.f32.mrf.mxu0
    %v2394 = vadd.f32 0.0, %v2393
    %2395 = vmatprep.mubr.f32.mxu0 0.0
    %2396 = vmatmul.mubr.f32.gmra.mxu0 %v2317
    %v2397 = vpop.f32.mrf.mxu0
    %v2398 = vadd.f32 0.0, %v2397
    %v2399 = vpop.f32.mrf.mxu0
    %v2400 = vadd.f32 0.0, %v2399
    %2401 = vmatprep.mubr.f32.mxu0 0.0
    %2402 = vmatmul.mubr.f32.gmra.mxu0 %v2320
    %v2403 = vpop.f32.mrf.mxu0
    %v2404 = vadd.f32 0.0, %v2403
    %v2405 = vpop.f32.mrf.mxu0
    %v2406 = vadd.f32 0.0, %v2405
    %2407 = vmatprep.mubr.f32.mxu0 0.0
    %2408 = vmatmul.mubr.f32.gmra.mxu0 %v2323
    %v2409 = vpop.f32.mrf.mxu0
    %v2410 = vadd.f32 0.0, %v2409
    %v2411 = vpop.f32.mrf.mxu0
    %v2412 = vadd.f32 0.0, %v2411
    %2413 = vdwg.mxu0
    %v2414 = vadd.f32 %v2222, %v2392
    %v2415 = vadd.f32 %v2223, %v2394
    %v2416 = vadd.f32 %v2224, %v2398
    %v2417 = vadd.f32 %v2225, %v2400
    %v2418 = vadd.f32 %v2226, %v2404
    %v2419 = vadd.f32 %v2227, %v2406
    %v2420 = vadd.f32 %v2228, %v2410
    %v2421 = vadd.f32 %v2229, %v2412
    %v2422 = vld [vmem:[%s6] sm:$0xff]
    %v2423 = vld [vmem:[%s6 + $0x8] sm:$0xff]
    %v2424 = vld [vmem:[%s6 + $0x10] sm:$0xff]
    %v2425 = vld [vmem:[%s6 + $0x18] sm:$0xff]
    %2427 = vset.pattern.permute.xlu0 0
    %2428 = vperm.xlu0 %2427, %v2422
    %v2429 = vpop.permute.xlu0 %2428
    %2432 = vset.pattern.permute.xlu0 0
    %2433 = vperm.xlu0 %2432, %v2423
    %v2434 = vpop.permute.xlu0 %2433
    %2437 = vset.pattern.permute.xlu0 0
    %2438 = vperm.xlu0 %2437, %v2424
    %v2439 = vpop.permute.xlu0 %2438
    %2442 = vset.pattern.permute.xlu0 0
    %2443 = vperm.xlu0 %2442, %v2425
    %v2444 = vpop.permute.xlu0 %2443
    %v2446 = vadd.f32 %v2414, %v2429
    %v2447 = vadd.f32 %v2415, %v2429
    %v2448 = vadd.f32 %v2416, %v2434
    %v2449 = vadd.f32 %v2417, %v2434
    %v2450 = vadd.f32 %v2418, %v2439
    %v2451 = vadd.f32 %v2419, %v2439
    %v2452 = vadd.f32 %v2420, %v2444
    %v2453 = vadd.f32 %v2421, %v2444
    %2454 = vst [vmem:[#allocation7] sm:$0xff] %v2446
    %2455 = vst [vmem:[#allocation7 + $0x8] sm:$0xff] %v2447
    %2456 = vst [vmem:[#allocation7 + $0x10] sm:$0xff] %v2448
    %2457 = vst [vmem:[#allocation7 + $0x18] sm:$0xff] %v2449
    %2458 = vst [vmem:[#allocation7 + $0x20] sm:$0xff] %v2450
    %2459 = vst [vmem:[#allocation7 + $0x28] sm:$0xff] %v2451
    %2460 = vst [vmem:[#allocation7 + $0x30] sm:$0xff] %v2452
    %2461 = vst [vmem:[#allocation7 + $0x38] sm:$0xff] %v2453
    %s2462 = scalar_lea.vmem [#allocation2], 128
    %v2463 = vld [vmem:[%s2462] sm:$0xff]
    %v2464 = vld [vmem:[%s2462 + $0x8] sm:$0xff]
    %v2465 = vld [vmem:[%s2462 + $0x10] sm:$0xff]
    %v2466 = vld [vmem:[%s2462 + $0x18] sm:$0xff]
    %v2467 = vld [vmem:[%s2462 + $0x20] sm:$0xff]
    %v2468 = vld [vmem:[%s2462 + $0x28] sm:$0xff]
    %v2469 = vld [vmem:[%s2462 + $0x30] sm:$0xff]
    %v2470 = vld [vmem:[%s2462 + $0x38] sm:$0xff]
    %v2471 = vld [vmem:[%s2462 + $0x40] sm:$0xff]
    %v2472 = vld [vmem:[%s2462 + $0x48] sm:$0xff]
    %v2473 = vld [vmem:[%s2462 + $0x50] sm:$0xff]
    %v2474 = vld [vmem:[%s2462 + $0x58] sm:$0xff]
    %v2475 = vld [vmem:[%s2462 + $0x60] sm:$0xff]
    %v2476 = vld [vmem:[%s2462 + $0x68] sm:$0xff]
    %v2477 = vld [vmem:[%s2462 + $0x70] sm:$0xff]
    %v2478 = vld [vmem:[%s2462 + $0x78] sm:$0xff]
    %v2479 = vadd.f32 %v2463, %v2464
    %2480 = vadd.xlane.f32.xlu0 %v2479
    %v2481 = vpop.xlane.xlu0 %2480
    %v2482 = vadd.f32 %v2465, %v2466
    %2483 = vadd.xlane.f32.xlu0 %v2482
    %v2484 = vpop.xlane.xlu0 %2483
    %v2485 = vadd.f32 %v2467, %v2468
    %2486 = vadd.xlane.f32.xlu0 %v2485
    %v2487 = vpop.xlane.xlu0 %2486
    %v2488 = vadd.f32 %v2469, %v2470
    %2489 = vadd.xlane.f32.xlu0 %v2488
    %v2490 = vpop.xlane.xlu0 %2489
    %v2491 = vadd.f32 %v2471, %v2472
    %2492 = vadd.xlane.f32.xlu0 %v2491
    %v2493 = vpop.xlane.xlu0 %2492
    %v2494 = vadd.f32 %v2473, %v2474
    %2495 = vadd.xlane.f32.xlu0 %v2494
    %v2496 = vpop.xlane.xlu0 %2495
    %v2497 = vadd.f32 %v2475, %v2476
    %2498 = vadd.xlane.f32.xlu0 %v2497
    %v2499 = vpop.xlane.xlu0 %2498
    %v2500 = vadd.f32 %v2477, %v2478
    %2501 = vadd.xlane.f32.xlu0 %v2500
    %v2502 = vpop.xlane.xlu0 %2501
    %v2503 = vmul.f32 %v2463, %v2463
    %v2504 = vmul.f32 %v2464, %v2464
    %v2505 = vmul.f32 %v2465, %v2465
    %v2506 = vmul.f32 %v2466, %v2466
    %v2507 = vmul.f32 %v2467, %v2467
    %v2508 = vmul.f32 %v2468, %v2468
    %v2509 = vmul.f32 %v2469, %v2469
    %v2510 = vmul.f32 %v2470, %v2470
    %v2511 = vmul.f32 %v2471, %v2471
    %v2512 = vmul.f32 %v2472, %v2472
    %v2513 = vmul.f32 %v2473, %v2473
    %v2514 = vmul.f32 %v2474, %v2474
    %v2515 = vmul.f32 %v2475, %v2475
    %v2516 = vmul.f32 %v2476, %v2476
    %v2517 = vmul.f32 %v2477, %v2477
    %v2518 = vmul.f32 %v2478, %v2478
    %v2519 = vadd.f32 %v2503, %v2504
    %2520 = vadd.xlane.f32.xlu0 %v2519
    %v2521 = vpop.xlane.xlu0 %2520
    %v2522 = vadd.f32 %v2505, %v2506
    %2523 = vadd.xlane.f32.xlu0 %v2522
    %v2524 = vpop.xlane.xlu0 %2523
    %v2525 = vadd.f32 %v2507, %v2508
    %2526 = vadd.xlane.f32.xlu0 %v2525
    %v2527 = vpop.xlane.xlu0 %2526
    %v2528 = vadd.f32 %v2509, %v2510
    %2529 = vadd.xlane.f32.xlu0 %v2528
    %v2530 = vpop.xlane.xlu0 %2529
    %v2531 = vadd.f32 %v2511, %v2512
    %2532 = vadd.xlane.f32.xlu0 %v2531
    %v2533 = vpop.xlane.xlu0 %2532
    %v2534 = vadd.f32 %v2513, %v2514
    %2535 = vadd.xlane.f32.xlu0 %v2534
    %v2536 = vpop.xlane.xlu0 %2535
    %v2537 = vadd.f32 %v2515, %v2516
    %2538 = vadd.xlane.f32.xlu0 %v2537
    %v2539 = vpop.xlane.xlu0 %2538
    %v2540 = vadd.f32 %v2517, %v2518
    %2541 = vadd.xlane.f32.xlu0 %v2540
    %v2542 = vpop.xlane.xlu0 %2541
    %v2543 = vld [vmem:[%s3] sm:$0xff]
    %v2544 = vld [vmem:[%s3 + $0x8] sm:$0xff]
    %v2545 = vld [vmem:[%s3 + $0x10] sm:$0xff]
    %v2546 = vld [vmem:[%s3 + $0x18] sm:$0xff]
    %v2547 = vld [vmem:[%s3 + $0x20] sm:$0xff]
    %v2548 = vld [vmem:[%s3 + $0x28] sm:$0xff]
    %v2549 = vld [vmem:[%s3 + $0x30] sm:$0xff]
    %v2550 = vld [vmem:[%s3 + $0x38] sm:$0xff]
    %v2552 = vsel %vm143, %v2543, 0
    %v2555 = vsel %vm143, %v2544, 0
    %v2558 = vsel %vm143, %v2545, 0
    %v2561 = vsel %vm143, %v2546, 0
    %v2564 = vsel %vm143, %v2547, 0
    %v2567 = vsel %vm143, %v2548, 0
    %v2570 = vsel %vm143, %v2549, 0
    %v2573 = vsel %vm143, %v2550, 0
    %2575 = vmatprep.subr.mxu0 0.0
    %2576 = vmatpush1.msra.mxu0 0.0
    %2577 = vmatprep.subr.mxu0 0.0
    %2578 = vmatpush1.msra.mxu0 0.0
    %2579 = vmatprep.subr.mxu0 0.0
    %2580 = vmatpush1.msra.mxu0 0.0
    %2581 = vmatprep.subr.mxu0 0.0
    %2582 = vmatpush1.msra.mxu0 0.0
    %2583 = vmatprep.subr.mxu0 0.0
    %2584 = vmatpush1.msra.mxu0 0.0
    %2585 = vmatprep.subr.mxu0 0.0
    %2586 = vmatpush1.msra.mxu0 0.0
    %2587 = vmatprep.subr.mxu0 0.0
    %2588 = vmatpush1.msra.mxu0 0.0
    %2589 = vmatprep.subr.mxu0 0.0
    %2590 = vmatpush1.msra.mxu0 0.0
    %2591 = vmatprep.subr.mxu0 0.0
    %2592 = vmatpush1.msra.mxu0 %v2502
    %2593 = vmatprep.subr.mxu0 0.0
    %2594 = vmatpush1.msra.mxu0 %v2499
    %2595 = vmatprep.subr.mxu0 0.0
    %2596 = vmatpush1.msra.mxu0 %v2496
    %2597 = vmatprep.subr.mxu0 0.0
    %2598 = vmatpush1.msra.mxu0 %v2493
    %2599 = vmatprep.subr.mxu0 0.0
    %2600 = vmatpush1.msra.mxu0 %v2490
    %2601 = vmatprep.subr.mxu0 0.0
    %2602 = vmatpush1.msra.mxu0 %v2487
    %2603 = vmatprep.subr.mxu0 0.0
    %2604 = vmatpush1.msra.mxu0 %v2484
    %2605 = vmatprep.subr.mxu0 0.0
    %2606 = vmatpush1.msra.mxu0 %v2481
    %2607 = vmatprep.subr.mxu0 0.0
    %2608 = vmatpush2.msra.mxu0 0.0
    %2609 = vmatprep.subr.mxu0 0.0
    %2610 = vmatpush2.msra.mxu0 0.0
    %2611 = vmatprep.subr.mxu0 0.0
    %2612 = vmatpush2.msra.mxu0 0.0
    %2613 = vmatprep.subr.mxu0 0.0
    %2614 = vmatpush2.msra.mxu0 0.0
    %2615 = vmatprep.subr.mxu0 0.0
    %2616 = vmatpush2.msra.mxu0 0.0
    %2617 = vmatprep.subr.mxu0 0.0
    %2618 = vmatpush2.msra.mxu0 0.0
    %2619 = vmatprep.subr.mxu0 0.0
    %2620 = vmatpush2.msra.mxu0 0.0
    %2621 = vmatprep.subr.mxu0 0.0
    %2622 = vmatpush2.msra.mxu0 0.0
    %2623 = vmatprep.subr.mxu0 0.0
    %2624 = vmatpush2.msra.mxu0 0.0
    %2625 = vmatprep.subr.mxu0 0.0
    %2626 = vmatpush2.msra.mxu0 0.0
    %2627 = vmatprep.subr.mxu0 0.0
    %2628 = vmatpush2.msra.mxu0 0.0
    %2629 = vmatprep.subr.mxu0 0.0
    %2630 = vmatpush2.msra.mxu0 0.0
    %2631 = vmatprep.subr.mxu0 0.0
    %2632 = vmatpush2.msra.mxu0 0.0
    %2633 = vmatprep.subr.mxu0 0.0
    %2634 = vmatpush2.msra.mxu0 0.0
    %2635 = vmatprep.subr.mxu0 0.0
    %2636 = vmatpush2.msra.mxu0 0.0
    %2637 = vmatprep.subr.mxu0 0.0
    %2638 = vmatpush2.msra.mxu0 0.0
    %2639 = vmatprep.mubr.f32.mxu0 0.0
    %2640 = vmatmul.mubr.f32.gmra.mxu0 %v2552
    %v2641 = vpop.f32.mrf.mxu0
    %v2642 = vadd.f32 0.0, %v2641
    %v2643 = vpop.f32.mrf.mxu0
    %2644 = vmatprep.mubr.f32.mxu0 0.0
    %2645 = vmatmul.mubr.f32.gmra.mxu0 %v2555
    %v2646 = vpop.f32.mrf.mxu0
    %v2647 = vadd.f32 0.0, %v2646
    %v2648 = vpop.f32.mrf.mxu0
    %2649 = vmatprep.mubr.f32.mxu0 0.0
    %2650 = vmatmul.mubr.f32.gmra.mxu0 %v2558
    %v2651 = vpop.f32.mrf.mxu0
    %v2652 = vadd.f32 0.0, %v2651
    %v2653 = vpop.f32.mrf.mxu0
    %2654 = vmatprep.mubr.f32.mxu0 0.0
    %2655 = vmatmul.mubr.f32.gmra.mxu0 %v2561
    %v2656 = vpop.f32.mrf.mxu0
    %v2657 = vadd.f32 0.0, %v2656
    %v2658 = vpop.f32.mrf.mxu0
    %2659 = vmatprep.mubr.f32.mxu0 0.0
    %2660 = vmatmul.mubr.f32.gmra.mxu0 %v2564
    %v2661 = vpop.f32.mrf.mxu0
    %v2662 = vadd.f32 0.0, %v2661
    %v2663 = vpop.f32.mrf.mxu0
    %2664 = vmatprep.mubr.f32.mxu0 0.0
    %2665 = vmatmul.mubr.f32.gmra.mxu0 %v2567
    %v2666 = vpop.f32.mrf.mxu0
    %v2667 = vadd.f32 0.0, %v2666
    %v2668 = vpop.f32.mrf.mxu0
    %2669 = vmatprep.mubr.f32.mxu0 0.0
    %2670 = vmatmul.mubr.f32.gmra.mxu0 %v2570
    %v2671 = vpop.f32.mrf.mxu0
    %v2672 = vadd.f32 0.0, %v2671
    %v2673 = vpop.f32.mrf.mxu0
    %2674 = vmatprep.mubr.f32.mxu0 0.0
    %2675 = vmatmul.mubr.f32.gmra.mxu0 %v2573
    %v2676 = vpop.f32.mrf.mxu0
    %v2677 = vadd.f32 0.0, %v2676
    %v2678 = vpop.f32.mrf.mxu0
    %2679 = vdwg.mxu0
    %2680 = vmatprep.subr.mxu0 0.0
    %2681 = vmatpush1.msra.mxu0 0.0
    %2682 = vmatprep.subr.mxu0 0.0
    %2683 = vmatpush1.msra.mxu0 0.0
    %2684 = vmatprep.subr.mxu0 0.0
    %2685 = vmatpush1.msra.mxu0 0.0
    %2686 = vmatprep.subr.mxu0 0.0
    %2687 = vmatpush1.msra.mxu0 0.0
    %2688 = vmatprep.subr.mxu0 0.0
    %2689 = vmatpush1.msra.mxu0 0.0
    %2690 = vmatprep.subr.mxu0 0.0
    %2691 = vmatpush1.msra.mxu0 0.0
    %2692 = vmatprep.subr.mxu0 0.0
    %2693 = vmatpush1.msra.mxu0 0.0
    %2694 = vmatprep.subr.mxu0 0.0
    %2695 = vmatpush1.msra.mxu0 0.0
    %2696 = vmatprep.subr.mxu0 0.0
    %2697 = vmatpush1.msra.mxu0 %v2542
    %2698 = vmatprep.subr.mxu0 0.0
    %2699 = vmatpush1.msra.mxu0 %v2539
    %2700 = vmatprep.subr.mxu0 0.0
    %2701 = vmatpush1.msra.mxu0 %v2536
    %2702 = vmatprep.subr.mxu0 0.0
    %2703 = vmatpush1.msra.mxu0 %v2533
    %2704 = vmatprep.subr.mxu0 0.0
    %2705 = vmatpush1.msra.mxu0 %v2530
    %2706 = vmatprep.subr.mxu0 0.0
    %2707 = vmatpush1.msra.mxu0 %v2527
    %2708 = vmatprep.subr.mxu0 0.0
    %2709 = vmatpush1.msra.mxu0 %v2524
    %2710 = vmatprep.subr.mxu0 0.0
    %2711 = vmatpush1.msra.mxu0 %v2521
    %2712 = vmatprep.subr.mxu0 0.0
    %2713 = vmatpush2.msra.mxu0 0.0
    %2714 = vmatprep.subr.mxu0 0.0
    %2715 = vmatpush2.msra.mxu0 0.0
    %2716 = vmatprep.subr.mxu0 0.0
    %2717 = vmatpush2.msra.mxu0 0.0
    %2718 = vmatprep.subr.mxu0 0.0
    %2719 = vmatpush2.msra.mxu0 0.0
    %2720 = vmatprep.subr.mxu0 0.0
    %2721 = vmatpush2.msra.mxu0 0.0
    %2722 = vmatprep.subr.mxu0 0.0
    %2723 = vmatpush2.msra.mxu0 0.0
    %2724 = vmatprep.subr.mxu0 0.0
    %2725 = vmatpush2.msra.mxu0 0.0
    %2726 = vmatprep.subr.mxu0 0.0
    %2727 = vmatpush2.msra.mxu0 0.0
    %2728 = vmatprep.subr.mxu0 0.0
    %2729 = vmatpush2.msra.mxu0 0.0
    %2730 = vmatprep.subr.mxu0 0.0
    %2731 = vmatpush2.msra.mxu0 0.0
    %2732 = vmatprep.subr.mxu0 0.0
    %2733 = vmatpush2.msra.mxu0 0.0
    %2734 = vmatprep.subr.mxu0 0.0
    %2735 = vmatpush2.msra.mxu0 0.0
    %2736 = vmatprep.subr.mxu0 0.0
    %2737 = vmatpush2.msra.mxu0 0.0
    %2738 = vmatprep.subr.mxu0 0.0
    %2739 = vmatpush2.msra.mxu0 0.0
    %2740 = vmatprep.subr.mxu0 0.0
    %2741 = vmatpush2.msra.mxu0 0.0
    %2742 = vmatprep.subr.mxu0 0.0
    %2743 = vmatpush2.msra.mxu0 0.0
    %2744 = vmatprep.mubr.f32.mxu0 0.0
    %2745 = vmatmul.mubr.f32.gmra.mxu0 %v2552
    %v2746 = vpop.f32.mrf.mxu0
    %v2747 = vadd.f32 0.0, %v2746
    %v2748 = vpop.f32.mrf.mxu0
    %2749 = vmatprep.mubr.f32.mxu0 0.0
    %2750 = vmatmul.mubr.f32.gmra.mxu0 %v2555
    %v2751 = vpop.f32.mrf.mxu0
    %v2752 = vadd.f32 0.0, %v2751
    %v2753 = vpop.f32.mrf.mxu0
    %2754 = vmatprep.mubr.f32.mxu0 0.0
    %2755 = vmatmul.mubr.f32.gmra.mxu0 %v2558
    %v2756 = vpop.f32.mrf.mxu0
    %v2757 = vadd.f32 0.0, %v2756
    %v2758 = vpop.f32.mrf.mxu0
    %2759 = vmatprep.mubr.f32.mxu0 0.0
    %2760 = vmatmul.mubr.f32.gmra.mxu0 %v2561
    %v2761 = vpop.f32.mrf.mxu0
    %v2762 = vadd.f32 0.0, %v2761
    %v2763 = vpop.f32.mrf.mxu0
    %2764 = vmatprep.mubr.f32.mxu0 0.0
    %2765 = vmatmul.mubr.f32.gmra.mxu0 %v2564
    %v2766 = vpop.f32.mrf.mxu0
    %v2767 = vadd.f32 0.0, %v2766
    %v2768 = vpop.f32.mrf.mxu0
    %2769 = vmatprep.mubr.f32.mxu0 0.0
    %2770 = vmatmul.mubr.f32.gmra.mxu0 %v2567
    %v2771 = vpop.f32.mrf.mxu0
    %v2772 = vadd.f32 0.0, %v2771
    %v2773 = vpop.f32.mrf.mxu0
    %2774 = vmatprep.mubr.f32.mxu0 0.0
    %2775 = vmatmul.mubr.f32.gmra.mxu0 %v2570
    %v2776 = vpop.f32.mrf.mxu0
    %v2777 = vadd.f32 0.0, %v2776
    %v2778 = vpop.f32.mrf.mxu0
    %2779 = vmatprep.mubr.f32.mxu0 0.0
    %2780 = vmatmul.mubr.f32.gmra.mxu0 %v2573
    %v2781 = vpop.f32.mrf.mxu0
    %v2782 = vadd.f32 0.0, %v2781
    %v2783 = vpop.f32.mrf.mxu0
    %2784 = vdwg.mxu0
    %v2785 = vmul.f32 %v2642, %v2642
    %v2786 = vmul.f32 %v2647, %v2647
    %v2787 = vmul.f32 %v2652, %v2652
    %v2788 = vmul.f32 %v2657, %v2657
    %v2789 = vmul.f32 %v2662, %v2662
    %v2790 = vmul.f32 %v2667, %v2667
    %v2791 = vmul.f32 %v2672, %v2672
    %v2792 = vmul.f32 %v2677, %v2677
    %v2793 = vsub.f32 %v2747, %v2785
    %v2794 = vsub.f32 %v2752, %v2786
    %v2795 = vsub.f32 %v2757, %v2787
    %v2796 = vsub.f32 %v2762, %v2788
    %v2797 = vsub.f32 %v2767, %v2789
    %v2798 = vsub.f32 %v2772, %v2790
    %v2799 = vsub.f32 %v2777, %v2791
    %v2800 = vsub.f32 %v2782, %v2792
    %v2801 = vadd.f32 %v2793, 1e-05
    %v2802 = vadd.f32 %v2794, 1e-05
    %v2803 = vadd.f32 %v2795, 1e-05
    %v2804 = vadd.f32 %v2796, 1e-05
    %v2805 = vadd.f32 %v2797, 1e-05
    %v2806 = vadd.f32 %v2798, 1e-05
    %v2807 = vadd.f32 %v2799, 1e-05
    %v2808 = vadd.f32 %v2800, 1e-05
    %v2809 = vrsqrt.pop %v2801
    %v2810 = vrsqrt.pop %v2802
    %v2811 = vrsqrt.pop %v2803
    %v2812 = vrsqrt.pop %v2804
    %v2813 = vrsqrt.pop %v2805
    %v2814 = vrsqrt.pop %v2806
    %v2815 = vrsqrt.pop %v2807
    %v2816 = vrsqrt.pop %v2808
    %v2817 = vld [vmem:[%s1] sm:$0xff]
    %v2818 = vld [vmem:[%s1 + $0x8] sm:$0xff]
    %v2819 = vld [vmem:[%s1 + $0x10] sm:$0xff]
    %v2820 = vld [vmem:[%s1 + $0x18] sm:$0xff]
    %v2821 = vld [vmem:[%s1 + $0x20] sm:$0xff]
    %v2822 = vld [vmem:[%s1 + $0x28] sm:$0xff]
    %v2823 = vld [vmem:[%s1 + $0x30] sm:$0xff]
    %v2824 = vld [vmem:[%s1 + $0x38] sm:$0xff]
    %v2825 = vmul.f32 %v2809, %v2817
    %v2826 = vmul.f32 %v2810, %v2818
    %v2827 = vmul.f32 %v2811, %v2819
    %v2828 = vmul.f32 %v2812, %v2820
    %v2829 = vmul.f32 %v2813, %v2821
    %v2830 = vmul.f32 %v2814, %v2822
    %v2831 = vmul.f32 %v2815, %v2823
    %v2832 = vmul.f32 %v2816, %v2824
    %v2833 = vld [vmem:[%s2] sm:$0xff]
    %v2834 = vld [vmem:[%s2 + $0x8] sm:$0xff]
    %v2835 = vld [vmem:[%s2 + $0x10] sm:$0xff]
    %v2836 = vld [vmem:[%s2 + $0x18] sm:$0xff]
    %v2837 = vld [vmem:[%s2 + $0x20] sm:$0xff]
    %v2838 = vld [vmem:[%s2 + $0x28] sm:$0xff]
    %v2839 = vld [vmem:[%s2 + $0x30] sm:$0xff]
    %v2840 = vld [vmem:[%s2 + $0x38] sm:$0xff]
    %v2841 = vmul.f32 %v2642, %v2825
    %v2842 = vmul.f32 %v2647, %v2826
    %v2843 = vmul.f32 %v2652, %v2827
    %v2844 = vmul.f32 %v2657, %v2828
    %v2845 = vmul.f32 %v2662, %v2829
    %v2846 = vmul.f32 %v2667, %v2830
    %v2847 = vmul.f32 %v2672, %v2831
    %v2848 = vmul.f32 %v2677, %v2832
    %v2849 = vsub.f32 %v2833, %v2841
    %v2850 = vsub.f32 %v2834, %v2842
    %v2851 = vsub.f32 %v2835, %v2843
    %v2852 = vsub.f32 %v2836, %v2844
    %v2853 = vsub.f32 %v2837, %v2845
    %v2854 = vsub.f32 %v2838, %v2846
    %v2855 = vsub.f32 %v2839, %v2847
    %v2856 = vsub.f32 %v2840, %v2848
    %2858 = vset.pattern.permute.xlu0 0
    %2859 = vperm.xlu0 %2858, %v2825
    %v2860 = vpop.permute.xlu0 %2859
    %2863 = vset.pattern.permute.xlu0 0
    %2864 = vperm.xlu0 %2863, %v2826
    %v2865 = vpop.permute.xlu0 %2864
    %2868 = vset.pattern.permute.xlu0 0
    %2869 = vperm.xlu0 %2868, %v2827
    %v2870 = vpop.permute.xlu0 %2869
    %2873 = vset.pattern.permute.xlu0 0
    %2874 = vperm.xlu0 %2873, %v2828
    %v2875 = vpop.permute.xlu0 %2874
    %2878 = vset.pattern.permute.xlu0 0
    %2879 = vperm.xlu0 %2878, %v2829
    %v2880 = vpop.permute.xlu0 %2879
    %2883 = vset.pattern.permute.xlu0 0
    %2884 = vperm.xlu0 %2883, %v2830
    %v2885 = vpop.permute.xlu0 %2884
    %2888 = vset.pattern.permute.xlu0 0
    %2889 = vperm.xlu0 %2888, %v2831
    %v2890 = vpop.permute.xlu0 %2889
    %2893 = vset.pattern.permute.xlu0 0
    %2894 = vperm.xlu0 %2893, %v2832
    %v2895 = vpop.permute.xlu0 %2894
    %v2897 = vmul.f32 %v2463, %v2860
    %v2898 = vmul.f32 %v2464, %v2860
    %v2899 = vmul.f32 %v2465, %v2865
    %v2900 = vmul.f32 %v2466, %v2865
    %v2901 = vmul.f32 %v2467, %v2870
    %v2902 = vmul.f32 %v2468, %v2870
    %v2903 = vmul.f32 %v2469, %v2875
    %v2904 = vmul.f32 %v2470, %v2875
    %v2905 = vmul.f32 %v2471, %v2880
    %v2906 = vmul.f32 %v2472, %v2880
    %v2907 = vmul.f32 %v2473, %v2885
    %v2908 = vmul.f32 %v2474, %v2885
    %v2909 = vmul.f32 %v2475, %v2890
    %v2910 = vmul.f32 %v2476, %v2890
    %v2911 = vmul.f32 %v2477, %v2895
    %v2912 = vmul.f32 %v2478, %v2895
    %2914 = vset.pattern.permute.xlu0 0
    %2915 = vperm.xlu0 %2914, %v2849
    %v2916 = vpop.permute.xlu0 %2915
    %2919 = vset.pattern.permute.xlu0 0
    %2920 = vperm.xlu0 %2919, %v2850
    %v2921 = vpop.permute.xlu0 %2920
    %2924 = vset.pattern.permute.xlu0 0
    %2925 = vperm.xlu0 %2924, %v2851
    %v2926 = vpop.permute.xlu0 %2925
    %2929 = vset.pattern.permute.xlu0 0
    %2930 = vperm.xlu0 %2929, %v2852
    %v2931 = vpop.permute.xlu0 %2930
    %2934 = vset.pattern.permute.xlu0 0
    %2935 = vperm.xlu0 %2934, %v2853
    %v2936 = vpop.permute.xlu0 %2935
    %2939 = vset.pattern.permute.xlu0 0
    %2940 = vperm.xlu0 %2939, %v2854
    %v2941 = vpop.permute.xlu0 %2940
    %2944 = vset.pattern.permute.xlu0 0
    %2945 = vperm.xlu0 %2944, %v2855
    %v2946 = vpop.permute.xlu0 %2945
    %2949 = vset.pattern.permute.xlu0 0
    %2950 = vperm.xlu0 %2949, %v2856
    %v2951 = vpop.permute.xlu0 %2950
    %v2953 = vadd.f32 %v2897, %v2916
    %v2954 = vadd.f32 %v2898, %v2916
    %v2955 = vadd.f32 %v2899, %v2921
    %v2956 = vadd.f32 %v2900, %v2921
    %v2957 = vadd.f32 %v2901, %v2926
    %v2958 = vadd.f32 %v2902, %v2926
    %v2959 = vadd.f32 %v2903, %v2931
    %v2960 = vadd.f32 %v2904, %v2931
    %v2961 = vadd.f32 %v2905, %v2936
    %v2962 = vadd.f32 %v2906, %v2936
    %v2963 = vadd.f32 %v2907, %v2941
    %v2964 = vadd.f32 %v2908, %v2941
    %v2965 = vadd.f32 %v2909, %v2946
    %v2966 = vadd.f32 %v2910, %v2946
    %v2967 = vadd.f32 %v2911, %v2951
    %v2968 = vadd.f32 %v2912, %v2951
    %v2969 = vxor.u32 %v2953, 2147483648
    %v2970 = vxor.u32 %v2954, 2147483648
    %v2971 = vxor.u32 %v2955, 2147483648
    %v2972 = vxor.u32 %v2956, 2147483648
    %v2973 = vxor.u32 %v2957, 2147483648
    %v2974 = vxor.u32 %v2958, 2147483648
    %v2975 = vxor.u32 %v2959, 2147483648
    %v2976 = vxor.u32 %v2960, 2147483648
    %v2977 = vxor.u32 %v2961, 2147483648
    %v2978 = vxor.u32 %v2962, 2147483648
    %v2979 = vxor.u32 %v2963, 2147483648
    %v2980 = vxor.u32 %v2964, 2147483648
    %v2981 = vxor.u32 %v2965, 2147483648
    %v2982 = vxor.u32 %v2966, 2147483648
    %v2983 = vxor.u32 %v2967, 2147483648
    %v2984 = vxor.u32 %v2968, 2147483648
    %v2985 = vmul.f32 %v2969, 1.442695
    %v2986 = vpow.pop %v2985
    %v2987 = vmul.f32 %v2970, 1.442695
    %v2988 = vpow.pop %v2987
    %v2989 = vmul.f32 %v2971, 1.442695
    %v2990 = vpow.pop %v2989
    %v2991 = vmul.f32 %v2972, 1.442695
    %v2992 = vpow.pop %v2991
    %v2993 = vmul.f32 %v2973, 1.442695
    %v2994 = vpow.pop %v2993
    %v2995 = vmul.f32 %v2974, 1.442695
    %v2996 = vpow.pop %v2995
    %v2997 = vmul.f32 %v2975, 1.442695
    %v2998 = vpow.pop %v2997
    %v2999 = vmul.f32 %v2976, 1.442695
    %v3000 = vpow.pop %v2999
    %v3001 = vmul.f32 %v2977, 1.442695
    %v3002 = vpow.pop %v3001
    %v3003 = vmul.f32 %v2978, 1.442695
    %v3004 = vpow.pop %v3003
    %v3005 = vmul.f32 %v2979, 1.442695
    %v3006 = vpow.pop %v3005
    %v3007 = vmul.f32 %v2980, 1.442695
    %v3008 = vpow.pop %v3007
    %v3009 = vmul.f32 %v2981, 1.442695
    %v3010 = vpow.pop %v3009
    %v3011 = vmul.f32 %v2982, 1.442695
    %v3012 = vpow.pop %v3011
    %v3013 = vmul.f32 %v2983, 1.442695
    %v3014 = vpow.pop %v3013
    %v3015 = vmul.f32 %v2984, 1.442695
    %v3016 = vpow.pop %v3015
    %v3017 = vadd.f32 %v2986, 1.0
    %v3018 = vadd.f32 %v2988, 1.0
    %v3019 = vadd.f32 %v2990, 1.0
    %v3020 = vadd.f32 %v2992, 1.0
    %v3021 = vadd.f32 %v2994, 1.0
    %v3022 = vadd.f32 %v2996, 1.0
    %v3023 = vadd.f32 %v2998, 1.0
    %v3024 = vadd.f32 %v3000, 1.0
    %v3025 = vadd.f32 %v3002, 1.0
    %v3026 = vadd.f32 %v3004, 1.0
    %v3027 = vadd.f32 %v3006, 1.0
    %v3028 = vadd.f32 %v3008, 1.0
    %v3029 = vadd.f32 %v3010, 1.0
    %v3030 = vadd.f32 %v3012, 1.0
    %v3031 = vadd.f32 %v3014, 1.0
    %v3032 = vadd.f32 %v3016, 1.0
    %v3033 = vrcp.pop %v3017
    %v3034 = vmul.f32 1.0, %v3033
    %v3035 = vrcp.pop %v3018
    %v3036 = vmul.f32 1.0, %v3035
    %v3037 = vrcp.pop %v3019
    %v3038 = vmul.f32 1.0, %v3037
    %v3039 = vrcp.pop %v3020
    %v3040 = vmul.f32 1.0, %v3039
    %v3041 = vrcp.pop %v3021
    %v3042 = vmul.f32 1.0, %v3041
    %v3043 = vrcp.pop %v3022
    %v3044 = vmul.f32 1.0, %v3043
    %v3045 = vrcp.pop %v3023
    %v3046 = vmul.f32 1.0, %v3045
    %v3047 = vrcp.pop %v3024
    %v3048 = vmul.f32 1.0, %v3047
    %v3049 = vrcp.pop %v3025
    %v3050 = vmul.f32 1.0, %v3049
    %v3051 = vrcp.pop %v3026
    %v3052 = vmul.f32 1.0, %v3051
    %v3053 = vrcp.pop %v3027
    %v3054 = vmul.f32 1.0, %v3053
    %v3055 = vrcp.pop %v3028
    %v3056 = vmul.f32 1.0, %v3055
    %v3057 = vrcp.pop %v3029
    %v3058 = vmul.f32 1.0, %v3057
    %v3059 = vrcp.pop %v3030
    %v3060 = vmul.f32 1.0, %v3059
    %v3061 = vrcp.pop %v3031
    %v3062 = vmul.f32 1.0, %v3061
    %v3063 = vrcp.pop %v3032
    %v3064 = vmul.f32 1.0, %v3063
    %v3065 = vmul.f32 %v2953, %v3034
    %v3066 = vmul.f32 %v2954, %v3036
    %v3067 = vmul.f32 %v2955, %v3038
    %v3068 = vmul.f32 %v2956, %v3040
    %v3069 = vmul.f32 %v2957, %v3042
    %v3070 = vmul.f32 %v2958, %v3044
    %v3071 = vmul.f32 %v2959, %v3046
    %v3072 = vmul.f32 %v2960, %v3048
    %v3073 = vmul.f32 %v2961, %v3050
    %v3074 = vmul.f32 %v2962, %v3052
    %v3075 = vmul.f32 %v2963, %v3054
    %v3076 = vmul.f32 %v2964, %v3056
    %v3077 = vmul.f32 %v2965, %v3058
    %v3078 = vmul.f32 %v2966, %v3060
    %v3079 = vmul.f32 %v2967, %v3062
    %v3080 = vmul.f32 %v2968, %v3064
    %v3081 = vld [vmem:[%s674] sm:$0xff]
    %v3082 = vld [vmem:[%s674 + $0x8] sm:$0xff]
    %v3083 = vld [vmem:[%s674 + $0x10] sm:$0xff]
    %v3084 = vld [vmem:[%s674 + $0x18] sm:$0xff]
    %3085 = vrot.lane.b32.xlu0 %v3065, 17
    %v3086 = vpop.permute.xlu0 %3085
    %3087 = vrot.lane.b32.xlu0 %v3067, 17
    %v3088 = vpop.permute.xlu0 %3087
    %3089 = vrot.lane.b32.xlu0 %v3069, 17
    %v3090 = vpop.permute.xlu0 %3089
    %3091 = vrot.lane.b32.xlu0 %v3071, 17
    %v3092 = vpop.permute.xlu0 %3091
    %3093 = vrot.lane.b32.xlu0 %v3073, 17
    %v3094 = vpop.permute.xlu0 %3093
    %3095 = vrot.lane.b32.xlu0 %v3075, 17
    %v3096 = vpop.permute.xlu0 %3095
    %3097 = vrot.lane.b32.xlu0 %v3077, 17
    %v3098 = vpop.permute.xlu0 %3097
    %3099 = vrot.lane.b32.xlu0 %v3079, 17
    %v3100 = vpop.permute.xlu0 %3099
    %3101 = vrot.lane.b32.xlu0 %v3066, 17
    %v3102 = vpop.permute.xlu0 %3101
    %3103 = vrot.lane.b32.xlu0 %v3068, 17
    %v3104 = vpop.permute.xlu0 %3103
    %3105 = vrot.lane.b32.xlu0 %v3070, 17
    %v3106 = vpop.permute.xlu0 %3105
    %3107 = vrot.lane.b32.xlu0 %v3072, 17
    %v3108 = vpop.permute.xlu0 %3107
    %3109 = vrot.lane.b32.xlu0 %v3074, 17
    %v3110 = vpop.permute.xlu0 %3109
    %3111 = vrot.lane.b32.xlu0 %v3076, 17
    %v3112 = vpop.permute.xlu0 %3111
    %3113 = vrot.lane.b32.xlu0 %v3078, 17
    %v3114 = vpop.permute.xlu0 %3113
    %3115 = vrot.lane.b32.xlu0 %v3080, 17
    %v3116 = vpop.permute.xlu0 %3115
    %v3117 = vsel %vm713, %v3086, %v3102
    %v3118 = vsel %vm713, %v3088, %v3104
    %v3119 = vsel %vm713, %v3090, %v3106
    %v3120 = vsel %vm713, %v3092, %v3108
    %v3121 = vsel %vm713, %v3094, %v3110
    %v3122 = vsel %vm713, %v3096, %v3112
    %v3123 = vsel %vm713, %v3098, %v3114
    %v3124 = vsel %vm713, %v3100, %v3116
    %v3125 = vsel %vm713, %v3102, %v3086
    %v3126 = vsel %vm713, %v3104, %v3088
    %v3127 = vsel %vm713, %v3106, %v3090
    %v3128 = vsel %vm713, %v3108, %v3092
    %v3129 = vsel %vm713, %v3110, %v3094
    %v3130 = vsel %vm713, %v3112, %v3096
    %v3131 = vsel %vm713, %v3114, %v3098
    %v3132 = vsel %vm713, %v3116, %v3100
    %v3133 = vld [vmem:[%s4] sm:$0x3]
    %v3135 = vlaneseq
    %v3136 = vshrl.u32 %v3135, 7
    %v3137 = vsub.s32 0, %v3136
    %v3138 = vrot.slane %v3133, %v3137
    %v3139 = vlaneseq
    %v3140 = vshrl.u32 %v3139, 7
    %v3141 = vsub.s32 1, %v3140
    %v3142 = vrot.slane %v3133, %v3141
    %v3145 = vmul.f32 %v3125, %v3138
    %v3146 = vmul.f32 %v3117, %v3142
    %v3147 = vmul.f32 %v3126, %v3138
    %v3148 = vmul.f32 %v3118, %v3142
    %v3149 = vmul.f32 %v3127, %v3138
    %v3150 = vmul.f32 %v3119, %v3142
    %v3151 = vmul.f32 %v3128, %v3138
    %v3152 = vmul.f32 %v3120, %v3142
    %v3153 = vmul.f32 %v3129, %v3138
    %v3154 = vmul.f32 %v3121, %v3142
    %v3155 = vmul.f32 %v3130, %v3138
    %v3156 = vmul.f32 %v3122, %v3142
    %v3157 = vmul.f32 %v3131, %v3138
    %v3158 = vmul.f32 %v3123, %v3142
    %v3159 = vmul.f32 %v3132, %v3138
    %v3160 = vmul.f32 %v3124, %v3142
    %v3161 = vld [vmem:[#allocation5] sm:$0xff]
    %v3162 = vld [vmem:[#allocation5 + $0x8] sm:$0xff]
    %v3163 = vld [vmem:[#allocation5 + $0x10] sm:$0xff]
    %v3164 = vld [vmem:[#allocation5 + $0x18] sm:$0xff]
    %v3166 = vsel %vm143, %v3161, 0
    %v3169 = vsel %vm143, %v3162, 0
    %v3172 = vsel %vm143, %v3163, 0
    %v3175 = vsel %vm143, %v3164, 0
    %3177 = vmatprep.subr.mxu0 0.0
    %3178 = vmatpush1.msra.mxu0 0.0
    %3179 = vmatprep.subr.mxu0 0.0
    %3180 = vmatpush1.msra.mxu0 0.0
    %3181 = vmatprep.subr.mxu0 0.0
    %3182 = vmatpush1.msra.mxu0 0.0
    %3183 = vmatprep.subr.mxu0 0.0
    %3184 = vmatpush1.msra.mxu0 0.0
    %3185 = vmatprep.subr.mxu0 0.0
    %3186 = vmatpush1.msra.mxu0 0.0
    %3187 = vmatprep.subr.mxu0 0.0
    %3188 = vmatpush1.msra.mxu0 0.0
    %3189 = vmatprep.subr.mxu0 0.0
    %3190 = vmatpush1.msra.mxu0 0.0
    %3191 = vmatprep.subr.mxu0 0.0
    %3192 = vmatpush1.msra.mxu0 0.0
    %3193 = vmatprep.subr.mxu0 %v3160
    %3194 = vmatpush1.msra.mxu0 %v3159
    %3195 = vmatprep.subr.mxu0 %v3158
    %3196 = vmatpush1.msra.mxu0 %v3157
    %3197 = vmatprep.subr.mxu0 %v3156
    %3198 = vmatpush1.msra.mxu0 %v3155
    %3199 = vmatprep.subr.mxu0 %v3154
    %3200 = vmatpush1.msra.mxu0 %v3153
    %3201 = vmatprep.subr.mxu0 %v3152
    %3202 = vmatpush1.msra.mxu0 %v3151
    %3203 = vmatprep.subr.mxu0 %v3150
    %3204 = vmatpush1.msra.mxu0 %v3149
    %3205 = vmatprep.subr.mxu0 %v3148
    %3206 = vmatpush1.msra.mxu0 %v3147
    %3207 = vmatprep.subr.mxu0 %v3146
    %3208 = vmatpush1.msra.mxu0 %v3145
    %3209 = vmatprep.subr.mxu0 0.0
    %3210 = vmatpush2.msra.mxu0 0.0
    %3211 = vmatprep.subr.mxu0 0.0
    %3212 = vmatpush2.msra.mxu0 0.0
    %3213 = vmatprep.subr.mxu0 0.0
    %3214 = vmatpush2.msra.mxu0 0.0
    %3215 = vmatprep.subr.mxu0 0.0
    %3216 = vmatpush2.msra.mxu0 0.0
    %3217 = vmatprep.subr.mxu0 0.0
    %3218 = vmatpush2.msra.mxu0 0.0
    %3219 = vmatprep.subr.mxu0 0.0
    %3220 = vmatpush2.msra.mxu0 0.0
    %3221 = vmatprep.subr.mxu0 0.0
    %3222 = vmatpush2.msra.mxu0 0.0
    %3223 = vmatprep.subr.mxu0 0.0
    %3224 = vmatpush2.msra.mxu0 0.0
    %3225 = vmatprep.subr.mxu0 0.0
    %3226 = vmatpush2.msra.mxu0 0.0
    %3227 = vmatprep.subr.mxu0 0.0
    %3228 = vmatpush2.msra.mxu0 0.0
    %3229 = vmatprep.subr.mxu0 0.0
    %3230 = vmatpush2.msra.mxu0 0.0
    %3231 = vmatprep.subr.mxu0 0.0
    %3232 = vmatpush2.msra.mxu0 0.0
    %3233 = vmatprep.subr.mxu0 0.0
    %3234 = vmatpush2.msra.mxu0 0.0
    %3235 = vmatprep.subr.mxu0 0.0
    %3236 = vmatpush2.msra.mxu0 0.0
    %3237 = vmatprep.subr.mxu0 0.0
    %3238 = vmatpush2.msra.mxu0 0.0
    %3239 = vmatprep.subr.mxu0 0.0
    %3240 = vmatpush2.msra.mxu0 0.0
    %3241 = vmatprep.mubr.f32.mxu0 0.0
    %3242 = vmatmul.mubr.f32.gmra.mxu0 %v3166
    %v3243 = vpop.f32.mrf.mxu0
    %v3244 = vadd.f32 0.0, %v3243
    %v3245 = vpop.f32.mrf.mxu0
    %v3246 = vadd.f32 0.0, %v3245
    %3247 = vmatprep.mubr.f32.mxu0 0.0
    %3248 = vmatmul.mubr.f32.gmra.mxu0 %v3169
    %v3249 = vpop.f32.mrf.mxu0
    %v3250 = vadd.f32 0.0, %v3249
    %v3251 = vpop.f32.mrf.mxu0
    %v3252 = vadd.f32 0.0, %v3251
    %3253 = vmatprep.mubr.f32.mxu0 0.0
    %3254 = vmatmul.mubr.f32.gmra.mxu0 %v3172
    %v3255 = vpop.f32.mrf.mxu0
    %v3256 = vadd.f32 0.0, %v3255
    %v3257 = vpop.f32.mrf.mxu0
    %v3258 = vadd.f32 0.0, %v3257
    %3259 = vmatprep.mubr.f32.mxu0 0.0
    %3260 = vmatmul.mubr.f32.gmra.mxu0 %v3175
    %v3261 = vpop.f32.mrf.mxu0
    %v3262 = vadd.f32 0.0, %v3261
    %v3263 = vpop.f32.mrf.mxu0
    %v3264 = vadd.f32 0.0, %v3263
    %3265 = vdwg.mxu0
    %v3267 = vsel %vm143, %v3081, 0
    %v3270 = vsel %vm143, %v3082, 0
    %v3273 = vsel %vm143, %v3083, 0
    %v3276 = vsel %vm143, %v3084, 0
    %3278 = vmatprep.subr.mxu0 0.0
    %3279 = vmatpush1.msra.mxu0 0.0
    %3280 = vmatprep.subr.mxu0 0.0
    %3281 = vmatpush1.msra.mxu0 0.0
    %3282 = vmatprep.subr.mxu0 0.0
    %3283 = vmatpush1.msra.mxu0 0.0
    %3284 = vmatprep.subr.mxu0 0.0
    %3285 = vmatpush1.msra.mxu0 0.0
    %3286 = vmatprep.subr.mxu0 0.0
    %3287 = vmatpush1.msra.mxu0 0.0
    %3288 = vmatprep.subr.mxu0 0.0
    %3289 = vmatpush1.msra.mxu0 0.0
    %3290 = vmatprep.subr.mxu0 0.0
    %3291 = vmatpush1.msra.mxu0 0.0
    %3292 = vmatprep.subr.mxu0 0.0
    %3293 = vmatpush1.msra.mxu0 0.0
    %3294 = vmatprep.subr.mxu0 %v2478
    %3295 = vmatpush1.msra.mxu0 %v2477
    %3296 = vmatprep.subr.mxu0 %v2476
    %3297 = vmatpush1.msra.mxu0 %v2475
    %3298 = vmatprep.subr.mxu0 %v2474
    %3299 = vmatpush1.msra.mxu0 %v2473
    %3300 = vmatprep.subr.mxu0 %v2472
    %3301 = vmatpush1.msra.mxu0 %v2471
    %3302 = vmatprep.subr.mxu0 %v2470
    %3303 = vmatpush1.msra.mxu0 %v2469
    %3304 = vmatprep.subr.mxu0 %v2468
    %3305 = vmatpush1.msra.mxu0 %v2467
    %3306 = vmatprep.subr.mxu0 %v2466
    %3307 = vmatpush1.msra.mxu0 %v2465
    %3308 = vmatprep.subr.mxu0 %v2464
    %3309 = vmatpush1.msra.mxu0 %v2463
    %3310 = vmatprep.subr.mxu0 0.0
    %3311 = vmatpush2.msra.mxu0 0.0
    %3312 = vmatprep.subr.mxu0 0.0
    %3313 = vmatpush2.msra.mxu0 0.0
    %3314 = vmatprep.subr.mxu0 0.0
    %3315 = vmatpush2.msra.mxu0 0.0
    %3316 = vmatprep.subr.mxu0 0.0
    %3317 = vmatpush2.msra.mxu0 0.0
    %3318 = vmatprep.subr.mxu0 0.0
    %3319 = vmatpush2.msra.mxu0 0.0
    %3320 = vmatprep.subr.mxu0 0.0
    %3321 = vmatpush2.msra.mxu0 0.0
    %3322 = vmatprep.subr.mxu0 0.0
    %3323 = vmatpush2.msra.mxu0 0.0
    %3324 = vmatprep.subr.mxu0 0.0
    %3325 = vmatpush2.msra.mxu0 0.0
    %3326 = vmatprep.subr.mxu0 0.0
    %3327 = vmatpush2.msra.mxu0 0.0
    %3328 = vmatprep.subr.mxu0 0.0
    %3329 = vmatpush2.msra.mxu0 0.0
    %3330 = vmatprep.subr.mxu0 0.0
    %3331 = vmatpush2.msra.mxu0 0.0
    %3332 = vmatprep.subr.mxu0 0.0
    %3333 = vmatpush2.msra.mxu0 0.0
    %3334 = vmatprep.subr.mxu0 0.0
    %3335 = vmatpush2.msra.mxu0 0.0
    %3336 = vmatprep.subr.mxu0 0.0
    %3337 = vmatpush2.msra.mxu0 0.0
    %3338 = vmatprep.subr.mxu0 0.0
    %3339 = vmatpush2.msra.mxu0 0.0
    %3340 = vmatprep.subr.mxu0 0.0
    %3341 = vmatpush2.msra.mxu0 0.0
    %3342 = vmatprep.mubr.f32.mxu0 0.0
    %3343 = vmatmul.mubr.f32.gmra.mxu0 %v3267
    %v3344 = vpop.f32.mrf.mxu0
    %v3345 = vadd.f32 %v3244, %v3344
    %v3346 = vpop.f32.mrf.mxu0
    %v3347 = vadd.f32 %v3246, %v3346
    %3348 = vmatprep.mubr.f32.mxu0 0.0
    %3349 = vmatmul.mubr.f32.gmra.mxu0 %v3270
    %v3350 = vpop.f32.mrf.mxu0
    %v3351 = vadd.f32 %v3250, %v3350
    %v3352 = vpop.f32.mrf.mxu0
    %v3353 = vadd.f32 %v3252, %v3352
    %3354 = vmatprep.mubr.f32.mxu0 0.0
    %3355 = vmatmul.mubr.f32.gmra.mxu0 %v3273
    %v3356 = vpop.f32.mrf.mxu0
    %v3357 = vadd.f32 %v3256, %v3356
    %v3358 = vpop.f32.mrf.mxu0
    %v3359 = vadd.f32 %v3258, %v3358
    %3360 = vmatprep.mubr.f32.mxu0 0.0
    %3361 = vmatmul.mubr.f32.gmra.mxu0 %v3276
    %v3362 = vpop.f32.mrf.mxu0
    %v3363 = vadd.f32 %v3262, %v3362
    %v3364 = vpop.f32.mrf.mxu0
    %v3365 = vadd.f32 %v3264, %v3364
    %3366 = vdwg.mxu0
    %3367 = vrot.lane.b32.xlu0 %v3065, 16
    %v3368 = vpop.permute.xlu0 %3367
    %3369 = vrot.lane.b32.xlu0 %v3067, 16
    %v3370 = vpop.permute.xlu0 %3369
    %3371 = vrot.lane.b32.xlu0 %v3069, 16
    %v3372 = vpop.permute.xlu0 %3371
    %3373 = vrot.lane.b32.xlu0 %v3071, 16
    %v3374 = vpop.permute.xlu0 %3373
    %3375 = vrot.lane.b32.xlu0 %v3073, 16
    %v3376 = vpop.permute.xlu0 %3375
    %3377 = vrot.lane.b32.xlu0 %v3075, 16
    %v3378 = vpop.permute.xlu0 %3377
    %3379 = vrot.lane.b32.xlu0 %v3077, 16
    %v3380 = vpop.permute.xlu0 %3379
    %3381 = vrot.lane.b32.xlu0 %v3079, 16
    %v3382 = vpop.permute.xlu0 %3381
    %3383 = vrot.lane.b32.xlu0 %v3066, 16
    %v3384 = vpop.permute.xlu0 %3383
    %3385 = vrot.lane.b32.xlu0 %v3068, 16
    %v3386 = vpop.permute.xlu0 %3385
    %3387 = vrot.lane.b32.xlu0 %v3070, 16
    %v3388 = vpop.permute.xlu0 %3387
    %3389 = vrot.lane.b32.xlu0 %v3072, 16
    %v3390 = vpop.permute.xlu0 %3389
    %3391 = vrot.lane.b32.xlu0 %v3074, 16
    %v3392 = vpop.permute.xlu0 %3391
    %3393 = vrot.lane.b32.xlu0 %v3076, 16
    %v3394 = vpop.permute.xlu0 %3393
    %3395 = vrot.lane.b32.xlu0 %v3078, 16
    %v3396 = vpop.permute.xlu0 %3395
    %3397 = vrot.lane.b32.xlu0 %v3080, 16
    %v3398 = vpop.permute.xlu0 %3397
    %v3399 = vsel %vm996, %v3368, %v3384
    %v3400 = vsel %vm996, %v3370, %v3386
    %v3401 = vsel %vm996, %v3372, %v3388
    %v3402 = vsel %vm996, %v3374, %v3390
    %v3403 = vsel %vm996, %v3376, %v3392
    %v3404 = vsel %vm996, %v3378, %v3394
    %v3405 = vsel %vm996, %v3380, %v3396
    %v3406 = vsel %vm996, %v3382, %v3398
    %v3407 = vsel %vm996, %v3384, %v3368
    %v3408 = vsel %vm996, %v3386, %v3370
    %v3409 = vsel %vm996, %v3388, %v3372
    %v3410 = vsel %vm996, %v3390, %v3374
    %v3411 = vsel %vm996, %v3392, %v3376
    %v3412 = vsel %vm996, %v3394, %v3378
    %v3413 = vsel %vm996, %v3396, %v3380
    %v3414 = vsel %vm996, %v3398, %v3382
    %v3415 = vld [vmem:[%s1013] sm:$0x3]
    %v3417 = vlaneseq
    %v3418 = vshrl.u32 %v3417, 7
    %v3419 = vsub.s32 0, %v3418
    %v3420 = vrot.slane %v3415, %v3419
    %v3421 = vlaneseq
    %v3422 = vshrl.u32 %v3421, 7
    %v3423 = vsub.s32 1, %v3422
    %v3424 = vrot.slane %v3415, %v3423
    %v3427 = vmul.f32 %v3407, %v3420
    %v3428 = vmul.f32 %v3399, %v3424
    %v3429 = vmul.f32 %v3408, %v3420
    %v3430 = vmul.f32 %v3400, %v3424
    %v3431 = vmul.f32 %v3409, %v3420
    %v3432 = vmul.f32 %v3401, %v3424
    %v3433 = vmul.f32 %v3410, %v3420
    %v3434 = vmul.f32 %v3402, %v3424
    %v3435 = vmul.f32 %v3411, %v3420
    %v3436 = vmul.f32 %v3403, %v3424
    %v3437 = vmul.f32 %v3412, %v3420
    %v3438 = vmul.f32 %v3404, %v3424
    %v3439 = vmul.f32 %v3413, %v3420
    %v3440 = vmul.f32 %v3405, %v3424
    %v3441 = vmul.f32 %v3414, %v3420
    %v3442 = vmul.f32 %v3406, %v3424
    %v3443 = vld [vmem:[%s1042] sm:$0xff]
    %v3444 = vld [vmem:[%s1042 + $0x8] sm:$0xff]
    %v3445 = vld [vmem:[%s1042 + $0x10] sm:$0xff]
    %v3446 = vld [vmem:[%s1042 + $0x18] sm:$0xff]
    %v3448 = vsel %vm143, %v3443, 0
    %v3451 = vsel %vm143, %v3444, 0
    %v3454 = vsel %vm143, %v3445, 0
    %v3457 = vsel %vm143, %v3446, 0
    %3459 = vmatprep.subr.mxu0 0.0
    %3460 = vmatpush1.msra.mxu0 0.0
    %3461 = vmatprep.subr.mxu0 0.0
    %3462 = vmatpush1.msra.mxu0 0.0
    %3463 = vmatprep.subr.mxu0 0.0
    %3464 = vmatpush1.msra.mxu0 0.0
    %3465 = vmatprep.subr.mxu0 0.0
    %3466 = vmatpush1.msra.mxu0 0.0
    %3467 = vmatprep.subr.mxu0 0.0
    %3468 = vmatpush1.msra.mxu0 0.0
    %3469 = vmatprep.subr.mxu0 0.0
    %3470 = vmatpush1.msra.mxu0 0.0
    %3471 = vmatprep.subr.mxu0 0.0
    %3472 = vmatpush1.msra.mxu0 0.0
    %3473 = vmatprep.subr.mxu0 0.0
    %3474 = vmatpush1.msra.mxu0 0.0
    %3475 = vmatprep.subr.mxu0 %v3442
    %3476 = vmatpush1.msra.mxu0 %v3441
    %3477 = vmatprep.subr.mxu0 %v3440
    %3478 = vmatpush1.msra.mxu0 %v3439
    %3479 = vmatprep.subr.mxu0 %v3438
    %3480 = vmatpush1.msra.mxu0 %v3437
    %3481 = vmatprep.subr.mxu0 %v3436
    %3482 = vmatpush1.msra.mxu0 %v3435
    %3483 = vmatprep.subr.mxu0 %v3434
    %3484 = vmatpush1.msra.mxu0 %v3433
    %3485 = vmatprep.subr.mxu0 %v3432
    %3486 = vmatpush1.msra.mxu0 %v3431
    %3487 = vmatprep.subr.mxu0 %v3430
    %3488 = vmatpush1.msra.mxu0 %v3429
    %3489 = vmatprep.subr.mxu0 %v3428
    %3490 = vmatpush1.msra.mxu0 %v3427
    %3491 = vmatprep.subr.mxu0 0.0
    %3492 = vmatpush2.msra.mxu0 0.0
    %3493 = vmatprep.subr.mxu0 0.0
    %3494 = vmatpush2.msra.mxu0 0.0
    %3495 = vmatprep.subr.mxu0 0.0
    %3496 = vmatpush2.msra.mxu0 0.0
    %3497 = vmatprep.subr.mxu0 0.0
    %3498 = vmatpush2.msra.mxu0 0.0
    %3499 = vmatprep.subr.mxu0 0.0
    %3500 = vmatpush2.msra.mxu0 0.0
    %3501 = vmatprep.subr.mxu0 0.0
    %3502 = vmatpush2.msra.mxu0 0.0
    %3503 = vmatprep.subr.mxu0 0.0
    %3504 = vmatpush2.msra.mxu0 0.0
    %3505 = vmatprep.subr.mxu0 0.0
    %3506 = vmatpush2.msra.mxu0 0.0
    %3507 = vmatprep.subr.mxu0 0.0
    %3508 = vmatpush2.msra.mxu0 0.0
    %3509 = vmatprep.subr.mxu0 0.0
    %3510 = vmatpush2.msra.mxu0 0.0
    %3511 = vmatprep.subr.mxu0 0.0
    %3512 = vmatpush2.msra.mxu0 0.0
    %3513 = vmatprep.subr.mxu0 0.0
    %3514 = vmatpush2.msra.mxu0 0.0
    %3515 = vmatprep.subr.mxu0 0.0
    %3516 = vmatpush2.msra.mxu0 0.0
    %3517 = vmatprep.subr.mxu0 0.0
    %3518 = vmatpush2.msra.mxu0 0.0
    %3519 = vmatprep.subr.mxu0 0.0
    %3520 = vmatpush2.msra.mxu0 0.0
    %3521 = vmatprep.subr.mxu0 0.0
    %3522 = vmatpush2.msra.mxu0 0.0
    %3523 = vmatprep.mubr.f32.mxu0 0.0
    %3524 = vmatmul.mubr.f32.gmra.mxu0 %v3448
    %v3525 = vpop.f32.mrf.mxu0
    %v3526 = vadd.f32 0.0, %v3525
    %v3527 = vpop.f32.mrf.mxu0
    %v3528 = vadd.f32 0.0, %v3527
    %3529 = vmatprep.mubr.f32.mxu0 0.0
    %3530 = vmatmul.mubr.f32.gmra.mxu0 %v3451
    %v3531 = vpop.f32.mrf.mxu0
    %v3532 = vadd.f32 0.0, %v3531
    %v3533 = vpop.f32.mrf.mxu0
    %v3534 = vadd.f32 0.0, %v3533
    %3535 = vmatprep.mubr.f32.mxu0 0.0
    %3536 = vmatmul.mubr.f32.gmra.mxu0 %v3454
    %v3537 = vpop.f32.mrf.mxu0
    %v3538 = vadd.f32 0.0, %v3537
    %v3539 = vpop.f32.mrf.mxu0
    %v3540 = vadd.f32 0.0, %v3539
    %3541 = vmatprep.mubr.f32.mxu0 0.0
    %3542 = vmatmul.mubr.f32.gmra.mxu0 %v3457
    %v3543 = vpop.f32.mrf.mxu0
    %v3544 = vadd.f32 0.0, %v3543
    %v3545 = vpop.f32.mrf.mxu0
    %v3546 = vadd.f32 0.0, %v3545
    %3547 = vdwg.mxu0
    %v3548 = vadd.f32 %v3345, %v3526
    %v3549 = vadd.f32 %v3347, %v3528
    %v3550 = vadd.f32 %v3351, %v3532
    %v3551 = vadd.f32 %v3353, %v3534
    %v3552 = vadd.f32 %v3357, %v3538
    %v3553 = vadd.f32 %v3359, %v3540
    %v3554 = vadd.f32 %v3363, %v3544
    %v3555 = vadd.f32 %v3365, %v3546
    %3556 = vrot.lane.b32.xlu0 %v3065, 15
    %v3557 = vpop.permute.xlu0 %3556
    %3558 = vrot.lane.b32.xlu0 %v3067, 15
    %v3559 = vpop.permute.xlu0 %3558
    %3560 = vrot.lane.b32.xlu0 %v3069, 15
    %v3561 = vpop.permute.xlu0 %3560
    %3562 = vrot.lane.b32.xlu0 %v3071, 15
    %v3563 = vpop.permute.xlu0 %3562
    %3564 = vrot.lane.b32.xlu0 %v3073, 15
    %v3565 = vpop.permute.xlu0 %3564
    %3566 = vrot.lane.b32.xlu0 %v3075, 15
    %v3567 = vpop.permute.xlu0 %3566
    %3568 = vrot.lane.b32.xlu0 %v3077, 15
    %v3569 = vpop.permute.xlu0 %3568
    %3570 = vrot.lane.b32.xlu0 %v3079, 15
    %v3571 = vpop.permute.xlu0 %3570
    %3572 = vrot.lane.b32.xlu0 %v3066, 15
    %v3573 = vpop.permute.xlu0 %3572
    %3574 = vrot.lane.b32.xlu0 %v3068, 15
    %v3575 = vpop.permute.xlu0 %3574
    %3576 = vrot.lane.b32.xlu0 %v3070, 15
    %v3577 = vpop.permute.xlu0 %3576
    %3578 = vrot.lane.b32.xlu0 %v3072, 15
    %v3579 = vpop.permute.xlu0 %3578
    %3580 = vrot.lane.b32.xlu0 %v3074, 15
    %v3581 = vpop.permute.xlu0 %3580
    %3582 = vrot.lane.b32.xlu0 %v3076, 15
    %v3583 = vpop.permute.xlu0 %3582
    %3584 = vrot.lane.b32.xlu0 %v3078, 15
    %v3585 = vpop.permute.xlu0 %3584
    %3586 = vrot.lane.b32.xlu0 %v3080, 15
    %v3587 = vpop.permute.xlu0 %3586
    %v3588 = vsel %vm1188, %v3557, %v3573
    %v3589 = vsel %vm1188, %v3559, %v3575
    %v3590 = vsel %vm1188, %v3561, %v3577
    %v3591 = vsel %vm1188, %v3563, %v3579
    %v3592 = vsel %vm1188, %v3565, %v3581
    %v3593 = vsel %vm1188, %v3567, %v3583
    %v3594 = vsel %vm1188, %v3569, %v3585
    %v3595 = vsel %vm1188, %v3571, %v3587
    %v3596 = vsel %vm1188, %v3573, %v3557
    %v3597 = vsel %vm1188, %v3575, %v3559
    %v3598 = vsel %vm1188, %v3577, %v3561
    %v3599 = vsel %vm1188, %v3579, %v3563
    %v3600 = vsel %vm1188, %v3581, %v3565
    %v3601 = vsel %vm1188, %v3583, %v3567
    %v3602 = vsel %vm1188, %v3585, %v3569
    %v3603 = vsel %vm1188, %v3587, %v3571
    %v3604 = vld [vmem:[%s1205] sm:$0x3]
    %v3606 = vlaneseq
    %v3607 = vshrl.u32 %v3606, 7
    %v3608 = vsub.s32 0, %v3607
    %v3609 = vrot.slane %v3604, %v3608
    %v3610 = vlaneseq
    %v3611 = vshrl.u32 %v3610, 7
    %v3612 = vsub.s32 1, %v3611
    %v3613 = vrot.slane %v3604, %v3612
    %v3616 = vmul.f32 %v3596, %v3609
    %v3617 = vmul.f32 %v3588, %v3613
    %v3618 = vmul.f32 %v3597, %v3609
    %v3619 = vmul.f32 %v3589, %v3613
    %v3620 = vmul.f32 %v3598, %v3609
    %v3621 = vmul.f32 %v3590, %v3613
    %v3622 = vmul.f32 %v3599, %v3609
    %v3623 = vmul.f32 %v3591, %v3613
    %v3624 = vmul.f32 %v3600, %v3609
    %v3625 = vmul.f32 %v3592, %v3613
    %v3626 = vmul.f32 %v3601, %v3609
    %v3627 = vmul.f32 %v3593, %v3613
    %v3628 = vmul.f32 %v3602, %v3609
    %v3629 = vmul.f32 %v3594, %v3613
    %v3630 = vmul.f32 %v3603, %v3609
    %v3631 = vmul.f32 %v3595, %v3613
    %v3632 = vld [vmem:[%s1234] sm:$0xff]
    %v3633 = vld [vmem:[%s1234 + $0x8] sm:$0xff]
    %v3634 = vld [vmem:[%s1234 + $0x10] sm:$0xff]
    %v3635 = vld [vmem:[%s1234 + $0x18] sm:$0xff]
    %v3637 = vsel %vm143, %v3632, 0
    %v3640 = vsel %vm143, %v3633, 0
    %v3643 = vsel %vm143, %v3634, 0
    %v3646 = vsel %vm143, %v3635, 0
    %3648 = vmatprep.subr.mxu0 0.0
    %3649 = vmatpush1.msra.mxu0 0.0
    %3650 = vmatprep.subr.mxu0 0.0
    %3651 = vmatpush1.msra.mxu0 0.0
    %3652 = vmatprep.subr.mxu0 0.0
    %3653 = vmatpush1.msra.mxu0 0.0
    %3654 = vmatprep.subr.mxu0 0.0
    %3655 = vmatpush1.msra.mxu0 0.0
    %3656 = vmatprep.subr.mxu0 0.0
    %3657 = vmatpush1.msra.mxu0 0.0
    %3658 = vmatprep.subr.mxu0 0.0
    %3659 = vmatpush1.msra.mxu0 0.0
    %3660 = vmatprep.subr.mxu0 0.0
    %3661 = vmatpush1.msra.mxu0 0.0
    %3662 = vmatprep.subr.mxu0 0.0
    %3663 = vmatpush1.msra.mxu0 0.0
    %3664 = vmatprep.subr.mxu0 %v3631
    %3665 = vmatpush1.msra.mxu0 %v3630
    %3666 = vmatprep.subr.mxu0 %v3629
    %3667 = vmatpush1.msra.mxu0 %v3628
    %3668 = vmatprep.subr.mxu0 %v3627
    %3669 = vmatpush1.msra.mxu0 %v3626
    %3670 = vmatprep.subr.mxu0 %v3625
    %3671 = vmatpush1.msra.mxu0 %v3624
    %3672 = vmatprep.subr.mxu0 %v3623
    %3673 = vmatpush1.msra.mxu0 %v3622
    %3674 = vmatprep.subr.mxu0 %v3621
    %3675 = vmatpush1.msra.mxu0 %v3620
    %3676 = vmatprep.subr.mxu0 %v3619
    %3677 = vmatpush1.msra.mxu0 %v3618
    %3678 = vmatprep.subr.mxu0 %v3617
    %3679 = vmatpush1.msra.mxu0 %v3616
    %3680 = vmatprep.subr.mxu0 0.0
    %3681 = vmatpush2.msra.mxu0 0.0
    %3682 = vmatprep.subr.mxu0 0.0
    %3683 = vmatpush2.msra.mxu0 0.0
    %3684 = vmatprep.subr.mxu0 0.0
    %3685 = vmatpush2.msra.mxu0 0.0
    %3686 = vmatprep.subr.mxu0 0.0
    %3687 = vmatpush2.msra.mxu0 0.0
    %3688 = vmatprep.subr.mxu0 0.0
    %3689 = vmatpush2.msra.mxu0 0.0
    %3690 = vmatprep.subr.mxu0 0.0
    %3691 = vmatpush2.msra.mxu0 0.0
    %3692 = vmatprep.subr.mxu0 0.0
    %3693 = vmatpush2.msra.mxu0 0.0
    %3694 = vmatprep.subr.mxu0 0.0
    %3695 = vmatpush2.msra.mxu0 0.0
    %3696 = vmatprep.subr.mxu0 0.0
    %3697 = vmatpush2.msra.mxu0 0.0
    %3698 = vmatprep.subr.mxu0 0.0
    %3699 = vmatpush2.msra.mxu0 0.0
    %3700 = vmatprep.subr.mxu0 0.0
    %3701 = vmatpush2.msra.mxu0 0.0
    %3702 = vmatprep.subr.mxu0 0.0
    %3703 = vmatpush2.msra.mxu0 0.0
    %3704 = vmatprep.subr.mxu0 0.0
    %3705 = vmatpush2.msra.mxu0 0.0
    %3706 = vmatprep.subr.mxu0 0.0
    %3707 = vmatpush2.msra.mxu0 0.0
    %3708 = vmatprep.subr.mxu0 0.0
    %3709 = vmatpush2.msra.mxu0 0.0
    %3710 = vmatprep.subr.mxu0 0.0
    %3711 = vmatpush2.msra.mxu0 0.0
    %3712 = vmatprep.mubr.f32.mxu0 0.0
    %3713 = vmatmul.mubr.f32.gmra.mxu0 %v3637
    %v3714 = vpop.f32.mrf.mxu0
    %v3715 = vadd.f32 0.0, %v3714
    %v3716 = vpop.f32.mrf.mxu0
    %v3717 = vadd.f32 0.0, %v3716
    %3718 = vmatprep.mubr.f32.mxu0 0.0
    %3719 = vmatmul.mubr.f32.gmra.mxu0 %v3640
    %v3720 = vpop.f32.mrf.mxu0
    %v3721 = vadd.f32 0.0, %v3720
    %v3722 = vpop.f32.mrf.mxu0
    %v3723 = vadd.f32 0.0, %v3722
    %3724 = vmatprep.mubr.f32.mxu0 0.0
    %3725 = vmatmul.mubr.f32.gmra.mxu0 %v3643
    %v3726 = vpop.f32.mrf.mxu0
    %v3727 = vadd.f32 0.0, %v3726
    %v3728 = vpop.f32.mrf.mxu0
    %v3729 = vadd.f32 0.0, %v3728
    %3730 = vmatprep.mubr.f32.mxu0 0.0
    %3731 = vmatmul.mubr.f32.gmra.mxu0 %v3646
    %v3732 = vpop.f32.mrf.mxu0
    %v3733 = vadd.f32 0.0, %v3732
    %v3734 = vpop.f32.mrf.mxu0
    %v3735 = vadd.f32 0.0, %v3734
    %3736 = vdwg.mxu0
    %v3737 = vadd.f32 %v3548, %v3715
    %v3738 = vadd.f32 %v3549, %v3717
    %v3739 = vadd.f32 %v3550, %v3721
    %v3740 = vadd.f32 %v3551, %v3723
    %v3741 = vadd.f32 %v3552, %v3727
    %v3742 = vadd.f32 %v3553, %v3729
    %v3743 = vadd.f32 %v3554, %v3733
    %v3744 = vadd.f32 %v3555, %v3735
    %3745 = vrot.lane.b32.xlu0 %v3065, 1
    %v3746 = vpop.permute.xlu0 %3745
    %3747 = vrot.lane.b32.xlu0 %v3067, 1
    %v3748 = vpop.permute.xlu0 %3747
    %3749 = vrot.lane.b32.xlu0 %v3069, 1
    %v3750 = vpop.permute.xlu0 %3749
    %3751 = vrot.lane.b32.xlu0 %v3071, 1
    %v3752 = vpop.permute.xlu0 %3751
    %3753 = vrot.lane.b32.xlu0 %v3073, 1
    %v3754 = vpop.permute.xlu0 %3753
    %3755 = vrot.lane.b32.xlu0 %v3075, 1
    %v3756 = vpop.permute.xlu0 %3755
    %3757 = vrot.lane.b32.xlu0 %v3077, 1
    %v3758 = vpop.permute.xlu0 %3757
    %3759 = vrot.lane.b32.xlu0 %v3079, 1
    %v3760 = vpop.permute.xlu0 %3759
    %3761 = vrot.lane.b32.xlu0 %v3066, 1
    %v3762 = vpop.permute.xlu0 %3761
    %3763 = vrot.lane.b32.xlu0 %v3068, 1
    %v3764 = vpop.permute.xlu0 %3763
    %3765 = vrot.lane.b32.xlu0 %v3070, 1
    %v3766 = vpop.permute.xlu0 %3765
    %3767 = vrot.lane.b32.xlu0 %v3072, 1
    %v3768 = vpop.permute.xlu0 %3767
    %3769 = vrot.lane.b32.xlu0 %v3074, 1
    %v3770 = vpop.permute.xlu0 %3769
    %3771 = vrot.lane.b32.xlu0 %v3076, 1
    %v3772 = vpop.permute.xlu0 %3771
    %3773 = vrot.lane.b32.xlu0 %v3078, 1
    %v3774 = vpop.permute.xlu0 %3773
    %3775 = vrot.lane.b32.xlu0 %v3080, 1
    %v3776 = vpop.permute.xlu0 %3775
    %v3777 = vsel %vm1380, %v3746, %v3762
    %v3778 = vsel %vm1380, %v3748, %v3764
    %v3779 = vsel %vm1380, %v3750, %v3766
    %v3780 = vsel %vm1380, %v3752, %v3768
    %v3781 = vsel %vm1380, %v3754, %v3770
    %v3782 = vsel %vm1380, %v3756, %v3772
    %v3783 = vsel %vm1380, %v3758, %v3774
    %v3784 = vsel %vm1380, %v3760, %v3776
    %v3785 = vsel %vm1380, %v3762, %v3746
    %v3786 = vsel %vm1380, %v3764, %v3748
    %v3787 = vsel %vm1380, %v3766, %v3750
    %v3788 = vsel %vm1380, %v3768, %v3752
    %v3789 = vsel %vm1380, %v3770, %v3754
    %v3790 = vsel %vm1380, %v3772, %v3756
    %v3791 = vsel %vm1380, %v3774, %v3758
    %v3792 = vsel %vm1380, %v3776, %v3760
    %v3793 = vld [vmem:[%s1397] sm:$0x3]
    %v3795 = vlaneseq
    %v3796 = vshrl.u32 %v3795, 7
    %v3797 = vsub.s32 0, %v3796
    %v3798 = vrot.slane %v3793, %v3797
    %v3799 = vlaneseq
    %v3800 = vshrl.u32 %v3799, 7
    %v3801 = vsub.s32 1, %v3800
    %v3802 = vrot.slane %v3793, %v3801
    %v3805 = vmul.f32 %v3785, %v3798
    %v3806 = vmul.f32 %v3777, %v3802
    %v3807 = vmul.f32 %v3786, %v3798
    %v3808 = vmul.f32 %v3778, %v3802
    %v3809 = vmul.f32 %v3787, %v3798
    %v3810 = vmul.f32 %v3779, %v3802
    %v3811 = vmul.f32 %v3788, %v3798
    %v3812 = vmul.f32 %v3780, %v3802
    %v3813 = vmul.f32 %v3789, %v3798
    %v3814 = vmul.f32 %v3781, %v3802
    %v3815 = vmul.f32 %v3790, %v3798
    %v3816 = vmul.f32 %v3782, %v3802
    %v3817 = vmul.f32 %v3791, %v3798
    %v3818 = vmul.f32 %v3783, %v3802
    %v3819 = vmul.f32 %v3792, %v3798
    %v3820 = vmul.f32 %v3784, %v3802
    %v3821 = vld [vmem:[%s1426] sm:$0xff]
    %v3822 = vld [vmem:[%s1426 + $0x8] sm:$0xff]
    %v3823 = vld [vmem:[%s1426 + $0x10] sm:$0xff]
    %v3824 = vld [vmem:[%s1426 + $0x18] sm:$0xff]
    %v3826 = vsel %vm143, %v3821, 0
    %v3829 = vsel %vm143, %v3822, 0
    %v3832 = vsel %vm143, %v3823, 0
    %v3835 = vsel %vm143, %v3824, 0
    %3837 = vmatprep.subr.mxu0 0.0
    %3838 = vmatpush1.msra.mxu0 0.0
    %3839 = vmatprep.subr.mxu0 0.0
    %3840 = vmatpush1.msra.mxu0 0.0
    %3841 = vmatprep.subr.mxu0 0.0
    %3842 = vmatpush1.msra.mxu0 0.0
    %3843 = vmatprep.subr.mxu0 0.0
    %3844 = vmatpush1.msra.mxu0 0.0
    %3845 = vmatprep.subr.mxu0 0.0
    %3846 = vmatpush1.msra.mxu0 0.0
    %3847 = vmatprep.subr.mxu0 0.0
    %3848 = vmatpush1.msra.mxu0 0.0
    %3849 = vmatprep.subr.mxu0 0.0
    %3850 = vmatpush1.msra.mxu0 0.0
    %3851 = vmatprep.subr.mxu0 0.0
    %3852 = vmatpush1.msra.mxu0 0.0
    %3853 = vmatprep.subr.mxu0 %v3820
    %3854 = vmatpush1.msra.mxu0 %v3819
    %3855 = vmatprep.subr.mxu0 %v3818
    %3856 = vmatpush1.msra.mxu0 %v3817
    %3857 = vmatprep.subr.mxu0 %v3816
    %3858 = vmatpush1.msra.mxu0 %v3815
    %3859 = vmatprep.subr.mxu0 %v3814
    %3860 = vmatpush1.msra.mxu0 %v3813
    %3861 = vmatprep.subr.mxu0 %v3812
    %3862 = vmatpush1.msra.mxu0 %v3811
    %3863 = vmatprep.subr.mxu0 %v3810
    %3864 = vmatpush1.msra.mxu0 %v3809
    %3865 = vmatprep.subr.mxu0 %v3808
    %3866 = vmatpush1.msra.mxu0 %v3807
    %3867 = vmatprep.subr.mxu0 %v3806
    %3868 = vmatpush1.msra.mxu0 %v3805
    %3869 = vmatprep.subr.mxu0 0.0
    %3870 = vmatpush2.msra.mxu0 0.0
    %3871 = vmatprep.subr.mxu0 0.0
    %3872 = vmatpush2.msra.mxu0 0.0
    %3873 = vmatprep.subr.mxu0 0.0
    %3874 = vmatpush2.msra.mxu0 0.0
    %3875 = vmatprep.subr.mxu0 0.0
    %3876 = vmatpush2.msra.mxu0 0.0
    %3877 = vmatprep.subr.mxu0 0.0
    %3878 = vmatpush2.msra.mxu0 0.0
    %3879 = vmatprep.subr.mxu0 0.0
    %3880 = vmatpush2.msra.mxu0 0.0
    %3881 = vmatprep.subr.mxu0 0.0
    %3882 = vmatpush2.msra.mxu0 0.0
    %3883 = vmatprep.subr.mxu0 0.0
    %3884 = vmatpush2.msra.mxu0 0.0
    %3885 = vmatprep.subr.mxu0 0.0
    %3886 = vmatpush2.msra.mxu0 0.0
    %3887 = vmatprep.subr.mxu0 0.0
    %3888 = vmatpush2.msra.mxu0 0.0
    %3889 = vmatprep.subr.mxu0 0.0
    %3890 = vmatpush2.msra.mxu0 0.0
    %3891 = vmatprep.subr.mxu0 0.0
    %3892 = vmatpush2.msra.mxu0 0.0
    %3893 = vmatprep.subr.mxu0 0.0
    %3894 = vmatpush2.msra.mxu0 0.0
    %3895 = vmatprep.subr.mxu0 0.0
    %3896 = vmatpush2.msra.mxu0 0.0
    %3897 = vmatprep.subr.mxu0 0.0
    %3898 = vmatpush2.msra.mxu0 0.0
    %3899 = vmatprep.subr.mxu0 0.0
    %3900 = vmatpush2.msra.mxu0 0.0
    %3901 = vmatprep.mubr.f32.mxu0 0.0
    %3902 = vmatmul.mubr.f32.gmra.mxu0 %v3826
    %v3903 = vpop.f32.mrf.mxu0
    %v3904 = vadd.f32 0.0, %v3903
    %v3905 = vpop.f32.mrf.mxu0
    %v3906 = vadd.f32 0.0, %v3905
    %3907 = vmatprep.mubr.f32.mxu0 0.0
    %3908 = vmatmul.mubr.f32.gmra.mxu0 %v3829
    %v3909 = vpop.f32.mrf.mxu0
    %v3910 = vadd.f32 0.0, %v3909
    %v3911 = vpop.f32.mrf.mxu0
    %v3912 = vadd.f32 0.0, %v3911
    %3913 = vmatprep.mubr.f32.mxu0 0.0
    %3914 = vmatmul.mubr.f32.gmra.mxu0 %v3832
    %v3915 = vpop.f32.mrf.mxu0
    %v3916 = vadd.f32 0.0, %v3915
    %v3917 = vpop.f32.mrf.mxu0
    %v3918 = vadd.f32 0.0, %v3917
    %3919 = vmatprep.mubr.f32.mxu0 0.0
    %3920 = vmatmul.mubr.f32.gmra.mxu0 %v3835
    %v3921 = vpop.f32.mrf.mxu0
    %v3922 = vadd.f32 0.0, %v3921
    %v3923 = vpop.f32.mrf.mxu0
    %v3924 = vadd.f32 0.0, %v3923
    %3925 = vdwg.mxu0
    %v3926 = vadd.f32 %v3737, %v3904
    %v3927 = vadd.f32 %v3738, %v3906
    %v3928 = vadd.f32 %v3739, %v3910
    %v3929 = vadd.f32 %v3740, %v3912
    %v3930 = vadd.f32 %v3741, %v3916
    %v3931 = vadd.f32 %v3742, %v3918
    %v3932 = vadd.f32 %v3743, %v3922
    %v3933 = vadd.f32 %v3744, %v3924
    %v3934 = vld [vmem:[%s1540] sm:$0xff]
    %v3935 = vld [vmem:[%s1540 + $0x8] sm:$0xff]
    %v3936 = vld [vmem:[%s1540 + $0x10] sm:$0xff]
    %v3937 = vld [vmem:[%s1540 + $0x18] sm:$0xff]
    %v3939 = vsel %vm143, %v3934, 0
    %v3942 = vsel %vm143, %v3935, 0
    %v3945 = vsel %vm143, %v3936, 0
    %v3948 = vsel %vm143, %v3937, 0
    %3950 = vmatprep.subr.mxu0 0.0
    %3951 = vmatpush1.msra.mxu0 0.0
    %3952 = vmatprep.subr.mxu0 0.0
    %3953 = vmatpush1.msra.mxu0 0.0
    %3954 = vmatprep.subr.mxu0 0.0
    %3955 = vmatpush1.msra.mxu0 0.0
    %3956 = vmatprep.subr.mxu0 0.0
    %3957 = vmatpush1.msra.mxu0 0.0
    %3958 = vmatprep.subr.mxu0 0.0
    %3959 = vmatpush1.msra.mxu0 0.0
    %3960 = vmatprep.subr.mxu0 0.0
    %3961 = vmatpush1.msra.mxu0 0.0
    %3962 = vmatprep.subr.mxu0 0.0
    %3963 = vmatpush1.msra.mxu0 0.0
    %3964 = vmatprep.subr.mxu0 0.0
    %3965 = vmatpush1.msra.mxu0 0.0
    %3966 = vmatprep.subr.mxu0 %v3080
    %3967 = vmatpush1.msra.mxu0 %v3079
    %3968 = vmatprep.subr.mxu0 %v3078
    %3969 = vmatpush1.msra.mxu0 %v3077
    %3970 = vmatprep.subr.mxu0 %v3076
    %3971 = vmatpush1.msra.mxu0 %v3075
    %3972 = vmatprep.subr.mxu0 %v3074
    %3973 = vmatpush1.msra.mxu0 %v3073
    %3974 = vmatprep.subr.mxu0 %v3072
    %3975 = vmatpush1.msra.mxu0 %v3071
    %3976 = vmatprep.subr.mxu0 %v3070
    %3977 = vmatpush1.msra.mxu0 %v3069
    %3978 = vmatprep.subr.mxu0 %v3068
    %3979 = vmatpush1.msra.mxu0 %v3067
    %3980 = vmatprep.subr.mxu0 %v3066
    %3981 = vmatpush1.msra.mxu0 %v3065
    %3982 = vmatprep.subr.mxu0 0.0
    %3983 = vmatpush2.msra.mxu0 0.0
    %3984 = vmatprep.subr.mxu0 0.0
    %3985 = vmatpush2.msra.mxu0 0.0
    %3986 = vmatprep.subr.mxu0 0.0
    %3987 = vmatpush2.msra.mxu0 0.0
    %3988 = vmatprep.subr.mxu0 0.0
    %3989 = vmatpush2.msra.mxu0 0.0
    %3990 = vmatprep.subr.mxu0 0.0
    %3991 = vmatpush2.msra.mxu0 0.0
    %3992 = vmatprep.subr.mxu0 0.0
    %3993 = vmatpush2.msra.mxu0 0.0
    %3994 = vmatprep.subr.mxu0 0.0
    %3995 = vmatpush2.msra.mxu0 0.0
    %3996 = vmatprep.subr.mxu0 0.0
    %3997 = vmatpush2.msra.mxu0 0.0
    %3998 = vmatprep.subr.mxu0 0.0
    %3999 = vmatpush2.msra.mxu0 0.0
    %4000 = vmatprep.subr.mxu0 0.0
    %4001 = vmatpush2.msra.mxu0 0.0
    %4002 = vmatprep.subr.mxu0 0.0
    %4003 = vmatpush2.msra.mxu0 0.0
    %4004 = vmatprep.subr.mxu0 0.0
    %4005 = vmatpush2.msra.mxu0 0.0
    %4006 = vmatprep.subr.mxu0 0.0
    %4007 = vmatpush2.msra.mxu0 0.0
    %4008 = vmatprep.subr.mxu0 0.0
    %4009 = vmatpush2.msra.mxu0 0.0
    %4010 = vmatprep.subr.mxu0 0.0
    %4011 = vmatpush2.msra.mxu0 0.0
    %4012 = vmatprep.subr.mxu0 0.0
    %4013 = vmatpush2.msra.mxu0 0.0
    %4014 = vmatprep.mubr.f32.mxu0 0.0
    %4015 = vmatmul.mubr.f32.gmra.mxu0 %v3939
    %v4016 = vpop.f32.mrf.mxu0
    %v4017 = vadd.f32 0.0, %v4016
    %v4018 = vpop.f32.mrf.mxu0
    %v4019 = vadd.f32 0.0, %v4018
    %4020 = vmatprep.mubr.f32.mxu0 0.0
    %4021 = vmatmul.mubr.f32.gmra.mxu0 %v3942
    %v4022 = vpop.f32.mrf.mxu0
    %v4023 = vadd.f32 0.0, %v4022
    %v4024 = vpop.f32.mrf.mxu0
    %v4025 = vadd.f32 0.0, %v4024
    %4026 = vmatprep.mubr.f32.mxu0 0.0
    %4027 = vmatmul.mubr.f32.gmra.mxu0 %v3945
    %v4028 = vpop.f32.mrf.mxu0
    %v4029 = vadd.f32 0.0, %v4028
    %v4030 = vpop.f32.mrf.mxu0
    %v4031 = vadd.f32 0.0, %v4030
    %4032 = vmatprep.mubr.f32.mxu0 0.0
    %4033 = vmatmul.mubr.f32.gmra.mxu0 %v3948
    %v4034 = vpop.f32.mrf.mxu0
    %v4035 = vadd.f32 0.0, %v4034
    %v4036 = vpop.f32.mrf.mxu0
    %v4037 = vadd.f32 0.0, %v4036
    %4038 = vdwg.mxu0
    %v4039 = vadd.f32 %v3926, %v4017
    %v4040 = vadd.f32 %v3927, %v4019
    %v4041 = vadd.f32 %v3928, %v4023
    %v4042 = vadd.f32 %v3929, %v4025
    %v4043 = vadd.f32 %v3930, %v4029
    %v4044 = vadd.f32 %v3931, %v4031
    %v4045 = vadd.f32 %v3932, %v4035
    %v4046 = vadd.f32 %v3933, %v4037
    %4047 = vrot.lane.b32.xlu0 %v3065, 127
    %v4048 = vpop.permute.xlu0 %4047
    %4049 = vrot.lane.b32.xlu0 %v3067, 127
    %v4050 = vpop.permute.xlu0 %4049
    %4051 = vrot.lane.b32.xlu0 %v3069, 127
    %v4052 = vpop.permute.xlu0 %4051
    %4053 = vrot.lane.b32.xlu0 %v3071, 127
    %v4054 = vpop.permute.xlu0 %4053
    %4055 = vrot.lane.b32.xlu0 %v3073, 127
    %v4056 = vpop.permute.xlu0 %4055
    %4057 = vrot.lane.b32.xlu0 %v3075, 127
    %v4058 = vpop.permute.xlu0 %4057
    %4059 = vrot.lane.b32.xlu0 %v3077, 127
    %v4060 = vpop.permute.xlu0 %4059
    %4061 = vrot.lane.b32.xlu0 %v3079, 127
    %v4062 = vpop.permute.xlu0 %4061
    %4063 = vrot.lane.b32.xlu0 %v3066, 127
    %v4064 = vpop.permute.xlu0 %4063
    %4065 = vrot.lane.b32.xlu0 %v3068, 127
    %v4066 = vpop.permute.xlu0 %4065
    %4067 = vrot.lane.b32.xlu0 %v3070, 127
    %v4068 = vpop.permute.xlu0 %4067
    %4069 = vrot.lane.b32.xlu0 %v3072, 127
    %v4070 = vpop.permute.xlu0 %4069
    %4071 = vrot.lane.b32.xlu0 %v3074, 127
    %v4072 = vpop.permute.xlu0 %4071
    %4073 = vrot.lane.b32.xlu0 %v3076, 127
    %v4074 = vpop.permute.xlu0 %4073
    %4075 = vrot.lane.b32.xlu0 %v3078, 127
    %v4076 = vpop.permute.xlu0 %4075
    %4077 = vrot.lane.b32.xlu0 %v3080, 127
    %v4078 = vpop.permute.xlu0 %4077
    %v4079 = vsel %vm1686, %v4048, %v4064
    %v4080 = vsel %vm1686, %v4050, %v4066
    %v4081 = vsel %vm1686, %v4052, %v4068
    %v4082 = vsel %vm1686, %v4054, %v4070
    %v4083 = vsel %vm1686, %v4056, %v4072
    %v4084 = vsel %vm1686, %v4058, %v4074
    %v4085 = vsel %vm1686, %v4060, %v4076
    %v4086 = vsel %vm1686, %v4062, %v4078
    %v4087 = vsel %vm1686, %v4064, %v4048
    %v4088 = vsel %vm1686, %v4066, %v4050
    %v4089 = vsel %vm1686, %v4068, %v4052
    %v4090 = vsel %vm1686, %v4070, %v4054
    %v4091 = vsel %vm1686, %v4072, %v4056
    %v4092 = vsel %vm1686, %v4074, %v4058
    %v4093 = vsel %vm1686, %v4076, %v4060
    %v4094 = vsel %vm1686, %v4078, %v4062
    %v4095 = vld [vmem:[%s1703] sm:$0x3]
    %v4097 = vlaneseq
    %v4098 = vshrl.u32 %v4097, 7
    %v4099 = vsub.s32 0, %v4098
    %v4100 = vrot.slane %v4095, %v4099
    %v4101 = vlaneseq
    %v4102 = vshrl.u32 %v4101, 7
    %v4103 = vsub.s32 1, %v4102
    %v4104 = vrot.slane %v4095, %v4103
    %v4107 = vmul.f32 %v4079, %v4100
    %v4108 = vmul.f32 %v4087, %v4104
    %v4109 = vmul.f32 %v4080, %v4100
    %v4110 = vmul.f32 %v4088, %v4104
    %v4111 = vmul.f32 %v4081, %v4100
    %v4112 = vmul.f32 %v4089, %v4104
    %v4113 = vmul.f32 %v4082, %v4100
    %v4114 = vmul.f32 %v4090, %v4104
    %v4115 = vmul.f32 %v4083, %v4100
    %v4116 = vmul.f32 %v4091, %v4104
    %v4117 = vmul.f32 %v4084, %v4100
    %v4118 = vmul.f32 %v4092, %v4104
    %v4119 = vmul.f32 %v4085, %v4100
    %v4120 = vmul.f32 %v4093, %v4104
    %v4121 = vmul.f32 %v4086, %v4100
    %v4122 = vmul.f32 %v4094, %v4104
    %v4123 = vld [vmem:[%s1732] sm:$0xff]
    %v4124 = vld [vmem:[%s1732 + $0x8] sm:$0xff]
    %v4125 = vld [vmem:[%s1732 + $0x10] sm:$0xff]
    %v4126 = vld [vmem:[%s1732 + $0x18] sm:$0xff]
    %v4128 = vsel %vm143, %v4123, 0
    %v4131 = vsel %vm143, %v4124, 0
    %v4134 = vsel %vm143, %v4125, 0
    %v4137 = vsel %vm143, %v4126, 0
    %4139 = vmatprep.subr.mxu0 0.0
    %4140 = vmatpush1.msra.mxu0 0.0
    %4141 = vmatprep.subr.mxu0 0.0
    %4142 = vmatpush1.msra.mxu0 0.0
    %4143 = vmatprep.subr.mxu0 0.0
    %4144 = vmatpush1.msra.mxu0 0.0
    %4145 = vmatprep.subr.mxu0 0.0
    %4146 = vmatpush1.msra.mxu0 0.0
    %4147 = vmatprep.subr.mxu0 0.0
    %4148 = vmatpush1.msra.mxu0 0.0
    %4149 = vmatprep.subr.mxu0 0.0
    %4150 = vmatpush1.msra.mxu0 0.0
    %4151 = vmatprep.subr.mxu0 0.0
    %4152 = vmatpush1.msra.mxu0 0.0
    %4153 = vmatprep.subr.mxu0 0.0
    %4154 = vmatpush1.msra.mxu0 0.0
    %4155 = vmatprep.subr.mxu0 %v4122
    %4156 = vmatpush1.msra.mxu0 %v4121
    %4157 = vmatprep.subr.mxu0 %v4120
    %4158 = vmatpush1.msra.mxu0 %v4119
    %4159 = vmatprep.subr.mxu0 %v4118
    %4160 = vmatpush1.msra.mxu0 %v4117
    %4161 = vmatprep.subr.mxu0 %v4116
    %4162 = vmatpush1.msra.mxu0 %v4115
    %4163 = vmatprep.subr.mxu0 %v4114
    %4164 = vmatpush1.msra.mxu0 %v4113
    %4165 = vmatprep.subr.mxu0 %v4112
    %4166 = vmatpush1.msra.mxu0 %v4111
    %4167 = vmatprep.subr.mxu0 %v4110
    %4168 = vmatpush1.msra.mxu0 %v4109
    %4169 = vmatprep.subr.mxu0 %v4108
    %4170 = vmatpush1.msra.mxu0 %v4107
    %4171 = vmatprep.subr.mxu0 0.0
    %4172 = vmatpush2.msra.mxu0 0.0
    %4173 = vmatprep.subr.mxu0 0.0
    %4174 = vmatpush2.msra.mxu0 0.0
    %4175 = vmatprep.subr.mxu0 0.0
    %4176 = vmatpush2.msra.mxu0 0.0
    %4177 = vmatprep.subr.mxu0 0.0
    %4178 = vmatpush2.msra.mxu0 0.0
    %4179 = vmatprep.subr.mxu0 0.0
    %4180 = vmatpush2.msra.mxu0 0.0
    %4181 = vmatprep.subr.mxu0 0.0
    %4182 = vmatpush2.msra.mxu0 0.0
    %4183 = vmatprep.subr.mxu0 0.0
    %4184 = vmatpush2.msra.mxu0 0.0
    %4185 = vmatprep.subr.mxu0 0.0
    %4186 = vmatpush2.msra.mxu0 0.0
    %4187 = vmatprep.subr.mxu0 0.0
    %4188 = vmatpush2.msra.mxu0 0.0
    %4189 = vmatprep.subr.mxu0 0.0
    %4190 = vmatpush2.msra.mxu0 0.0
    %4191 = vmatprep.subr.mxu0 0.0
    %4192 = vmatpush2.msra.mxu0 0.0
    %4193 = vmatprep.subr.mxu0 0.0
    %4194 = vmatpush2.msra.mxu0 0.0
    %4195 = vmatprep.subr.mxu0 0.0
    %4196 = vmatpush2.msra.mxu0 0.0
    %4197 = vmatprep.subr.mxu0 0.0
    %4198 = vmatpush2.msra.mxu0 0.0
    %4199 = vmatprep.subr.mxu0 0.0
    %4200 = vmatpush2.msra.mxu0 0.0
    %4201 = vmatprep.subr.mxu0 0.0
    %4202 = vmatpush2.msra.mxu0 0.0
    %4203 = vmatprep.mubr.f32.mxu0 0.0
    %4204 = vmatmul.mubr.f32.gmra.mxu0 %v4128
    %v4205 = vpop.f32.mrf.mxu0
    %v4206 = vadd.f32 0.0, %v4205
    %v4207 = vpop.f32.mrf.mxu0
    %v4208 = vadd.f32 0.0, %v4207
    %4209 = vmatprep.mubr.f32.mxu0 0.0
    %4210 = vmatmul.mubr.f32.gmra.mxu0 %v4131
    %v4211 = vpop.f32.mrf.mxu0
    %v4212 = vadd.f32 0.0, %v4211
    %v4213 = vpop.f32.mrf.mxu0
    %v4214 = vadd.f32 0.0, %v4213
    %4215 = vmatprep.mubr.f32.mxu0 0.0
    %4216 = vmatmul.mubr.f32.gmra.mxu0 %v4134
    %v4217 = vpop.f32.mrf.mxu0
    %v4218 = vadd.f32 0.0, %v4217
    %v4219 = vpop.f32.mrf.mxu0
    %v4220 = vadd.f32 0.0, %v4219
    %4221 = vmatprep.mubr.f32.mxu0 0.0
    %4222 = vmatmul.mubr.f32.gmra.mxu0 %v4137
    %v4223 = vpop.f32.mrf.mxu0
    %v4224 = vadd.f32 0.0, %v4223
    %v4225 = vpop.f32.mrf.mxu0
    %v4226 = vadd.f32 0.0, %v4225
    %4227 = vdwg.mxu0
    %v4228 = vadd.f32 %v4039, %v4206
    %v4229 = vadd.f32 %v4040, %v4208
    %v4230 = vadd.f32 %v4041, %v4212
    %v4231 = vadd.f32 %v4042, %v4214
    %v4232 = vadd.f32 %v4043, %v4218
    %v4233 = vadd.f32 %v4044, %v4220
    %v4234 = vadd.f32 %v4045, %v4224
    %v4235 = vadd.f32 %v4046, %v4226
    %4236 = vrot.lane.b32.xlu0 %v3065, 113
    %v4237 = vpop.permute.xlu0 %4236
    %4238 = vrot.lane.b32.xlu0 %v3067, 113
    %v4239 = vpop.permute.xlu0 %4238
    %4240 = vrot.lane.b32.xlu0 %v3069, 113
    %v4241 = vpop.permute.xlu0 %4240
    %4242 = vrot.lane.b32.xlu0 %v3071, 113
    %v4243 = vpop.permute.xlu0 %4242
    %4244 = vrot.lane.b32.xlu0 %v3073, 113
    %v4245 = vpop.permute.xlu0 %4244
    %4246 = vrot.lane.b32.xlu0 %v3075, 113
    %v4247 = vpop.permute.xlu0 %4246
    %4248 = vrot.lane.b32.xlu0 %v3077, 113
    %v4249 = vpop.permute.xlu0 %4248
    %4250 = vrot.lane.b32.xlu0 %v3079, 113
    %v4251 = vpop.permute.xlu0 %4250
    %4252 = vrot.lane.b32.xlu0 %v3066, 113
    %v4253 = vpop.permute.xlu0 %4252
    %4254 = vrot.lane.b32.xlu0 %v3068, 113
    %v4255 = vpop.permute.xlu0 %4254
    %4256 = vrot.lane.b32.xlu0 %v3070, 113
    %v4257 = vpop.permute.xlu0 %4256
    %4258 = vrot.lane.b32.xlu0 %v3072, 113
    %v4259 = vpop.permute.xlu0 %4258
    %4260 = vrot.lane.b32.xlu0 %v3074, 113
    %v4261 = vpop.permute.xlu0 %4260
    %4262 = vrot.lane.b32.xlu0 %v3076, 113
    %v4263 = vpop.permute.xlu0 %4262
    %4264 = vrot.lane.b32.xlu0 %v3078, 113
    %v4265 = vpop.permute.xlu0 %4264
    %4266 = vrot.lane.b32.xlu0 %v3080, 113
    %v4267 = vpop.permute.xlu0 %4266
    %v4268 = vsel %vm1878, %v4237, %v4253
    %v4269 = vsel %vm1878, %v4239, %v4255
    %v4270 = vsel %vm1878, %v4241, %v4257
    %v4271 = vsel %vm1878, %v4243, %v4259
    %v4272 = vsel %vm1878, %v4245, %v4261
    %v4273 = vsel %vm1878, %v4247, %v4263
    %v4274 = vsel %vm1878, %v4249, %v4265
    %v4275 = vsel %vm1878, %v4251, %v4267
    %v4276 = vsel %vm1878, %v4253, %v4237
    %v4277 = vsel %vm1878, %v4255, %v4239
    %v4278 = vsel %vm1878, %v4257, %v4241
    %v4279 = vsel %vm1878, %v4259, %v4243
    %v4280 = vsel %vm1878, %v4261, %v4245
    %v4281 = vsel %vm1878, %v4263, %v4247
    %v4282 = vsel %vm1878, %v4265, %v4249
    %v4283 = vsel %vm1878, %v4267, %v4251
    %v4284 = vld [vmem:[%s1895] sm:$0x3]
    %v4286 = vlaneseq
    %v4287 = vshrl.u32 %v4286, 7
    %v4288 = vsub.s32 0, %v4287
    %v4289 = vrot.slane %v4284, %v4288
    %v4290 = vlaneseq
    %v4291 = vshrl.u32 %v4290, 7
    %v4292 = vsub.s32 1, %v4291
    %v4293 = vrot.slane %v4284, %v4292
    %v4296 = vmul.f32 %v4268, %v4289
    %v4297 = vmul.f32 %v4276, %v4293
    %v4298 = vmul.f32 %v4269, %v4289
    %v4299 = vmul.f32 %v4277, %v4293
    %v4300 = vmul.f32 %v4270, %v4289
    %v4301 = vmul.f32 %v4278, %v4293
    %v4302 = vmul.f32 %v4271, %v4289
    %v4303 = vmul.f32 %v4279, %v4293
    %v4304 = vmul.f32 %v4272, %v4289
    %v4305 = vmul.f32 %v4280, %v4293
    %v4306 = vmul.f32 %v4273, %v4289
    %v4307 = vmul.f32 %v4281, %v4293
    %v4308 = vmul.f32 %v4274, %v4289
    %v4309 = vmul.f32 %v4282, %v4293
    %v4310 = vmul.f32 %v4275, %v4289
    %v4311 = vmul.f32 %v4283, %v4293
    %v4312 = vld [vmem:[%s1924] sm:$0xff]
    %v4313 = vld [vmem:[%s1924 + $0x8] sm:$0xff]
    %v4314 = vld [vmem:[%s1924 + $0x10] sm:$0xff]
    %v4315 = vld [vmem:[%s1924 + $0x18] sm:$0xff]
    %v4317 = vsel %vm143, %v4312, 0
    %v4320 = vsel %vm143, %v4313, 0
    %v4323 = vsel %vm143, %v4314, 0
    %v4326 = vsel %vm143, %v4315, 0
    %4328 = vmatprep.subr.mxu0 0.0
    %4329 = vmatpush1.msra.mxu0 0.0
    %4330 = vmatprep.subr.mxu0 0.0
    %4331 = vmatpush1.msra.mxu0 0.0
    %4332 = vmatprep.subr.mxu0 0.0
    %4333 = vmatpush1.msra.mxu0 0.0
    %4334 = vmatprep.subr.mxu0 0.0
    %4335 = vmatpush1.msra.mxu0 0.0
    %4336 = vmatprep.subr.mxu0 0.0
    %4337 = vmatpush1.msra.mxu0 0.0
    %4338 = vmatprep.subr.mxu0 0.0
    %4339 = vmatpush1.msra.mxu0 0.0
    %4340 = vmatprep.subr.mxu0 0.0
    %4341 = vmatpush1.msra.mxu0 0.0
    %4342 = vmatprep.subr.mxu0 0.0
    %4343 = vmatpush1.msra.mxu0 0.0
    %4344 = vmatprep.subr.mxu0 %v4311
    %4345 = vmatpush1.msra.mxu0 %v4310
    %4346 = vmatprep.subr.mxu0 %v4309
    %4347 = vmatpush1.msra.mxu0 %v4308
    %4348 = vmatprep.subr.mxu0 %v4307
    %4349 = vmatpush1.msra.mxu0 %v4306
    %4350 = vmatprep.subr.mxu0 %v4305
    %4351 = vmatpush1.msra.mxu0 %v4304
    %4352 = vmatprep.subr.mxu0 %v4303
    %4353 = vmatpush1.msra.mxu0 %v4302
    %4354 = vmatprep.subr.mxu0 %v4301
    %4355 = vmatpush1.msra.mxu0 %v4300
    %4356 = vmatprep.subr.mxu0 %v4299
    %4357 = vmatpush1.msra.mxu0 %v4298
    %4358 = vmatprep.subr.mxu0 %v4297
    %4359 = vmatpush1.msra.mxu0 %v4296
    %4360 = vmatprep.subr.mxu0 0.0
    %4361 = vmatpush2.msra.mxu0 0.0
    %4362 = vmatprep.subr.mxu0 0.0
    %4363 = vmatpush2.msra.mxu0 0.0
    %4364 = vmatprep.subr.mxu0 0.0
    %4365 = vmatpush2.msra.mxu0 0.0
    %4366 = vmatprep.subr.mxu0 0.0
    %4367 = vmatpush2.msra.mxu0 0.0
    %4368 = vmatprep.subr.mxu0 0.0
    %4369 = vmatpush2.msra.mxu0 0.0
    %4370 = vmatprep.subr.mxu0 0.0
    %4371 = vmatpush2.msra.mxu0 0.0
    %4372 = vmatprep.subr.mxu0 0.0
    %4373 = vmatpush2.msra.mxu0 0.0
    %4374 = vmatprep.subr.mxu0 0.0
    %4375 = vmatpush2.msra.mxu0 0.0
    %4376 = vmatprep.subr.mxu0 0.0
    %4377 = vmatpush2.msra.mxu0 0.0
    %4378 = vmatprep.subr.mxu0 0.0
    %4379 = vmatpush2.msra.mxu0 0.0
    %4380 = vmatprep.subr.mxu0 0.0
    %4381 = vmatpush2.msra.mxu0 0.0
    %4382 = vmatprep.subr.mxu0 0.0
    %4383 = vmatpush2.msra.mxu0 0.0
    %4384 = vmatprep.subr.mxu0 0.0
    %4385 = vmatpush2.msra.mxu0 0.0
    %4386 = vmatprep.subr.mxu0 0.0
    %4387 = vmatpush2.msra.mxu0 0.0
    %4388 = vmatprep.subr.mxu0 0.0
    %4389 = vmatpush2.msra.mxu0 0.0
    %4390 = vmatprep.subr.mxu0 0.0
    %4391 = vmatpush2.msra.mxu0 0.0
    %4392 = vmatprep.mubr.f32.mxu0 0.0
    %4393 = vmatmul.mubr.f32.gmra.mxu0 %v4317
    %v4394 = vpop.f32.mrf.mxu0
    %v4395 = vadd.f32 0.0, %v4394
    %v4396 = vpop.f32.mrf.mxu0
    %v4397 = vadd.f32 0.0, %v4396
    %4398 = vmatprep.mubr.f32.mxu0 0.0
    %4399 = vmatmul.mubr.f32.gmra.mxu0 %v4320
    %v4400 = vpop.f32.mrf.mxu0
    %v4401 = vadd.f32 0.0, %v4400
    %v4402 = vpop.f32.mrf.mxu0
    %v4403 = vadd.f32 0.0, %v4402
    %4404 = vmatprep.mubr.f32.mxu0 0.0
    %4405 = vmatmul.mubr.f32.gmra.mxu0 %v4323
    %v4406 = vpop.f32.mrf.mxu0
    %v4407 = vadd.f32 0.0, %v4406
    %v4408 = vpop.f32.mrf.mxu0
    %v4409 = vadd.f32 0.0, %v4408
    %4410 = vmatprep.mubr.f32.mxu0 0.0
    %4411 = vmatmul.mubr.f32.gmra.mxu0 %v4326
    %v4412 = vpop.f32.mrf.mxu0
    %v4413 = vadd.f32 0.0, %v4412
    %v4414 = vpop.f32.mrf.mxu0
    %v4415 = vadd.f32 0.0, %v4414
    %4416 = vdwg.mxu0
    %v4417 = vadd.f32 %v4228, %v4395
    %v4418 = vadd.f32 %v4229, %v4397
    %v4419 = vadd.f32 %v4230, %v4401
    %v4420 = vadd.f32 %v4231, %v4403
    %v4421 = vadd.f32 %v4232, %v4407
    %v4422 = vadd.f32 %v4233, %v4409
    %v4423 = vadd.f32 %v4234, %v4413
    %v4424 = vadd.f32 %v4235, %v4415
    %4425 = vrot.lane.b32.xlu0 %v3065, 112
    %v4426 = vpop.permute.xlu0 %4425
    %4427 = vrot.lane.b32.xlu0 %v3067, 112
    %v4428 = vpop.permute.xlu0 %4427
    %4429 = vrot.lane.b32.xlu0 %v3069, 112
    %v4430 = vpop.permute.xlu0 %4429
    %4431 = vrot.lane.b32.xlu0 %v3071, 112
    %v4432 = vpop.permute.xlu0 %4431
    %4433 = vrot.lane.b32.xlu0 %v3073, 112
    %v4434 = vpop.permute.xlu0 %4433
    %4435 = vrot.lane.b32.xlu0 %v3075, 112
    %v4436 = vpop.permute.xlu0 %4435
    %4437 = vrot.lane.b32.xlu0 %v3077, 112
    %v4438 = vpop.permute.xlu0 %4437
    %4439 = vrot.lane.b32.xlu0 %v3079, 112
    %v4440 = vpop.permute.xlu0 %4439
    %4441 = vrot.lane.b32.xlu0 %v3066, 112
    %v4442 = vpop.permute.xlu0 %4441
    %4443 = vrot.lane.b32.xlu0 %v3068, 112
    %v4444 = vpop.permute.xlu0 %4443
    %4445 = vrot.lane.b32.xlu0 %v3070, 112
    %v4446 = vpop.permute.xlu0 %4445
    %4447 = vrot.lane.b32.xlu0 %v3072, 112
    %v4448 = vpop.permute.xlu0 %4447
    %4449 = vrot.lane.b32.xlu0 %v3074, 112
    %v4450 = vpop.permute.xlu0 %4449
    %4451 = vrot.lane.b32.xlu0 %v3076, 112
    %v4452 = vpop.permute.xlu0 %4451
    %4453 = vrot.lane.b32.xlu0 %v3078, 112
    %v4454 = vpop.permute.xlu0 %4453
    %4455 = vrot.lane.b32.xlu0 %v3080, 112
    %v4456 = vpop.permute.xlu0 %4455
    %v4457 = vsel %vm2070, %v4426, %v4442
    %v4458 = vsel %vm2070, %v4428, %v4444
    %v4459 = vsel %vm2070, %v4430, %v4446
    %v4460 = vsel %vm2070, %v4432, %v4448
    %v4461 = vsel %vm2070, %v4434, %v4450
    %v4462 = vsel %vm2070, %v4436, %v4452
    %v4463 = vsel %vm2070, %v4438, %v4454
    %v4464 = vsel %vm2070, %v4440, %v4456
    %v4465 = vsel %vm2070, %v4442, %v4426
    %v4466 = vsel %vm2070, %v4444, %v4428
    %v4467 = vsel %vm2070, %v4446, %v4430
    %v4468 = vsel %vm2070, %v4448, %v4432
    %v4469 = vsel %vm2070, %v4450, %v4434
    %v4470 = vsel %vm2070, %v4452, %v4436
    %v4471 = vsel %vm2070, %v4454, %v4438
    %v4472 = vsel %vm2070, %v4456, %v4440
    %v4473 = vld [vmem:[%s2087] sm:$0x3]
    %v4475 = vlaneseq
    %v4476 = vshrl.u32 %v4475, 7
    %v4477 = vsub.s32 0, %v4476
    %v4478 = vrot.slane %v4473, %v4477
    %v4479 = vlaneseq
    %v4480 = vshrl.u32 %v4479, 7
    %v4481 = vsub.s32 1, %v4480
    %v4482 = vrot.slane %v4473, %v4481
    %v4485 = vmul.f32 %v4457, %v4478
    %v4486 = vmul.f32 %v4465, %v4482
    %v4487 = vmul.f32 %v4458, %v4478
    %v4488 = vmul.f32 %v4466, %v4482
    %v4489 = vmul.f32 %v4459, %v4478
    %v4490 = vmul.f32 %v4467, %v4482
    %v4491 = vmul.f32 %v4460, %v4478
    %v4492 = vmul.f32 %v4468, %v4482
    %v4493 = vmul.f32 %v4461, %v4478
    %v4494 = vmul.f32 %v4469, %v4482
    %v4495 = vmul.f32 %v4462, %v4478
    %v4496 = vmul.f32 %v4470, %v4482
    %v4497 = vmul.f32 %v4463, %v4478
    %v4498 = vmul.f32 %v4471, %v4482
    %v4499 = vmul.f32 %v4464, %v4478
    %v4500 = vmul.f32 %v4472, %v4482
    %v4501 = vld [vmem:[%s2116] sm:$0xff]
    %v4502 = vld [vmem:[%s2116 + $0x8] sm:$0xff]
    %v4503 = vld [vmem:[%s2116 + $0x10] sm:$0xff]
    %v4504 = vld [vmem:[%s2116 + $0x18] sm:$0xff]
    %v4506 = vsel %vm143, %v4501, 0
    %v4509 = vsel %vm143, %v4502, 0
    %v4512 = vsel %vm143, %v4503, 0
    %v4515 = vsel %vm143, %v4504, 0
    %4517 = vmatprep.subr.mxu0 0.0
    %4518 = vmatpush1.msra.mxu0 0.0
    %4519 = vmatprep.subr.mxu0 0.0
    %4520 = vmatpush1.msra.mxu0 0.0
    %4521 = vmatprep.subr.mxu0 0.0
    %4522 = vmatpush1.msra.mxu0 0.0
    %4523 = vmatprep.subr.mxu0 0.0
    %4524 = vmatpush1.msra.mxu0 0.0
    %4525 = vmatprep.subr.mxu0 0.0
    %4526 = vmatpush1.msra.mxu0 0.0
    %4527 = vmatprep.subr.mxu0 0.0
    %4528 = vmatpush1.msra.mxu0 0.0
    %4529 = vmatprep.subr.mxu0 0.0
    %4530 = vmatpush1.msra.mxu0 0.0
    %4531 = vmatprep.subr.mxu0 0.0
    %4532 = vmatpush1.msra.mxu0 0.0
    %4533 = vmatprep.subr.mxu0 %v4500
    %4534 = vmatpush1.msra.mxu0 %v4499
    %4535 = vmatprep.subr.mxu0 %v4498
    %4536 = vmatpush1.msra.mxu0 %v4497
    %4537 = vmatprep.subr.mxu0 %v4496
    %4538 = vmatpush1.msra.mxu0 %v4495
    %4539 = vmatprep.subr.mxu0 %v4494
    %4540 = vmatpush1.msra.mxu0 %v4493
    %4541 = vmatprep.subr.mxu0 %v4492
    %4542 = vmatpush1.msra.mxu0 %v4491
    %4543 = vmatprep.subr.mxu0 %v4490
    %4544 = vmatpush1.msra.mxu0 %v4489
    %4545 = vmatprep.subr.mxu0 %v4488
    %4546 = vmatpush1.msra.mxu0 %v4487
    %4547 = vmatprep.subr.mxu0 %v4486
    %4548 = vmatpush1.msra.mxu0 %v4485
    %4549 = vmatprep.subr.mxu0 0.0
    %4550 = vmatpush2.msra.mxu0 0.0
    %4551 = vmatprep.subr.mxu0 0.0
    %4552 = vmatpush2.msra.mxu0 0.0
    %4553 = vmatprep.subr.mxu0 0.0
    %4554 = vmatpush2.msra.mxu0 0.0
    %4555 = vmatprep.subr.mxu0 0.0
    %4556 = vmatpush2.msra.mxu0 0.0
    %4557 = vmatprep.subr.mxu0 0.0
    %4558 = vmatpush2.msra.mxu0 0.0
    %4559 = vmatprep.subr.mxu0 0.0
    %4560 = vmatpush2.msra.mxu0 0.0
    %4561 = vmatprep.subr.mxu0 0.0
    %4562 = vmatpush2.msra.mxu0 0.0
    %4563 = vmatprep.subr.mxu0 0.0
    %4564 = vmatpush2.msra.mxu0 0.0
    %4565 = vmatprep.subr.mxu0 0.0
    %4566 = vmatpush2.msra.mxu0 0.0
    %4567 = vmatprep.subr.mxu0 0.0
    %4568 = vmatpush2.msra.mxu0 0.0
    %4569 = vmatprep.subr.mxu0 0.0
    %4570 = vmatpush2.msra.mxu0 0.0
    %4571 = vmatprep.subr.mxu0 0.0
    %4572 = vmatpush2.msra.mxu0 0.0
    %4573 = vmatprep.subr.mxu0 0.0
    %4574 = vmatpush2.msra.mxu0 0.0
    %4575 = vmatprep.subr.mxu0 0.0
    %4576 = vmatpush2.msra.mxu0 0.0
    %4577 = vmatprep.subr.mxu0 0.0
    %4578 = vmatpush2.msra.mxu0 0.0
    %4579 = vmatprep.subr.mxu0 0.0
    %4580 = vmatpush2.msra.mxu0 0.0
    %4581 = vmatprep.mubr.f32.mxu0 0.0
    %4582 = vmatmul.mubr.f32.gmra.mxu0 %v4506
    %v4583 = vpop.f32.mrf.mxu0
    %v4584 = vadd.f32 0.0, %v4583
    %v4585 = vpop.f32.mrf.mxu0
    %v4586 = vadd.f32 0.0, %v4585
    %4587 = vmatprep.mubr.f32.mxu0 0.0
    %4588 = vmatmul.mubr.f32.gmra.mxu0 %v4509
    %v4589 = vpop.f32.mrf.mxu0
    %v4590 = vadd.f32 0.0, %v4589
    %v4591 = vpop.f32.mrf.mxu0
    %v4592 = vadd.f32 0.0, %v4591
    %4593 = vmatprep.mubr.f32.mxu0 0.0
    %4594 = vmatmul.mubr.f32.gmra.mxu0 %v4512
    %v4595 = vpop.f32.mrf.mxu0
    %v4596 = vadd.f32 0.0, %v4595
    %v4597 = vpop.f32.mrf.mxu0
    %v4598 = vadd.f32 0.0, %v4597
    %4599 = vmatprep.mubr.f32.mxu0 0.0
    %4600 = vmatmul.mubr.f32.gmra.mxu0 %v4515
    %v4601 = vpop.f32.mrf.mxu0
    %v4602 = vadd.f32 0.0, %v4601
    %v4603 = vpop.f32.mrf.mxu0
    %v4604 = vadd.f32 0.0, %v4603
    %4605 = vdwg.mxu0
    %v4606 = vadd.f32 %v4417, %v4584
    %v4607 = vadd.f32 %v4418, %v4586
    %v4608 = vadd.f32 %v4419, %v4590
    %v4609 = vadd.f32 %v4420, %v4592
    %v4610 = vadd.f32 %v4421, %v4596
    %v4611 = vadd.f32 %v4422, %v4598
    %v4612 = vadd.f32 %v4423, %v4602
    %v4613 = vadd.f32 %v4424, %v4604
    %4614 = vrot.lane.b32.xlu0 %v3065, 111
    %v4615 = vpop.permute.xlu0 %4614
    %4616 = vrot.lane.b32.xlu0 %v3067, 111
    %v4617 = vpop.permute.xlu0 %4616
    %4618 = vrot.lane.b32.xlu0 %v3069, 111
    %v4619 = vpop.permute.xlu0 %4618
    %4620 = vrot.lane.b32.xlu0 %v3071, 111
    %v4621 = vpop.permute.xlu0 %4620
    %4622 = vrot.lane.b32.xlu0 %v3073, 111
    %v4623 = vpop.permute.xlu0 %4622
    %4624 = vrot.lane.b32.xlu0 %v3075, 111
    %v4625 = vpop.permute.xlu0 %4624
    %4626 = vrot.lane.b32.xlu0 %v3077, 111
    %v4627 = vpop.permute.xlu0 %4626
    %4628 = vrot.lane.b32.xlu0 %v3079, 111
    %v4629 = vpop.permute.xlu0 %4628
    %4630 = vrot.lane.b32.xlu0 %v3066, 111
    %v4631 = vpop.permute.xlu0 %4630
    %4632 = vrot.lane.b32.xlu0 %v3068, 111
    %v4633 = vpop.permute.xlu0 %4632
    %4634 = vrot.lane.b32.xlu0 %v3070, 111
    %v4635 = vpop.permute.xlu0 %4634
    %4636 = vrot.lane.b32.xlu0 %v3072, 111
    %v4637 = vpop.permute.xlu0 %4636
    %4638 = vrot.lane.b32.xlu0 %v3074, 111
    %v4639 = vpop.permute.xlu0 %4638
    %4640 = vrot.lane.b32.xlu0 %v3076, 111
    %v4641 = vpop.permute.xlu0 %4640
    %4642 = vrot.lane.b32.xlu0 %v3078, 111
    %v4643 = vpop.permute.xlu0 %4642
    %4644 = vrot.lane.b32.xlu0 %v3080, 111
    %v4645 = vpop.permute.xlu0 %4644
    %v4646 = vsel %vm2262, %v4615, %v4631
    %v4647 = vsel %vm2262, %v4617, %v4633
    %v4648 = vsel %vm2262, %v4619, %v4635
    %v4649 = vsel %vm2262, %v4621, %v4637
    %v4650 = vsel %vm2262, %v4623, %v4639
    %v4651 = vsel %vm2262, %v4625, %v4641
    %v4652 = vsel %vm2262, %v4627, %v4643
    %v4653 = vsel %vm2262, %v4629, %v4645
    %v4654 = vsel %vm2262, %v4631, %v4615
    %v4655 = vsel %vm2262, %v4633, %v4617
    %v4656 = vsel %vm2262, %v4635, %v4619
    %v4657 = vsel %vm2262, %v4637, %v4621
    %v4658 = vsel %vm2262, %v4639, %v4623
    %v4659 = vsel %vm2262, %v4641, %v4625
    %v4660 = vsel %vm2262, %v4643, %v4627
    %v4661 = vsel %vm2262, %v4645, %v4629
    %v4662 = vld [vmem:[%s2279] sm:$0x3]
    %v4664 = vlaneseq
    %v4665 = vshrl.u32 %v4664, 7
    %v4666 = vsub.s32 0, %v4665
    %v4667 = vrot.slane %v4662, %v4666
    %v4668 = vlaneseq
    %v4669 = vshrl.u32 %v4668, 7
    %v4670 = vsub.s32 1, %v4669
    %v4671 = vrot.slane %v4662, %v4670
    %v4674 = vmul.f32 %v4646, %v4667
    %v4675 = vmul.f32 %v4654, %v4671
    %v4676 = vmul.f32 %v4647, %v4667
    %v4677 = vmul.f32 %v4655, %v4671
    %v4678 = vmul.f32 %v4648, %v4667
    %v4679 = vmul.f32 %v4656, %v4671
    %v4680 = vmul.f32 %v4649, %v4667
    %v4681 = vmul.f32 %v4657, %v4671
    %v4682 = vmul.f32 %v4650, %v4667
    %v4683 = vmul.f32 %v4658, %v4671
    %v4684 = vmul.f32 %v4651, %v4667
    %v4685 = vmul.f32 %v4659, %v4671
    %v4686 = vmul.f32 %v4652, %v4667
    %v4687 = vmul.f32 %v4660, %v4671
    %v4688 = vmul.f32 %v4653, %v4667
    %v4689 = vmul.f32 %v4661, %v4671
    %v4690 = vld [vmem:[%s2308] sm:$0xff]
    %v4691 = vld [vmem:[%s2308 + $0x8] sm:$0xff]
    %v4692 = vld [vmem:[%s2308 + $0x10] sm:$0xff]
    %v4693 = vld [vmem:[%s2308 + $0x18] sm:$0xff]
    %v4695 = vsel %vm143, %v4690, 0
    %v4698 = vsel %vm143, %v4691, 0
    %v4701 = vsel %vm143, %v4692, 0
    %v4704 = vsel %vm143, %v4693, 0
    %4706 = vmatprep.subr.mxu0 0.0
    %4707 = vmatpush1.msra.mxu0 0.0
    %4708 = vmatprep.subr.mxu0 0.0
    %4709 = vmatpush1.msra.mxu0 0.0
    %4710 = vmatprep.subr.mxu0 0.0
    %4711 = vmatpush1.msra.mxu0 0.0
    %4712 = vmatprep.subr.mxu0 0.0
    %4713 = vmatpush1.msra.mxu0 0.0
    %4714 = vmatprep.subr.mxu0 0.0
    %4715 = vmatpush1.msra.mxu0 0.0
    %4716 = vmatprep.subr.mxu0 0.0
    %4717 = vmatpush1.msra.mxu0 0.0
    %4718 = vmatprep.subr.mxu0 0.0
    %4719 = vmatpush1.msra.mxu0 0.0
    %4720 = vmatprep.subr.mxu0 0.0
    %4721 = vmatpush1.msra.mxu0 0.0
    %4722 = vmatprep.subr.mxu0 %v4689
    %4723 = vmatpush1.msra.mxu0 %v4688
    %4724 = vmatprep.subr.mxu0 %v4687
    %4725 = vmatpush1.msra.mxu0 %v4686
    %4726 = vmatprep.subr.mxu0 %v4685
    %4727 = vmatpush1.msra.mxu0 %v4684
    %4728 = vmatprep.subr.mxu0 %v4683
    %4729 = vmatpush1.msra.mxu0 %v4682
    %4730 = vmatprep.subr.mxu0 %v4681
    %4731 = vmatpush1.msra.mxu0 %v4680
    %4732 = vmatprep.subr.mxu0 %v4679
    %4733 = vmatpush1.msra.mxu0 %v4678
    %4734 = vmatprep.subr.mxu0 %v4677
    %4735 = vmatpush1.msra.mxu0 %v4676
    %4736 = vmatprep.subr.mxu0 %v4675
    %4737 = vmatpush1.msra.mxu0 %v4674
    %4738 = vmatprep.subr.mxu0 0.0
    %4739 = vmatpush2.msra.mxu0 0.0
    %4740 = vmatprep.subr.mxu0 0.0
    %4741 = vmatpush2.msra.mxu0 0.0
    %4742 = vmatprep.subr.mxu0 0.0
    %4743 = vmatpush2.msra.mxu0 0.0
    %4744 = vmatprep.subr.mxu0 0.0
    %4745 = vmatpush2.msra.mxu0 0.0
    %4746 = vmatprep.subr.mxu0 0.0
    %4747 = vmatpush2.msra.mxu0 0.0
    %4748 = vmatprep.subr.mxu0 0.0
    %4749 = vmatpush2.msra.mxu0 0.0
    %4750 = vmatprep.subr.mxu0 0.0
    %4751 = vmatpush2.msra.mxu0 0.0
    %4752 = vmatprep.subr.mxu0 0.0
    %4753 = vmatpush2.msra.mxu0 0.0
    %4754 = vmatprep.subr.mxu0 0.0
    %4755 = vmatpush2.msra.mxu0 0.0
    %4756 = vmatprep.subr.mxu0 0.0
    %4757 = vmatpush2.msra.mxu0 0.0
    %4758 = vmatprep.subr.mxu0 0.0
    %4759 = vmatpush2.msra.mxu0 0.0
    %4760 = vmatprep.subr.mxu0 0.0
    %4761 = vmatpush2.msra.mxu0 0.0
    %4762 = vmatprep.subr.mxu0 0.0
    %4763 = vmatpush2.msra.mxu0 0.0
    %4764 = vmatprep.subr.mxu0 0.0
    %4765 = vmatpush2.msra.mxu0 0.0
    %4766 = vmatprep.subr.mxu0 0.0
    %4767 = vmatpush2.msra.mxu0 0.0
    %4768 = vmatprep.subr.mxu0 0.0
    %4769 = vmatpush2.msra.mxu0 0.0
    %4770 = vmatprep.mubr.f32.mxu0 0.0
    %4771 = vmatmul.mubr.f32.gmra.mxu0 %v4695
    %v4772 = vpop.f32.mrf.mxu0
    %v4773 = vadd.f32 0.0, %v4772
    %v4774 = vpop.f32.mrf.mxu0
    %v4775 = vadd.f32 0.0, %v4774
    %4776 = vmatprep.mubr.f32.mxu0 0.0
    %4777 = vmatmul.mubr.f32.gmra.mxu0 %v4698
    %v4778 = vpop.f32.mrf.mxu0
    %v4779 = vadd.f32 0.0, %v4778
    %v4780 = vpop.f32.mrf.mxu0
    %v4781 = vadd.f32 0.0, %v4780
    %4782 = vmatprep.mubr.f32.mxu0 0.0
    %4783 = vmatmul.mubr.f32.gmra.mxu0 %v4701
    %v4784 = vpop.f32.mrf.mxu0
    %v4785 = vadd.f32 0.0, %v4784
    %v4786 = vpop.f32.mrf.mxu0
    %v4787 = vadd.f32 0.0, %v4786
    %4788 = vmatprep.mubr.f32.mxu0 0.0
    %4789 = vmatmul.mubr.f32.gmra.mxu0 %v4704
    %v4790 = vpop.f32.mrf.mxu0
    %v4791 = vadd.f32 0.0, %v4790
    %v4792 = vpop.f32.mrf.mxu0
    %v4793 = vadd.f32 0.0, %v4792
    %4794 = vdwg.mxu0
    %v4795 = vadd.f32 %v4606, %v4773
    %v4796 = vadd.f32 %v4607, %v4775
    %v4797 = vadd.f32 %v4608, %v4779
    %v4798 = vadd.f32 %v4609, %v4781
    %v4799 = vadd.f32 %v4610, %v4785
    %v4800 = vadd.f32 %v4611, %v4787
    %v4801 = vadd.f32 %v4612, %v4791
    %v4802 = vadd.f32 %v4613, %v4793
    %v4803 = vld [vmem:[%s6] sm:$0xff]
    %v4804 = vld [vmem:[%s6 + $0x8] sm:$0xff]
    %v4805 = vld [vmem:[%s6 + $0x10] sm:$0xff]
    %v4806 = vld [vmem:[%s6 + $0x18] sm:$0xff]
    %4808 = vset.pattern.permute.xlu0 0
    %4809 = vperm.xlu0 %4808, %v4803
    %v4810 = vpop.permute.xlu0 %4809
    %4813 = vset.pattern.permute.xlu0 0
    %4814 = vperm.xlu0 %4813, %v4804
    %v4815 = vpop.permute.xlu0 %4814
    %4818 = vset.pattern.permute.xlu0 0
    %4819 = vperm.xlu0 %4818, %v4805
    %v4820 = vpop.permute.xlu0 %4819
    %4823 = vset.pattern.permute.xlu0 0
    %4824 = vperm.xlu0 %4823, %v4806
    %v4825 = vpop.permute.xlu0 %4824
    %v4827 = vadd.f32 %v4795, %v4810
    %v4828 = vadd.f32 %v4796, %v4810
    %v4829 = vadd.f32 %v4797, %v4815
    %v4830 = vadd.f32 %v4798, %v4815
    %v4831 = vadd.f32 %v4799, %v4820
    %v4832 = vadd.f32 %v4800, %v4820
    %v4833 = vadd.f32 %v4801, %v4825
    %v4834 = vadd.f32 %v4802, %v4825
    %s4835 = scalar_lea.vmem [#allocation7], 64
    %4836 = vst [vmem:[%s4835] sm:$0xff] %v4827
    %4837 = vst [vmem:[%s4835 + $0x8] sm:$0xff] %v4828
    %4838 = vst [vmem:[%s4835 + $0x10] sm:$0xff] %v4829
    %4839 = vst [vmem:[%s4835 + $0x18] sm:$0xff] %v4830
    %4840 = vst [vmem:[%s4835 + $0x20] sm:$0xff] %v4831
    %4841 = vst [vmem:[%s4835 + $0x28] sm:$0xff] %v4832
    %4842 = vst [vmem:[%s4835 + $0x30] sm:$0xff] %v4833
    %4843 = vst [vmem:[%s4835 + $0x38] sm:$0xff] %v4834
    // Predicated region
    $region38: #{tpu_custom_call.1} parent=1 // pred_check
      _
    $region39: #{tpu_custom_call.1} parent=1 // pred_check_branch
      %4845 = sbr.rel (0) target = $region41
    $region40: #{tpu_custom_call.1} parent=1 // pred_region
      %s4847 = ssub.s32 2048, 2048
      %4848 = vsyncadd [#allocation4], %s4847
      %s4849 = sshll.u32 [#allocation7], 4
      %s4850 = int_to_ptr.vmem [resolvable:$true] %s4849
      %4855 = dma.vmem_to_hbm [thread:$0]  %s4850, 2048, %s7, [#allocation4], 256, 256, 16
    $region41: #{tpu_custom_call.1} parent=1 // pred_fallthru
      _
    // Predicated region
    $region42: #{tpu_custom_call.1} parent=1 // pred_check
      _
    $region43: #{tpu_custom_call.1} parent=1 // pred_check_branch
      %4857 = sbr.rel (0) target = $region45
    $region44: #{tpu_custom_call.1} parent=1 // pred_region
      %4858 = dma.done [#allocation4], 2048
    $region45: #{tpu_custom_call.1} parent=1 // pred_fallthru
      _
    %4859 = vsyncpa [#allocation3], 1
    %4860 = vsyncpa [#allocation6], 1
    %4861 = vsyncpa [#allocation4], 1

</llo_original>
